<compile_context>
chip_gen: v5e
topology: v5e:2x2
jax: 0.10.0
libtpu: 0.0.40
codegen_flags: <defaults>
</compile_context>

<pallas_src>
import functools
import math

import jax
import jax.numpy as jnp
from jax import lax
from jax.experimental import pallas as pl
from jax.experimental.pallas import tpu as pltpu

EMBED = 64                       # fixed by the module (embed_dim=64)
NUM_HEADS = 4
HEAD_DIM = EMBED // NUM_HEADS
_HI = lax.Precision.HIGHEST      # TODO(synk): drop HIGHEST / go bf16 if T grows large.

# One batch element's f32 working slab; with native-dtype in/out blocks
# double-buffered this stays well inside the 32 MiB scoped VMEM on all
# generations, including v7x's smaller 64 MiB physical VMEM.
_FUSED_SLAB_BUDGET = 4 * 1024 * 1024
_CHUNK_BUDGET = 4 * 1024 * 1024
_VMEM_LIMIT = 32 * 1024 * 1024


# ---------------------------------------------------------------------------
# Shared channel-major multi-head attention math (pure values, all f32).
#   s: (C, Tq) query-side features, p: (C, Tk) key/value-side features.
#   Returns (C, Tq) attention output, already out-projected (+ bias).
# ---------------------------------------------------------------------------
def _mha_math(s, p, w_in, b_in, w_o, b_o):
    c = EMBED
    # in_proj_weight = [W_q; W_k; W_v] stacked (3C, C); 1x1-conv style matmuls.
    q = jnp.dot(w_in[0 * c:1 * c], s, precision=_HI,
                preferred_element_type=jnp.float32) + b_in[0 * c:1 * c]
    k = jnp.dot(w_in[1 * c:2 * c], p, precision=_HI,
                preferred_element_type=jnp.float32) + b_in[1 * c:2 * c]
    v = jnp.dot(w_in[2 * c:3 * c], p, precision=_HI,
                preferred_element_type=jnp.float32) + b_in[2 * c:3 * c]

    scale = 1.0 / math.sqrt(HEAD_DIM)
    heads = []
    for h in range(NUM_HEADS):                          # static, fully unrolled
        lo, hi = h * HEAD_DIM, (h + 1) * HEAD_DIM
        qh, kh, vh = q[lo:hi], k[lo:hi], v[lo:hi]       # (hd, T)
        # scores[q, k] = sum_d qh[d, q] * kh[d, k]   (contract head dim directly)
        scores = lax.dot_general(qh, kh, (((0,), (0,)), ((), ())),
                                 precision=_HI,
                                 preferred_element_type=jnp.float32) * scale
        scores = scores - jnp.max(scores, axis=-1, keepdims=True)
        e = jnp.exp(scores)
        attn = e * pl.reciprocal(jnp.sum(e, axis=-1, keepdims=True), approx=True)
        # out_h[d, q] = sum_k vh[d, k] * attn[q, k]
        heads.append(lax.dot_general(vh, attn, (((1,), (1,)), ((), ())),
                                     precision=_HI,
                                     preferred_element_type=jnp.float32))
    concat = jnp.concatenate(heads, axis=0)                            # (C, Tq)
    return jnp.dot(w_o, concat, precision=_HI,
                   preferred_element_type=jnp.float32) + b_o


# ---------------------------------------------------------------------------
# Fused kernel (main path): pool + MHA + broadcast residual for one batch elem.
#   x:(1,C,T,HW) native dtype -> out:(1,C,T,HW) native dtype, single HBM pass.
# ---------------------------------------------------------------------------
def _fused_kernel(s_ref, w_in_ref, b_in_ref, w_o_ref, b_o_ref, x_ref, o_ref, *,
                  inv_hw):
    x = x_ref[...].astype(jnp.float32)                  # (1, C, T, HW) in VMEM
    pooled = jnp.sum(x, axis=-1)[0] * inv_hw            # (C, T) spatial mean
    a = _mha_math(s_ref[0].astype(jnp.float32), pooled,
                  w_in_ref[...].astype(jnp.float32),
                  b_in_ref[...].astype(jnp.float32),
                  w_o_ref[...].astype(jnp.float32),
                  b_o_ref[...].astype(jnp.float32))     # (C, T)
    o_ref[...] = (x + a[None, :, :, None]).astype(o_ref.dtype)


# ---------------------------------------------------------------------------
# Fallback kernel 1: spatial average pool.  Either accumulates over HW chunks
# (j axis "arbitrary") or emits per-T-chunk results (j axis "parallel").
# ---------------------------------------------------------------------------
def _pool_kernel(x_ref, o_ref, *, inv_hw, accumulate):
    partial = jnp.sum(x_ref[...].astype(jnp.float32), axis=-1)   # (1, C, t_blk)
    if accumulate:
        j = pl.program_id(1)

        @pl.when(j == 0)
        def _():
            o_ref[...] = jnp.zeros_like(o_ref)

        o_ref[...] += partial

        @pl.when(j == pl.num_programs(1) - 1)
        def _():
            o_ref[...] *= inv_hw
    else:
        o_ref[...] = partial * inv_hw


# ---------------------------------------------------------------------------
# Fallback kernel 2: MHA + broadcast residual-add for one (batch, chunk) block.
# The sensor block carries exactly the queries this chunk needs, so the
# attention output has the right (C, t_blk) shape with no scratch or slicing.
# ---------------------------------------------------------------------------
def _mha_residual_kernel(s_ref, p_ref, w_in_ref, b_in_ref, w_o_ref, b_o_ref,
                         x_ref, o_ref):
    a = _mha_math(s_ref[0].astype(jnp.float32),
                  p_ref[0].astype(jnp.float32),
                  w_in_ref[...].astype(jnp.float32),
                  b_in_ref[...].astype(jnp.float32),
                  w_o_ref[...].astype(jnp.float32),
                  b_o_ref[...].astype(jnp.float32))     # (C, t_blk)
    o_ref[...] = (x_ref[...].astype(jnp.float32)
                  + a[None, :, :, None]).astype(o_ref.dtype)


# ---------------------------------------------------------------------------
# Chunk picking for the fallback path.
# Block (1, C, tc, hwc): last two dims must be (mult of 8, mult of 128) or full.
# ---------------------------------------------------------------------------
def _pick_chunks(c, t, hw):
    if c * t * hw * 4 <= _CHUNK_BUDGET:
        return t, hw
    if hw % 128 == 0:
        best = None
        hwc = 128
        while hwc <= hw:
            if hw % hwc == 0 and c * t * hwc * 4 <= _CHUNK_BUDGET:
                best = hwc
            hwc += 128
        if best is not None:
            return t, best
    # hw not chunkable (or still too big) -> chunk T in multiples of 8.
    best_t = None
    for tc in range(8, t, 8):
        if t % tc == 0 and c * tc * hw * 4 <= _CHUNK_BUDGET:
            best_t = tc
    if best_t is not None:
        return best_t, hw
    # TODO(synk): chunk both T and HW (or the batch axis) for extreme shapes;
    # until then rely on vmem_limit_bytes headroom with the full slab.
    return t, hw


# ---------------------------------------------------------------------------
# Wrapper
# ---------------------------------------------------------------------------
def cross_attention_integration(x, sensor_data, w_in, b_in, w_o, b_o):
    n, c, t, h, w = x.shape
    assert c == EMBED and sensor_data.shape == (n, EMBED, t)
    hw = h * w

    # native layout: (N, C, T, H, W) -> (N, C, T, H*W) is a free reshape.
    xf = x.reshape(n, c, t, hw)
    out_dtype = x.dtype

    if c * t * hw * 4 <= _FUSED_SLAB_BUDGET:
        # ---- fully fused: one HBM read and one HBM write of x -------------
        # TODO(synk): for N == 1 on v7x, add a parallel chunk axis so both
        # TensorCores get work.
        out = pl.pallas_call(
            functools.partial(_fused_kernel, inv_hw=1.0 / hw),
            out_shape=jax.ShapeDtypeStruct((n, c, t, hw), out_dtype),
            grid=(n,),
            in_specs=[pl.BlockSpec((1, c, t), lambda i: (i, 0, 0)),
                      pl.BlockSpec((3 * c, c), lambda i: (0, 0)),
                      pl.BlockSpec((3 * c, 1), lambda i: (0, 0)),
                      pl.BlockSpec((c, c), lambda i: (0, 0)),
                      pl.BlockSpec((c, 1), lambda i: (0, 0)),
                      pl.BlockSpec((1, c, t, hw), lambda i: (i, 0, 0, 0))],
            out_specs=pl.BlockSpec((1, c, t, hw), lambda i: (i, 0, 0, 0)),
            compiler_params=pltpu.CompilerParams(
                dimension_semantics=("parallel",),
                vmem_limit_bytes=_VMEM_LIMIT),
        )(sensor_data, w_in, b_in, w_o, b_o, xf)
        return out.reshape(n, c, t, h, w)

    # ---- fallback: slab too big for VMEM, chunk it ------------------------
    tc, hwc = _pick_chunks(c, t, hw)
    n_t, n_hw = t // tc, hw // hwc
    chunk_t = n_t > 1
    n_chunk = n_t if chunk_t else n_hw

    if chunk_t:
        x_spec = pl.BlockSpec((1, c, tc, hw), lambda i, j: (i, 0, j, 0))
        p_out_spec = pl.BlockSpec((1, c, tc), lambda i, j: (i, 0, j))
        pool_sem = ("parallel", "parallel")
        s_spec = pl.BlockSpec((1, c, tc), lambda i, j: (i, 0, j))
    else:
        x_spec = pl.BlockSpec((1, c, t, hwc), lambda i, j: (i, 0, 0, j))
        p_out_spec = pl.BlockSpec((1, c, t), lambda i, j: (i, 0, 0))
        pool_sem = ("parallel", "arbitrary")       # accumulates over j
        s_spec = pl.BlockSpec((1, c, t), lambda i, j: (i, 0, 0))

    pooled = pl.pallas_call(
        functools.partial(_pool_kernel, inv_hw=1.0 / hw, accumulate=not chunk_t),
        out_shape=jax.ShapeDtypeStruct((n, c, t), jnp.float32),
        grid=(n, n_chunk),
        in_specs=[x_spec],
        out_specs=p_out_spec,
        compiler_params=pltpu.CompilerParams(
            dimension_semantics=pool_sem, vmem_limit_bytes=_VMEM_LIMIT),
    )(xf)

    out = pl.pallas_call(
        _mha_residual_kernel,
        out_shape=jax.ShapeDtypeStruct((n, c, t, hw), out_dtype),
        grid=(n, n_chunk),
        in_specs=[s_spec,
                  pl.BlockSpec((1, c, t), lambda i, j: (i, 0, 0)),
                  pl.BlockSpec((3 * c, c), lambda i, j: (0, 0)),
                  pl.BlockSpec((3 * c, 1), lambda i, j: (0, 0)),
                  pl.BlockSpec((c, c), lambda i, j: (0, 0)),
                  pl.BlockSpec((c, 1), lambda i, j: (0, 0)),
                  x_spec],
        out_specs=x_spec,
        compiler_params=pltpu.CompilerParams(
            dimension_semantics=("parallel", "parallel"),
            vmem_limit_bytes=_VMEM_LIMIT),
    )(sensor_data, pooled, w_in, b_in, w_o, b_o, xf)

    return out.reshape(n, c, t, h, w)


# ---------------------------------------------------------------------------
# Pure-JAX reference (PyTorch nn.MultiheadAttention semantics)
# ---------------------------------------------------------------------------
def _ref_forward(x, sensor_data, w_in, b_in, w_o, b_o):
    n, c, t, h, w = x.shape
    hd = c // NUM_HEADS
    x_pooled = jnp.mean(x, axis=(3, 4)).transpose(0, 2, 1)      # (N, T, C)
    s_proj = sensor_data.transpose(0, 2, 1)                      # (N, T, C)
    bi = b_in[:, 0]
    q = jnp.einsum('ntc,oc->nto', s_proj, w_in[:c], precision=_HI) + bi[:c]
    k = jnp.einsum('ntc,oc->nto', x_pooled, w_in[c:2 * c], precision=_HI) + bi[c:2 * c]
    v = jnp.einsum('ntc,oc->nto', x_pooled, w_in[2 * c:], precision=_HI) + bi[2 * c:]

    def split(a):  # (N, T, C) -> (N, heads, T, hd)
        return a.reshape(n, t, NUM_HEADS, hd).transpose(0, 2, 1, 3)

    qh, kh, vh = split(q), split(k), split(v)
    scores = jnp.einsum('nhqd,nhkd->nhqk', qh, kh, precision=_HI) / math.sqrt(hd)
    attn = jax.nn.softmax(scores, axis=-1)
    o = jnp.einsum('nhqk,nhkd->nhqd', attn, vh, precision=_HI)
    o = o.transpose(0, 2, 1, 3).reshape(n, t, c)
    o = jnp.einsum('ntc,oc->nto', o, w_o, precision=_HI) + b_o[:, 0]
    return x + o.transpose(0, 2, 1)[:, :, :, None, None]


if __name__ == "__main__":
    key = jax.random.PRNGKey(0)
    kx, ks, k1, k2, k3, k4 = jax.random.split(key, 6)

    N, T, H, W = 2, 8, 16, 16          # H*W = 256 -> lane-dense trailing dim
    x = jax.random.normal(kx, (N, EMBED, T, H, W), jnp.float32)
    sensor = jax.random.normal(ks, (N, EMBED, T), jnp.float32)

    # nn.MultiheadAttention params: in_proj_weight = [W_q; W_k; W_v] (3C, C);
    # biases kept 2-D (., 1) so they map cleanly onto sublane x lane tiles.
    scale = 1.0 / math.sqrt(EMBED)
    w_in = jax.random.uniform(k1, (3 * EMBED, EMBED), jnp.float32, -scale, scale)
    b_in = jax.random.uniform(k2, (3 * EMBED, 1), jnp.float32, -scale, scale)
    w_o = jax.random.uniform(k3, (EMBED, EMBED), jnp.float32, -scale, scale)
    b_o = jax.random.uniform(k4, (EMBED, 1), jnp.float32, -scale, scale)

    out = cross_attention_integration(x, sensor, w_in, b_in, w_o, b_o)
    out = jax.block_until_ready(out)

    ref = jax.block_until_ready(_ref_forward(x, sensor, w_in, b_in, w_o, b_o))
    assert out.shape == x.shape
    assert out.dtype == x.dtype
    assert jnp.allclose(out, ref, rtol=2e-3, atol=2e-3), "mismatch vs reference"

    print("KERNEL_OK")
</pallas_src>

<mosaic_0001>
module attributes {stable_mosaic.version = 11 : i64} {
  func.func @_fused_kernel(%arg0: i32, %arg1: memref<1x64x8xf32, #tpu.memory_space<vmem>>, %arg2: memref<192x64xf32, #tpu.memory_space<vmem>>, %arg3: memref<192x1xf32, #tpu.memory_space<vmem>>, %arg4: memref<64x64xf32, #tpu.memory_space<vmem>>, %arg5: memref<64x1xf32, #tpu.memory_space<vmem>>, %arg6: memref<1x64x8x256xf32, #tpu.memory_space<vmem>>, %arg7: memref<1x64x8x256xf32, #tpu.memory_space<vmem>>) attributes {dimension_semantics = [#tpu.dimension_semantics<parallel>], iteration_bounds = array<i64: 2>, scalar_prefetch = 0 : i64, scratch_operands = 0 : i64, tpu.core_type = #tpu.core_type<tc>, window_params = [{transform_indices = @transform_0, window_bounds = array<i64: 1, 64, 8>}, {pipeline_mode = #tpu.pipeline_mode<synchronous>, transform_indices = @transform_1, window_bounds = array<i64: 192, 64>}, {pipeline_mode = #tpu.pipeline_mode<synchronous>, transform_indices = @transform_2, window_bounds = array<i64: 192, 1>}, {pipeline_mode = #tpu.pipeline_mode<synchronous>, transform_indices = @transform_3, window_bounds = array<i64: 64, 64>}, {pipeline_mode = #tpu.pipeline_mode<synchronous>, transform_indices = @transform_4, window_bounds = array<i64: 64, 1>}, {transform_indices = @transform_5, window_bounds = array<i64: 1, 64, 8, 256>}, {transform_indices = @transform_6, window_bounds = array<i64: 1, 64, 8, 256>}]} {
    %c0 = arith.constant 0 : index
    %c0_0 = arith.constant 0 : index
    %c0_1 = arith.constant 0 : index
    %c0_2 = arith.constant 0 : index
    %0 = vector.load %arg6[%c0, %c0_0, %c0_1, %c0_2] : memref<1x64x8x256xf32, #tpu.memory_space<vmem>>, vector<1x64x8x256xf32>
    %cst = arith.constant dense<0.000000e+00> : vector<1x64x8xf32>
    %1 = vector.multi_reduction <add>, %0, %cst [3] : vector<1x64x8x256xf32> to vector<1x64x8xf32>
    %2 = vector.shape_cast %1 : vector<1x64x8xf32> to vector<64x8xf32>
    %cst_3 = arith.constant 3.906250e-03 : f32
    %3 = vector.broadcast %cst_3 : f32 to vector<64x8xf32>
    %4 = arith.mulf %2, %3 : vector<64x8xf32>
    %c0_4 = arith.constant 0 : index
    %c0_5 = arith.constant 0 : index
    %c0_6 = arith.constant 0 : index
    %5 = vector.load %arg1[%c0_4, %c0_5, %c0_6] : memref<1x64x8xf32, #tpu.memory_space<vmem>>, vector<1x64x8xf32>
    %6 = vector.shape_cast %5 : vector<1x64x8xf32> to vector<64x8xf32>
    %c0_7 = arith.constant 0 : index
    %c0_8 = arith.constant 0 : index
    %7 = vector.load %arg2[%c0_7, %c0_8] : memref<192x64xf32, #tpu.memory_space<vmem>>, vector<192x64xf32>
    %c0_9 = arith.constant 0 : index
    %c0_10 = arith.constant 0 : index
    %8 = vector.load %arg3[%c0_9, %c0_10] : memref<192x1xf32, #tpu.memory_space<vmem>>, vector<192x1xf32>
    %c0_11 = arith.constant 0 : index
    %c0_12 = arith.constant 0 : index
    %9 = vector.load %arg4[%c0_11, %c0_12] : memref<64x64xf32, #tpu.memory_space<vmem>>, vector<64x64xf32>
    %c0_13 = arith.constant 0 : index
    %c0_14 = arith.constant 0 : index
    %10 = vector.load %arg5[%c0_13, %c0_14] : memref<64x1xf32, #tpu.memory_space<vmem>>, vector<64x1xf32>
    %11 = vector.extract_strided_slice %7 {offsets = [0, 0], sizes = [64, 64], strides = [1, 1]} : vector<192x64xf32> to vector<64x64xf32>
    %cst_15 = arith.constant dense<0.000000e+00> : vector<64x8xf32>
    %12 = tpu.matmul %11, %6, %cst_15 {dimension_numbers = #tpu.dot_dimension_numbers<[1], [0], [0], [1], [0, 0, 1, 1], [], []>, precision = #tpu.contract_precision<fp32>} : vector<64x64xf32>, vector<64x8xf32>, vector<64x8xf32> -> vector<64x8xf32>
    %13 = vector.extract_strided_slice %8 {offsets = [0, 0], sizes = [64, 1], strides = [1, 1]} : vector<192x1xf32> to vector<64x1xf32>
    %14 = vector.broadcast %13 : vector<64x1xf32> to vector<64x8xf32>
    %15 = arith.addf %12, %14 : vector<64x8xf32>
    %16 = vector.extract_strided_slice %7 {offsets = [64, 0], sizes = [64, 64], strides = [1, 1]} : vector<192x64xf32> to vector<64x64xf32>
    %cst_16 = arith.constant dense<0.000000e+00> : vector<64x8xf32>
    %17 = tpu.matmul %16, %4, %cst_16 {dimension_numbers = #tpu.dot_dimension_numbers<[1], [0], [0], [1], [0, 0, 1, 1], [], []>, precision = #tpu.contract_precision<fp32>} : vector<64x64xf32>, vector<64x8xf32>, vector<64x8xf32> -> vector<64x8xf32>
    %18 = vector.extract_strided_slice %8 {offsets = [64, 0], sizes = [64, 1], strides = [1, 1]} : vector<192x1xf32> to vector<64x1xf32>
    %19 = vector.broadcast %18 : vector<64x1xf32> to vector<64x8xf32>
    %20 = arith.addf %17, %19 : vector<64x8xf32>
    %21 = vector.extract_strided_slice %7 {offsets = [128, 0], sizes = [64, 64], strides = [1, 1]} : vector<192x64xf32> to vector<64x64xf32>
    %cst_17 = arith.constant dense<0.000000e+00> : vector<64x8xf32>
    %22 = tpu.matmul %21, %4, %cst_17 {dimension_numbers = #tpu.dot_dimension_numbers<[1], [0], [0], [1], [0, 0, 1, 1], [], []>, precision = #tpu.contract_precision<fp32>} : vector<64x64xf32>, vector<64x8xf32>, vector<64x8xf32> -> vector<64x8xf32>
    %23 = vector.extract_strided_slice %8 {offsets = [128, 0], sizes = [64, 1], strides = [1, 1]} : vector<192x1xf32> to vector<64x1xf32>
    %24 = vector.broadcast %23 : vector<64x1xf32> to vector<64x8xf32>
    %25 = arith.addf %22, %24 : vector<64x8xf32>
    %26 = vector.extract_strided_slice %15 {offsets = [0, 0], sizes = [16, 8], strides = [1, 1]} : vector<64x8xf32> to vector<16x8xf32>
    %27 = vector.extract_strided_slice %20 {offsets = [0, 0], sizes = [16, 8], strides = [1, 1]} : vector<64x8xf32> to vector<16x8xf32>
    %28 = vector.extract_strided_slice %25 {offsets = [0, 0], sizes = [16, 8], strides = [1, 1]} : vector<64x8xf32> to vector<16x8xf32>
    %cst_18 = arith.constant dense<0.000000e+00> : vector<8x8xf32>
    %29 = tpu.matmul %26, %27, %cst_18 {dimension_numbers = #tpu.dot_dimension_numbers<[0], [0], [1], [1], [0, 1, 1, 1], [], []>, precision = #tpu.contract_precision<fp32>} : vector<16x8xf32>, vector<16x8xf32>, vector<8x8xf32> -> vector<8x8xf32>
    %cst_19 = arith.constant 2.500000e-01 : f32
    %30 = vector.broadcast %cst_19 : f32 to vector<8x8xf32>
    %31 = arith.mulf %29, %30 : vector<8x8xf32>
    %cst_20 = arith.constant dense<0xFF800000> : vector<8xf32>
    %32 = vector.multi_reduction <maximumf>, %31, %cst_20 [1] : vector<8x8xf32> to vector<8xf32>
    %33 = vector.shape_cast %32 : vector<8xf32> to vector<8x1xf32>
    %34 = vector.broadcast %33 : vector<8x1xf32> to vector<8x8xf32>
    %35 = arith.subf %31, %34 : vector<8x8xf32>
    %36 = math.exp %35 : vector<8x8xf32>
    %cst_21 = arith.constant dense<0.000000e+00> : vector<8xf32>
    %37 = vector.multi_reduction <add>, %36, %cst_21 [1] : vector<8x8xf32> to vector<8xf32>
    %38 = vector.shape_cast %37 : vector<8xf32> to vector<8x1xf32>
    %39 = tpu.reciprocal %38 {approx = true} : vector<8x1xf32> -> vector<8x1xf32>
    %40 = vector.broadcast %39 : vector<8x1xf32> to vector<8x8xf32>
    %41 = arith.mulf %36, %40 : vector<8x8xf32>
    %cst_22 = arith.constant dense<0.000000e+00> : vector<16x8xf32>
    %42 = tpu.matmul %28, %41, %cst_22 {dimension_numbers = #tpu.dot_dimension_numbers<[1], [1], [0], [0], [0, 0, 1, 0], [], []>, precision = #tpu.contract_precision<fp32>} : vector<16x8xf32>, vector<8x8xf32>, vector<16x8xf32> -> vector<16x8xf32>
    %43 = vector.extract_strided_slice %15 {offsets = [16, 0], sizes = [16, 8], strides = [1, 1]} : vector<64x8xf32> to vector<16x8xf32>
    %44 = vector.extract_strided_slice %20 {offsets = [16, 0], sizes = [16, 8], strides = [1, 1]} : vector<64x8xf32> to vector<16x8xf32>
    %45 = vector.extract_strided_slice %25 {offsets = [16, 0], sizes = [16, 8], strides = [1, 1]} : vector<64x8xf32> to vector<16x8xf32>
    %cst_23 = arith.constant dense<0.000000e+00> : vector<8x8xf32>
    %46 = tpu.matmul %43, %44, %cst_23 {dimension_numbers = #tpu.dot_dimension_numbers<[0], [0], [1], [1], [0, 1, 1, 1], [], []>, precision = #tpu.contract_precision<fp32>} : vector<16x8xf32>, vector<16x8xf32>, vector<8x8xf32> -> vector<8x8xf32>
    %cst_24 = arith.constant 2.500000e-01 : f32
    %47 = vector.broadcast %cst_24 : f32 to vector<8x8xf32>
    %48 = arith.mulf %46, %47 : vector<8x8xf32>
    %cst_25 = arith.constant dense<0xFF800000> : vector<8xf32>
    %49 = vector.multi_reduction <maximumf>, %48, %cst_25 [1] : vector<8x8xf32> to vector<8xf32>
    %50 = vector.shape_cast %49 : vector<8xf32> to vector<8x1xf32>
    %51 = vector.broadcast %50 : vector<8x1xf32> to vector<8x8xf32>
    %52 = arith.subf %48, %51 : vector<8x8xf32>
    %53 = math.exp %52 : vector<8x8xf32>
    %cst_26 = arith.constant dense<0.000000e+00> : vector<8xf32>
    %54 = vector.multi_reduction <add>, %53, %cst_26 [1] : vector<8x8xf32> to vector<8xf32>
    %55 = vector.shape_cast %54 : vector<8xf32> to vector<8x1xf32>
    %56 = tpu.reciprocal %55 {approx = true} : vector<8x1xf32> -> vector<8x1xf32>
    %57 = vector.broadcast %56 : vector<8x1xf32> to vector<8x8xf32>
    %58 = arith.mulf %53, %57 : vector<8x8xf32>
    %cst_27 = arith.constant dense<0.000000e+00> : vector<16x8xf32>
    %59 = tpu.matmul %45, %58, %cst_27 {dimension_numbers = #tpu.dot_dimension_numbers<[1], [1], [0], [0], [0, 0, 1, 0], [], []>, precision = #tpu.contract_precision<fp32>} : vector<16x8xf32>, vector<8x8xf32>, vector<16x8xf32> -> vector<16x8xf32>
    %60 = vector.extract_strided_slice %15 {offsets = [32, 0], sizes = [16, 8], strides = [1, 1]} : vector<64x8xf32> to vector<16x8xf32>
    %61 = vector.extract_strided_slice %20 {offsets = [32, 0], sizes = [16, 8], strides = [1, 1]} : vector<64x8xf32> to vector<16x8xf32>
    %62 = vector.extract_strided_slice %25 {offsets = [32, 0], sizes = [16, 8], strides = [1, 1]} : vector<64x8xf32> to vector<16x8xf32>
    %cst_28 = arith.constant dense<0.000000e+00> : vector<8x8xf32>
    %63 = tpu.matmul %60, %61, %cst_28 {dimension_numbers = #tpu.dot_dimension_numbers<[0], [0], [1], [1], [0, 1, 1, 1], [], []>, precision = #tpu.contract_precision<fp32>} : vector<16x8xf32>, vector<16x8xf32>, vector<8x8xf32> -> vector<8x8xf32>
    %cst_29 = arith.constant 2.500000e-01 : f32
    %64 = vector.broadcast %cst_29 : f32 to vector<8x8xf32>
    %65 = arith.mulf %63, %64 : vector<8x8xf32>
    %cst_30 = arith.constant dense<0xFF800000> : vector<8xf32>
    %66 = vector.multi_reduction <maximumf>, %65, %cst_30 [1] : vector<8x8xf32> to vector<8xf32>
    %67 = vector.shape_cast %66 : vector<8xf32> to vector<8x1xf32>
    %68 = vector.broadcast %67 : vector<8x1xf32> to vector<8x8xf32>
    %69 = arith.subf %65, %68 : vector<8x8xf32>
    %70 = math.exp %69 : vector<8x8xf32>
    %cst_31 = arith.constant dense<0.000000e+00> : vector<8xf32>
    %71 = vector.multi_reduction <add>, %70, %cst_31 [1] : vector<8x8xf32> to vector<8xf32>
    %72 = vector.shape_cast %71 : vector<8xf32> to vector<8x1xf32>
    %73 = tpu.reciprocal %72 {approx = true} : vector<8x1xf32> -> vector<8x1xf32>
    %74 = vector.broadcast %73 : vector<8x1xf32> to vector<8x8xf32>
    %75 = arith.mulf %70, %74 : vector<8x8xf32>
    %cst_32 = arith.constant dense<0.000000e+00> : vector<16x8xf32>
    %76 = tpu.matmul %62, %75, %cst_32 {dimension_numbers = #tpu.dot_dimension_numbers<[1], [1], [0], [0], [0, 0, 1, 0], [], []>, precision = #tpu.contract_precision<fp32>} : vector<16x8xf32>, vector<8x8xf32>, vector<16x8xf32> -> vector<16x8xf32>
    %77 = vector.extract_strided_slice %15 {offsets = [48, 0], sizes = [16, 8], strides = [1, 1]} : vector<64x8xf32> to vector<16x8xf32>
    %78 = vector.extract_strided_slice %20 {offsets = [48, 0], sizes = [16, 8], strides = [1, 1]} : vector<64x8xf32> to vector<16x8xf32>
    %79 = vector.extract_strided_slice %25 {offsets = [48, 0], sizes = [16, 8], strides = [1, 1]} : vector<64x8xf32> to vector<16x8xf32>
    %cst_33 = arith.constant dense<0.000000e+00> : vector<8x8xf32>
    %80 = tpu.matmul %77, %78, %cst_33 {dimension_numbers = #tpu.dot_dimension_numbers<[0], [0], [1], [1], [0, 1, 1, 1], [], []>, precision = #tpu.contract_precision<fp32>} : vector<16x8xf32>, vector<16x8xf32>, vector<8x8xf32> -> vector<8x8xf32>
    %cst_34 = arith.constant 2.500000e-01 : f32
    %81 = vector.broadcast %cst_34 : f32 to vector<8x8xf32>
    %82 = arith.mulf %80, %81 : vector<8x8xf32>
    %cst_35 = arith.constant dense<0xFF800000> : vector<8xf32>
    %83 = vector.multi_reduction <maximumf>, %82, %cst_35 [1] : vector<8x8xf32> to vector<8xf32>
    %84 = vector.shape_cast %83 : vector<8xf32> to vector<8x1xf32>
    %85 = vector.broadcast %84 : vector<8x1xf32> to vector<8x8xf32>
    %86 = arith.subf %82, %85 : vector<8x8xf32>
    %87 = math.exp %86 : vector<8x8xf32>
    %cst_36 = arith.constant dense<0.000000e+00> : vector<8xf32>
    %88 = vector.multi_reduction <add>, %87, %cst_36 [1] : vector<8x8xf32> to vector<8xf32>
    %89 = vector.shape_cast %88 : vector<8xf32> to vector<8x1xf32>
    %90 = tpu.reciprocal %89 {approx = true} : vector<8x1xf32> -> vector<8x1xf32>
    %91 = vector.broadcast %90 : vector<8x1xf32> to vector<8x8xf32>
    %92 = arith.mulf %87, %91 : vector<8x8xf32>
    %cst_37 = arith.constant dense<0.000000e+00> : vector<16x8xf32>
    %93 = tpu.matmul %79, %92, %cst_37 {dimension_numbers = #tpu.dot_dimension_numbers<[1], [1], [0], [0], [0, 0, 1, 0], [], []>, precision = #tpu.contract_precision<fp32>} : vector<16x8xf32>, vector<8x8xf32>, vector<16x8xf32> -> vector<16x8xf32>
    %94 = tpu.concatenate %42, %59, %76, %93 in 0 : vector<16x8xf32>, vector<16x8xf32>, vector<16x8xf32>, vector<16x8xf32> -> vector<64x8xf32>
    %cst_38 = arith.constant dense<0.000000e+00> : vector<64x8xf32>
    %95 = tpu.matmul %9, %94, %cst_38 {dimension_numbers = #tpu.dot_dimension_numbers<[1], [0], [0], [1], [0, 0, 1, 1], [], []>, precision = #tpu.contract_precision<fp32>} : vector<64x64xf32>, vector<64x8xf32>, vector<64x8xf32> -> vector<64x8xf32>
    %96 = vector.broadcast %10 : vector<64x1xf32> to vector<64x8xf32>
    %97 = arith.addf %95, %96 : vector<64x8xf32>
    %98 = vector.shape_cast %97 : vector<64x8xf32> to vector<1x64x8x1xf32>
    %99 = vector.broadcast %98 : vector<1x64x8x1xf32> to vector<1x64x8x256xf32>
    %100 = arith.addf %0, %99 : vector<1x64x8x256xf32>
    %c0_39 = arith.constant 0 : index
    %c0_40 = arith.constant 0 : index
    %c0_41 = arith.constant 0 : index
    %c0_42 = arith.constant 0 : index
    %101 = vector.load %arg7[%c0_39, %c0_40, %c0_41, %c0_42] : memref<1x64x8x256xf32, #tpu.memory_space<vmem>>, vector<1x64x8x256xf32>
    tpu.vector_store %arg7[%c0_39, %c0_40, %c0_41, %c0_42], %100 {strides = array<i32>} : memref<1x64x8x256xf32, #tpu.memory_space<vmem>>, vector<1x64x8x256xf32>,
    return
  }
  func.func @transform_0(%arg0: i32) -> (i32, i32, i32) {
    %c0_i32 = arith.constant 0 : i32
    %c0_i32_0 = arith.constant 0 : i32
    %c0_i32_1 = arith.constant 0 : i32
    return %arg0, %c0_i32, %c0_i32_0 : i32, i32, i32
  }
  func.func @transform_1(%arg0: i32) -> (i32, i32) {
    %c0_i32 = arith.constant 0 : i32
    %c0_i32_0 = arith.constant 0 : i32
    %c0_i32_1 = arith.constant 0 : i32
    return %c0_i32, %c0_i32_0 : i32, i32
  }
  func.func @transform_2(%arg0: i32) -> (i32, i32) {
    %c0_i32 = arith.constant 0 : i32
    %c0_i32_0 = arith.constant 0 : i32
    %c0_i32_1 = arith.constant 0 : i32
    return %c0_i32, %c0_i32_0 : i32, i32
  }
  func.func @transform_3(%arg0: i32) -> (i32, i32) {
    %c0_i32 = arith.constant 0 : i32
    %c0_i32_0 = arith.constant 0 : i32
    %c0_i32_1 = arith.constant 0 : i32
    return %c0_i32, %c0_i32_0 : i32, i32
  }
  func.func @transform_4(%arg0: i32) -> (i32, i32) {
    %c0_i32 = arith.constant 0 : i32
    %c0_i32_0 = arith.constant 0 : i32
    %c0_i32_1 = arith.constant 0 : i32
    return %c0_i32, %c0_i32_0 : i32, i32
  }
  func.func @transform_5(%arg0: i32) -> (i32, i32, i32, i32) {
    %c0_i32 = arith.constant 0 : i32
    %c0_i32_0 = arith.constant 0 : i32
    %c0_i32_1 = arith.constant 0 : i32
    %c0_i32_2 = arith.constant 0 : i32
    return %arg0, %c0_i32, %c0_i32_0, %c0_i32_1 : i32, i32, i32, i32
  }
  func.func @transform_6(%arg0: i32) -> (i32, i32, i32, i32) {
    %c0_i32 = arith.constant 0 : i32
    %c0_i32_0 = arith.constant 0 : i32
    %c0_i32_1 = arith.constant 0 : i32
    %c0_i32_2 = arith.constant 0 : i32
    return %arg0, %c0_i32, %c0_i32_0, %c0_i32_1 : i32, i32, i32, i32
  }
}

</mosaic_0001>

<llo_original>
// kernel: tpu_custom_call.1
$region0: #{tpu_custom_call.1}
  #allocation0 [shape = 'u32[]', space=smem, size = 0x4, offset = 0x4, fixed_abs, tag = 'smem constant byte address 0x4 - core index']
  #allocation1 [shape = 'u32[72,128]{1,0:T(1,128)}', space=vmem, size = 0x9000, scoped, tag = 'internal scratch']
  %s0 = inlined_call_operand.vmem [shape: f32[2,64,8], index: 0, kind: input, shape index: {}]
  %s1 = inlined_call_operand.vmem [shape: f32[192,64], index: 1, kind: input, shape index: {}]
  %s2 = inlined_call_operand.vmem [shape: f32[192,1], index: 2, kind: input, shape index: {}]
  %s3 = inlined_call_operand.vmem [shape: f32[64,64], index: 3, kind: input, shape index: {}]
  %s4 = inlined_call_operand.vmem [shape: f32[64,1], index: 4, kind: input, shape index: {}]
  %s5 = inlined_call_operand.hbm [shape: f32[2,64,8,256], index: 5, kind: input, shape index: {}]
  %s6 = inlined_call_operand.hbm [shape: f32[2,64,8,256], index: 6, kind: output, shape index: {}]
  %s7 = sld [smem:[#allocation0]]
  $region61: #{tpu_custom_call.1} parent=0
    _
  %s9 = ssub.s32 1, %s7
  %s10 = scalar_select 0, %s9, %s7
  $region1: #{tpu_custom_call.1} parent=0
    #allocation2 [shape = 'u8[1048576]{0}', space=vmem, size = 0x100000, scoped, tag = 'input window, operand 5']
    #allocation3 [shape = 's32[2]{0}', space=sflag, size = 0x8, scoped, tag = 'scoped memory for tpu_custom_call.1']
    #allocation4 [shape = 's32[2]{0}', space=sflag, size = 0x8, scoped, tag = 'scoped memory for tpu_custom_call.1']
    #allocation5 [shape = 'u8[1048576]{0}', space=vmem, size = 0x100000, scoped, tag = 'output window, operand 0']
    %11 = vsyncpa [#allocation3], 0
    %s12 = scalar_lea.sflag [#allocation3], 1
    %13 = vsyncpa %s12, 0
    %14 = vsyncpa [#allocation4], 0
    %s15 = scalar_lea.sflag [#allocation4], 1
    %16 = vsyncpa %s15, 0
    loop: start=0, step=1, limit=4
    $region2: #{tpu_custom_call.1} parent=1 // loop_pre_header
      _
    $region3: #{tpu_custom_call.1} parent=1 // loop_header
      %s18 = sphi 0, %s22
      %p19 = scmp.ge.s32.totalorder %s18, 4
      %s28 = sphi 0, %s30
      %s31 = sphi 0, %s28
      %s32 = sphi 0, %s31
      %s48 = sphi 0, %s32
      %s52 = sphi 0, %s52
      %s54 = sphi 0, %s52
      %s55 = sphi 0, %s54
      %s69 = sphi 0, %s55
      %s73 = sphi 0, %s73
      %s75 = sphi 0, %s73
      %s76 = sphi 0, %s75
      %s90 = sphi 0, %s76
      %s94 = sphi 0, %s94
      %s96 = sphi 0, %s94
      %s97 = sphi 0, %s96
      %s111 = sphi 0, %s97
      %s115 = sphi 0, %s115
      %s117 = sphi 0, %s115
      %s118 = sphi 0, %s117
      %s132 = sphi 0, %s118
      %s138 = sphi 0, %s140
      %s141 = sphi 0, %s138
      %s142 = sphi 0, %s141
      %s158 = sphi 0, %s142
      %s164 = sphi 0, %s166
      %s167 = sphi 0, %s164
      %s168 = sphi 0, %s167
      %s184 = sphi 0, %s168
    $region4: #{tpu_custom_call.1} parent=1 // loop_header_branch
      %21 = sbr.rel (%p19) target = $region8
    $region5: #{tpu_custom_call.1} parent=1 // loop_body
      %s23 = ssub.s32 %s18, 1
      %s24 = ssub.s32 %s18, 2
      %s25 = sadd.s32 %s18, 1
      %s26 = ssub.s32 %s18, %s25
      %p27 = scmp.eq.s32.totalorder %s26, 0
      %s29 = sadd.s32 %s28, 1
      %s30 = scalar_select %p27, %s28, %s29
      %p33 = pneg %p27
      %p34 = scmp.eq.s32.totalorder %s18, 1
      %p35 = por %p33, %p34
      %p36 = scmp.ne.s32.totalorder %s28, %s31
      %p37 = scmp.eq.s32.totalorder %s18, 0
      %p38 = por %p36, %p37
      %p39 = scmp.ne.s32.totalorder %s28, %s31
      %p40 = scmp.eq.s32.totalorder %s23, 1
      %p41 = por %p39, %p40
      %p42 = scmp.ne.s32.totalorder %s31, %s32
      %p43 = scmp.eq.s32.totalorder %s23, 0
      %p44 = por %p42, %p43
      %p45 = scmp.ne.s32.totalorder %s31, %s32
      %p46 = scmp.eq.s32.totalorder %s24, 1
      %p47 = por %p45, %p46
      %p49 = scmp.ne.s32.totalorder %s32, %s48
      %p50 = scmp.eq.s32.totalorder %s24, 0
      %p51 = por %p49, %p50
      %s53 = sadd.s32 %s52, 1
      %p56 = scmp.eq.s32.totalorder %s18, 1
      %p57 = scmp.ne.s32.totalorder %s52, %s54
      %p58 = scmp.eq.s32.totalorder %s18, 0
      %p59 = por %p57, %p58
      %p60 = scmp.ne.s32.totalorder %s52, %s54
      %p61 = scmp.eq.s32.totalorder %s23, 1
      %p62 = por %p60, %p61
      %p63 = scmp.ne.s32.totalorder %s54, %s55
      %p64 = scmp.eq.s32.totalorder %s23, 0
      %p65 = por %p63, %p64
      %p66 = scmp.ne.s32.totalorder %s54, %s55
      %p67 = scmp.eq.s32.totalorder %s24, 1
      %p68 = por %p66, %p67
      %p70 = scmp.ne.s32.totalorder %s55, %s69
      %p71 = scmp.eq.s32.totalorder %s24, 0
      %p72 = por %p70, %p71
      %s74 = sadd.s32 %s73, 1
      %p77 = scmp.eq.s32.totalorder %s18, 1
      %p78 = scmp.ne.s32.totalorder %s73, %s75
      %p79 = scmp.eq.s32.totalorder %s18, 0
      %p80 = por %p78, %p79
      %p81 = scmp.ne.s32.totalorder %s73, %s75
      %p82 = scmp.eq.s32.totalorder %s23, 1
      %p83 = por %p81, %p82
      %p84 = scmp.ne.s32.totalorder %s75, %s76
      %p85 = scmp.eq.s32.totalorder %s23, 0
      %p86 = por %p84, %p85
      %p87 = scmp.ne.s32.totalorder %s75, %s76
      %p88 = scmp.eq.s32.totalorder %s24, 1
      %p89 = por %p87, %p88
      %p91 = scmp.ne.s32.totalorder %s76, %s90
      %p92 = scmp.eq.s32.totalorder %s24, 0
      %p93 = por %p91, %p92
      %s95 = sadd.s32 %s94, 1
      %p98 = scmp.eq.s32.totalorder %s18, 1
      %p99 = scmp.ne.s32.totalorder %s94, %s96
      %p100 = scmp.eq.s32.totalorder %s18, 0
      %p101 = por %p99, %p100
      %p102 = scmp.ne.s32.totalorder %s94, %s96
      %p103 = scmp.eq.s32.totalorder %s23, 1
      %p104 = por %p102, %p103
      %p105 = scmp.ne.s32.totalorder %s96, %s97
      %p106 = scmp.eq.s32.totalorder %s23, 0
      %p107 = por %p105, %p106
      %p108 = scmp.ne.s32.totalorder %s96, %s97
      %p109 = scmp.eq.s32.totalorder %s24, 1
      %p110 = por %p108, %p109
      %p112 = scmp.ne.s32.totalorder %s97, %s111
      %p113 = scmp.eq.s32.totalorder %s24, 0
      %p114 = por %p112, %p113
      %s116 = sadd.s32 %s115, 1
      %p119 = scmp.eq.s32.totalorder %s18, 1
      %p120 = scmp.ne.s32.totalorder %s115, %s117
      %p121 = scmp.eq.s32.totalorder %s18, 0
      %p122 = por %p120, %p121
      %p123 = scmp.ne.s32.totalorder %s115, %s117
      %p124 = scmp.eq.s32.totalorder %s23, 1
      %p125 = por %p123, %p124
      %p126 = scmp.ne.s32.totalorder %s117, %s118
      %p127 = scmp.eq.s32.totalorder %s23, 0
      %p128 = por %p126, %p127
      %p129 = scmp.ne.s32.totalorder %s117, %s118
      %p130 = scmp.eq.s32.totalorder %s24, 1
      %p131 = por %p129, %p130
      %p133 = scmp.ne.s32.totalorder %s118, %s132
      %p134 = scmp.eq.s32.totalorder %s24, 0
      %p135 = por %p133, %p134
      %s136 = ssub.s32 %s18, %s25
      %p137 = scmp.eq.s32.totalorder %s136, 0
      %s139 = sadd.s32 %s138, 1
      %s140 = scalar_select %p137, %s138, %s139
      %p143 = pneg %p137
      %p144 = scmp.eq.s32.totalorder %s18, 1
      %p145 = por %p143, %p144
      %p146 = scmp.ne.s32.totalorder %s138, %s141
      %p147 = scmp.eq.s32.totalorder %s18, 0
      %p148 = por %p146, %p147
      %p149 = scmp.ne.s32.totalorder %s138, %s141
      %p150 = scmp.eq.s32.totalorder %s23, 1
      %p151 = por %p149, %p150
      %p152 = scmp.ne.s32.totalorder %s141, %s142
      %p153 = scmp.eq.s32.totalorder %s23, 0
      %p154 = por %p152, %p153
      %p155 = scmp.ne.s32.totalorder %s141, %s142
      %p156 = scmp.eq.s32.totalorder %s24, 1
      %p157 = por %p155, %p156
      %p159 = scmp.ne.s32.totalorder %s142, %s158
      %p160 = scmp.eq.s32.totalorder %s24, 0
      %p161 = por %p159, %p160
      %s162 = ssub.s32 %s18, %s25
      %p163 = scmp.eq.s32.totalorder %s162, 0
      %s165 = sadd.s32 %s164, 1
      %s166 = scalar_select %p163, %s164, %s165
      %p169 = pneg %p163
      %p170 = scmp.eq.s32.totalorder %s18, 1
      %p171 = por %p169, %p170
      %p172 = scmp.ne.s32.totalorder %s164, %s167
      %p173 = scmp.eq.s32.totalorder %s18, 0
      %p174 = por %p172, %p173
      %p175 = scmp.ne.s32.totalorder %s164, %s167
      %p176 = scmp.eq.s32.totalorder %s23, 1
      %p177 = por %p175, %p176
      %p178 = scmp.ne.s32.totalorder %s167, %s168
      %p179 = scmp.eq.s32.totalorder %s23, 0
      %p180 = por %p178, %p179
      %p181 = scmp.ne.s32.totalorder %s167, %s168
      %p182 = scmp.eq.s32.totalorder %s24, 1
      %p183 = por %p181, %p182
      %p185 = scmp.ne.s32.totalorder %s168, %s184
      %p186 = scmp.eq.s32.totalorder %s24, 0
      %p187 = por %p185, %p186
      %p188 = scmp.le.s32.totalorder 1, %s18
      %p189 = scmp.lt.s32.totalorder %s18, 3
      %p190 = pnand %p188, %p189
      %p191 = pneg %p190
      // Predicated region
      $region9: #{tpu_custom_call.1} parent=5 // pred_check
        _
      $region10: #{tpu_custom_call.1} parent=5 // pred_check_branch
        %193 = sbr.rel (%p190) target = $region12
      $region11: #{tpu_custom_call.1} parent=5 // pred_region
        %s194 = ssub.s32 %s18, 1
        // Predicated region
        $region13: #{tpu_custom_call.1} parent=11 // pred_check
          %p195 = pneg %p65
        $region14: #{tpu_custom_call.1} parent=11 // pred_check_branch
          %197 = sbr.rel (%p195) target = $region16
        $region15: #{tpu_custom_call.1} parent=11 // pred_region
          _
        $region16: #{tpu_custom_call.1} parent=11 // pred_fallthru
          _
        // Predicated region
        $region17: #{tpu_custom_call.1} parent=11 // pred_check
          %p198 = pneg %p86
        $region18: #{tpu_custom_call.1} parent=11 // pred_check_branch
          %200 = sbr.rel (%p198) target = $region20
        $region19: #{tpu_custom_call.1} parent=11 // pred_region
          _
        $region20: #{tpu_custom_call.1} parent=11 // pred_fallthru
          _
        // Predicated region
        $region21: #{tpu_custom_call.1} parent=11 // pred_check
          %p201 = pneg %p107
        $region22: #{tpu_custom_call.1} parent=11 // pred_check_branch
          %203 = sbr.rel (%p201) target = $region24
        $region23: #{tpu_custom_call.1} parent=11 // pred_region
          _
        $region24: #{tpu_custom_call.1} parent=11 // pred_fallthru
          _
        // Predicated region
        $region25: #{tpu_custom_call.1} parent=11 // pred_check
          %p204 = pneg %p128
        $region26: #{tpu_custom_call.1} parent=11 // pred_check_branch
          %206 = sbr.rel (%p204) target = $region28
        $region27: #{tpu_custom_call.1} parent=11 // pred_region
          _
        $region28: #{tpu_custom_call.1} parent=11 // pred_fallthru
          _
      $region12: #{tpu_custom_call.1} parent=5 // pred_fallthru
        _
      %p207 = scmp.lt.s32.totalorder %s18, 2
      // Predicated region
      $region29: #{tpu_custom_call.1} parent=5 // pred_check
        %p208 = pneg %p207
      $region30: #{tpu_custom_call.1} parent=5 // pred_check_branch
        %210 = sbr.rel (%p208) target = $region32
      $region31: #{tpu_custom_call.1} parent=5 // pred_region
        // Predicated region
        $region33: #{tpu_custom_call.1} parent=31 // pred_check
          %p211 = pneg %p38
        $region34: #{tpu_custom_call.1} parent=31 // pred_check_branch
          %213 = sbr.rel (%p211) target = $region36
        $region35: #{tpu_custom_call.1} parent=31 // pred_region
          %p214 = scmp.lt.s32.totalorder %s18, 1
          %s215 = scalar_select %p214, %s18, 1
          %s216 = smul.addr %s215, 8
          %s217 = smul.addr %s216, 8
          %s218 = scalar_lea.vmem %s0, %s217
        $region36: #{tpu_custom_call.1} parent=31 // pred_fallthru
          _
        // Predicated region
        $region37: #{tpu_custom_call.1} parent=31 // pred_check
          %p219 = pneg %p148
        $region38: #{tpu_custom_call.1} parent=31 // pred_check_branch
          %221 = sbr.rel (%p219) target = $region40
        $region39: #{tpu_custom_call.1} parent=31 // pred_region
          %s222 = sand.u32 %s138, 1
          %s223 = scalar_lea.sflag [#allocation3], %s222
          %s224 = sand.u32 %s138, 1
          %s225 = smul.addr %s224, 1024
          %s226 = scalar_lea.vmem [#allocation2], %s225
          %228 = vsyncadd %s223, 0
          %s229 = smul.addr %s18, 128
          %s230 = smul.addr %s229, 8
          %s231 = scalar_lea.hbm %s5, %s230
          %s232 = sshll.u32 %s231, 4
          %s233 = int_to_ptr.hbm [resolvable:$true] %s232
          %s234 = sshll.u32 %s226, 4
          %s235 = int_to_ptr.vmem [resolvable:$true] %s234
          %240 = dma.hbm_to_vmem [thread:$0]  %s233, 16384, %s235, %s223, 256, 256, 16
        $region40: #{tpu_custom_call.1} parent=31 // pred_fallthru
          _
      $region32: #{tpu_custom_call.1} parent=5 // pred_fallthru
        _
      %p241 = scmp.le.s32.totalorder 1, %s18
      %p242 = scmp.lt.s32.totalorder %s18, 3
      %p243 = pnand %p241, %p242
      %p244 = pneg %p243
      // Predicated region
      $region41: #{tpu_custom_call.1} parent=5 // pred_check
        _
      $region42: #{tpu_custom_call.1} parent=5 // pred_check_branch
        %246 = sbr.rel (%p243) target = $region44
      $region43: #{tpu_custom_call.1} parent=5 // pred_region
        %s247 = ssub.s32 %s18, 1
        %s248 = sand.u32 %s141, 1
        %s249 = scalar_lea.sflag [#allocation3], %s248
        %s250 = sand.u32 %s141, 1
        %s251 = smul.addr %s250, 1024
        %s252 = scalar_lea.vmem [#allocation2], %s251
        // Predicated region
        $region45: #{tpu_custom_call.1} parent=43 // pred_check
          %p253 = pneg %p154
        $region46: #{tpu_custom_call.1} parent=43 // pred_check_branch
          %255 = sbr.rel (%p253) target = $region48
        $region47: #{tpu_custom_call.1} parent=43 // pred_region
          %257 = dma.done %s249, 16384
        $region48: #{tpu_custom_call.1} parent=43 // pred_fallthru
          _
        %p258 = scmp.lt.s32.totalorder %s23, 1
        %s259 = scalar_select %p258, %s23, 1
        %s260 = smul.addr %s259, 8
        %s261 = smul.addr %s260, 8
        %s262 = scalar_lea.vmem %s0, %s261
        %p263 = pneg %p44
        %p264 = pneg %p41
        %p265 = pneg %p65
        %p266 = pneg %p62
        %p267 = pneg %p86
        %p268 = pneg %p83
        %p269 = pneg %p107
        %p270 = pneg %p104
        %p271 = pneg %p128
        %p272 = pneg %p125
        %s273 = sand.u32 %s141, 1
        %s274 = scalar_lea.sflag [#allocation3], %s273
        %s275 = sand.u32 %s141, 1
        %s276 = smul.addr %s275, 1024
        %s277 = scalar_lea.vmem [#allocation2], %s276
        %p278 = pneg %p154
        %p279 = pneg %p151
        %p280 = pneg %p180
        %p281 = pneg %p177
        %s282 = sand.u32 %s167, 1
        %s283 = scalar_lea.sflag [#allocation4], %s282
        %s284 = sand.u32 %s167, 1
        %s285 = smul.addr %s284, 1024
        %s286 = scalar_lea.vmem [#allocation5], %s285
        %p287 = scmp.lt.s32.totalorder %s23, 1
        %s288 = scalar_select %p287, %s23, 1
        %s289 = smul.addr %s288, 8
        %s290 = smul.addr %s289, 8
        %s291 = scalar_lea.vmem %s0, %s290
        %v292 = vld [vmem:[%s252] sm:$0xff]
        %v293 = vld [vmem:[%s252 + $0x8] sm:$0xff]
        %v294 = vld [vmem:[%s252 + $0x10] sm:$0xff]
        %v295 = vld [vmem:[%s252 + $0x18] sm:$0xff]
        %v296 = vld [vmem:[%s252 + $0x20] sm:$0xff]
        %v297 = vld [vmem:[%s252 + $0x28] sm:$0xff]
        %v298 = vld [vmem:[%s252 + $0x30] sm:$0xff]
        %v299 = vld [vmem:[%s252 + $0x38] sm:$0xff]
        %v300 = vld [vmem:[%s252 + $0x40] sm:$0xff]
        %v301 = vld [vmem:[%s252 + $0x48] sm:$0xff]
        %v302 = vld [vmem:[%s252 + $0x50] sm:$0xff]
        %v303 = vld [vmem:[%s252 + $0x58] sm:$0xff]
        %v304 = vld [vmem:[%s252 + $0x60] sm:$0xff]
        %v305 = vld [vmem:[%s252 + $0x68] sm:$0xff]
        %v306 = vld [vmem:[%s252 + $0x70] sm:$0xff]
        %v307 = vld [vmem:[%s252 + $0x78] sm:$0xff]
        %v308 = vld [vmem:[%s252 + $0x80] sm:$0xff]
        %v309 = vld [vmem:[%s252 + $0x88] sm:$0xff]
        %v310 = vld [vmem:[%s252 + $0x90] sm:$0xff]
        %v311 = vld [vmem:[%s252 + $0x98] sm:$0xff]
        %v312 = vld [vmem:[%s252 + $0xa0] sm:$0xff]
        %v313 = vld [vmem:[%s252 + $0xa8] sm:$0xff]
        %v314 = vld [vmem:[%s252 + $0xb0] sm:$0xff]
        %v315 = vld [vmem:[%s252 + $0xb8] sm:$0xff]
        %v316 = vld [vmem:[%s252 + $0xc0] sm:$0xff]
        %v317 = vld [vmem:[%s252 + $0xc8] sm:$0xff]
        %v318 = vld [vmem:[%s252 + $0xd0] sm:$0xff]
        %v319 = vld [vmem:[%s252 + $0xd8] sm:$0xff]
        %v320 = vld [vmem:[%s252 + $0xe0] sm:$0xff]
        %v321 = vld [vmem:[%s252 + $0xe8] sm:$0xff]
        %v322 = vld [vmem:[%s252 + $0xf0] sm:$0xff]
        %v323 = vld [vmem:[%s252 + $0xf8] sm:$0xff]
        %v324 = vld [vmem:[%s252 + $0x100] sm:$0xff]
        %v325 = vld [vmem:[%s252 + $0x108] sm:$0xff]
        %v326 = vld [vmem:[%s252 + $0x110] sm:$0xff]
        %v327 = vld [vmem:[%s252 + $0x118] sm:$0xff]
        %v328 = vld [vmem:[%s252 + $0x120] sm:$0xff]
        %v329 = vld [vmem:[%s252 + $0x128] sm:$0xff]
        %v330 = vld [vmem:[%s252 + $0x130] sm:$0xff]
        %v331 = vld [vmem:[%s252 + $0x138] sm:$0xff]
        %v332 = vld [vmem:[%s252 + $0x140] sm:$0xff]
        %v333 = vld [vmem:[%s252 + $0x148] sm:$0xff]
        %v334 = vld [vmem:[%s252 + $0x150] sm:$0xff]
        %v335 = vld [vmem:[%s252 + $0x158] sm:$0xff]
        %v336 = vld [vmem:[%s252 + $0x160] sm:$0xff]
        %v337 = vld [vmem:[%s252 + $0x168] sm:$0xff]
        %v338 = vld [vmem:[%s252 + $0x170] sm:$0xff]
        %v339 = vld [vmem:[%s252 + $0x178] sm:$0xff]
        %v340 = vld [vmem:[%s252 + $0x180] sm:$0xff]
        %v341 = vld [vmem:[%s252 + $0x188] sm:$0xff]
        %v342 = vld [vmem:[%s252 + $0x190] sm:$0xff]
        %v343 = vld [vmem:[%s252 + $0x198] sm:$0xff]
        %v344 = vld [vmem:[%s252 + $0x1a0] sm:$0xff]
        %v345 = vld [vmem:[%s252 + $0x1a8] sm:$0xff]
        %v346 = vld [vmem:[%s252 + $0x1b0] sm:$0xff]
        %v347 = vld [vmem:[%s252 + $0x1b8] sm:$0xff]
        %v348 = vld [vmem:[%s252 + $0x1c0] sm:$0xff]
        %v349 = vld [vmem:[%s252 + $0x1c8] sm:$0xff]
        %v350 = vld [vmem:[%s252 + $0x1d0] sm:$0xff]
        %v351 = vld [vmem:[%s252 + $0x1d8] sm:$0xff]
        %v352 = vld [vmem:[%s252 + $0x1e0] sm:$0xff]
        %v353 = vld [vmem:[%s252 + $0x1e8] sm:$0xff]
        %v354 = vld [vmem:[%s252 + $0x1f0] sm:$0xff]
        %v355 = vld [vmem:[%s252 + $0x1f8] sm:$0xff]
        %v356 = vld [vmem:[%s252 + $0x200] sm:$0xff]
        %v357 = vld [vmem:[%s252 + $0x208] sm:$0xff]
        %v358 = vld [vmem:[%s252 + $0x210] sm:$0xff]
        %v359 = vld [vmem:[%s252 + $0x218] sm:$0xff]
        %v360 = vld [vmem:[%s252 + $0x220] sm:$0xff]
        %v361 = vld [vmem:[%s252 + $0x228] sm:$0xff]
        %v362 = vld [vmem:[%s252 + $0x230] sm:$0xff]
        %v363 = vld [vmem:[%s252 + $0x238] sm:$0xff]
        %v364 = vld [vmem:[%s252 + $0x240] sm:$0xff]
        %v365 = vld [vmem:[%s252 + $0x248] sm:$0xff]
        %v366 = vld [vmem:[%s252 + $0x250] sm:$0xff]
        %v367 = vld [vmem:[%s252 + $0x258] sm:$0xff]
        %v368 = vld [vmem:[%s252 + $0x260] sm:$0xff]
        %v369 = vld [vmem:[%s252 + $0x268] sm:$0xff]
        %v370 = vld [vmem:[%s252 + $0x270] sm:$0xff]
        %v371 = vld [vmem:[%s252 + $0x278] sm:$0xff]
        %v372 = vld [vmem:[%s252 + $0x280] sm:$0xff]
        %v373 = vld [vmem:[%s252 + $0x288] sm:$0xff]
        %v374 = vld [vmem:[%s252 + $0x290] sm:$0xff]
        %v375 = vld [vmem:[%s252 + $0x298] sm:$0xff]
        %v376 = vld [vmem:[%s252 + $0x2a0] sm:$0xff]
        %v377 = vld [vmem:[%s252 + $0x2a8] sm:$0xff]
        %v378 = vld [vmem:[%s252 + $0x2b0] sm:$0xff]
        %v379 = vld [vmem:[%s252 + $0x2b8] sm:$0xff]
        %v380 = vld [vmem:[%s252 + $0x2c0] sm:$0xff]
        %v381 = vld [vmem:[%s252 + $0x2c8] sm:$0xff]
        %v382 = vld [vmem:[%s252 + $0x2d0] sm:$0xff]
        %v383 = vld [vmem:[%s252 + $0x2d8] sm:$0xff]
        %v384 = vld [vmem:[%s252 + $0x2e0] sm:$0xff]
        %v385 = vld [vmem:[%s252 + $0x2e8] sm:$0xff]
        %v386 = vld [vmem:[%s252 + $0x2f0] sm:$0xff]
        %v387 = vld [vmem:[%s252 + $0x2f8] sm:$0xff]
        %v388 = vld [vmem:[%s252 + $0x300] sm:$0xff]
        %v389 = vld [vmem:[%s252 + $0x308] sm:$0xff]
        %v390 = vld [vmem:[%s252 + $0x310] sm:$0xff]
        %v391 = vld [vmem:[%s252 + $0x318] sm:$0xff]
        %v392 = vld [vmem:[%s252 + $0x320] sm:$0xff]
        %v393 = vld [vmem:[%s252 + $0x328] sm:$0xff]
        %v394 = vld [vmem:[%s252 + $0x330] sm:$0xff]
        %v395 = vld [vmem:[%s252 + $0x338] sm:$0xff]
        %v396 = vld [vmem:[%s252 + $0x340] sm:$0xff]
        %v397 = vld [vmem:[%s252 + $0x348] sm:$0xff]
        %v398 = vld [vmem:[%s252 + $0x350] sm:$0xff]
        %v399 = vld [vmem:[%s252 + $0x358] sm:$0xff]
        %v400 = vld [vmem:[%s252 + $0x360] sm:$0xff]
        %v401 = vld [vmem:[%s252 + $0x368] sm:$0xff]
        %v402 = vld [vmem:[%s252 + $0x370] sm:$0xff]
        %v403 = vld [vmem:[%s252 + $0x378] sm:$0xff]
        %v404 = vld [vmem:[%s252 + $0x380] sm:$0xff]
        %v405 = vld [vmem:[%s252 + $0x388] sm:$0xff]
        %v406 = vld [vmem:[%s252 + $0x390] sm:$0xff]
        %v407 = vld [vmem:[%s252 + $0x398] sm:$0xff]
        %v408 = vld [vmem:[%s252 + $0x3a0] sm:$0xff]
        %v409 = vld [vmem:[%s252 + $0x3a8] sm:$0xff]
        %v410 = vld [vmem:[%s252 + $0x3b0] sm:$0xff]
        %v411 = vld [vmem:[%s252 + $0x3b8] sm:$0xff]
        %v412 = vld [vmem:[%s252 + $0x3c0] sm:$0xff]
        %v413 = vld [vmem:[%s252 + $0x3c8] sm:$0xff]
        %v414 = vld [vmem:[%s252 + $0x3d0] sm:$0xff]
        %v415 = vld [vmem:[%s252 + $0x3d8] sm:$0xff]
        %v416 = vld [vmem:[%s252 + $0x3e0] sm:$0xff]
        %v417 = vld [vmem:[%s252 + $0x3e8] sm:$0xff]
        %v418 = vld [vmem:[%s252 + $0x3f0] sm:$0xff]
        %v419 = vld [vmem:[%s252 + $0x3f8] sm:$0xff]
        %v420 = vadd.f32 %v292, %v293
        %421 = vadd.xlane.f32.xlu0 %v420
        %v422 = vpop.xlane.xlu0 %421
        %v423 = vadd.f32 %v294, %v295
        %424 = vadd.xlane.f32.xlu0 %v423
        %v425 = vpop.xlane.xlu0 %424
        %v426 = vadd.f32 %v296, %v297
        %427 = vadd.xlane.f32.xlu0 %v426
        %v428 = vpop.xlane.xlu0 %427
        %v429 = vadd.f32 %v298, %v299
        %430 = vadd.xlane.f32.xlu0 %v429
        %v431 = vpop.xlane.xlu0 %430
        %v432 = vadd.f32 %v300, %v301
        %433 = vadd.xlane.f32.xlu0 %v432
        %v434 = vpop.xlane.xlu0 %433
        %v435 = vadd.f32 %v302, %v303
        %436 = vadd.xlane.f32.xlu0 %v435
        %v437 = vpop.xlane.xlu0 %436
        %v438 = vadd.f32 %v304, %v305
        %439 = vadd.xlane.f32.xlu0 %v438
        %v440 = vpop.xlane.xlu0 %439
        %v441 = vadd.f32 %v306, %v307
        %442 = vadd.xlane.f32.xlu0 %v441
        %v443 = vpop.xlane.xlu0 %442
        %v444 = vadd.f32 %v308, %v309
        %445 = vadd.xlane.f32.xlu0 %v444
        %v446 = vpop.xlane.xlu0 %445
        %v447 = vadd.f32 %v310, %v311
        %448 = vadd.xlane.f32.xlu0 %v447
        %v449 = vpop.xlane.xlu0 %448
        %v450 = vadd.f32 %v312, %v313
        %451 = vadd.xlane.f32.xlu0 %v450
        %v452 = vpop.xlane.xlu0 %451
        %v453 = vadd.f32 %v314, %v315
        %454 = vadd.xlane.f32.xlu0 %v453
        %v455 = vpop.xlane.xlu0 %454
        %v456 = vadd.f32 %v316, %v317
        %457 = vadd.xlane.f32.xlu0 %v456
        %v458 = vpop.xlane.xlu0 %457
        %v459 = vadd.f32 %v318, %v319
        %460 = vadd.xlane.f32.xlu0 %v459
        %v461 = vpop.xlane.xlu0 %460
        %v462 = vadd.f32 %v320, %v321
        %463 = vadd.xlane.f32.xlu0 %v462
        %v464 = vpop.xlane.xlu0 %463
        %v465 = vadd.f32 %v322, %v323
        %466 = vadd.xlane.f32.xlu0 %v465
        %v467 = vpop.xlane.xlu0 %466
        %v468 = vadd.f32 %v324, %v325
        %469 = vadd.xlane.f32.xlu0 %v468
        %v470 = vpop.xlane.xlu0 %469
        %v471 = vadd.f32 %v326, %v327
        %472 = vadd.xlane.f32.xlu0 %v471
        %v473 = vpop.xlane.xlu0 %472
        %v474 = vadd.f32 %v328, %v329
        %475 = vadd.xlane.f32.xlu0 %v474
        %v476 = vpop.xlane.xlu0 %475
        %v477 = vadd.f32 %v330, %v331
        %478 = vadd.xlane.f32.xlu0 %v477
        %v479 = vpop.xlane.xlu0 %478
        %v480 = vadd.f32 %v332, %v333
        %481 = vadd.xlane.f32.xlu0 %v480
        %v482 = vpop.xlane.xlu0 %481
        %v483 = vadd.f32 %v334, %v335
        %484 = vadd.xlane.f32.xlu0 %v483
        %v485 = vpop.xlane.xlu0 %484
        %v486 = vadd.f32 %v336, %v337
        %487 = vadd.xlane.f32.xlu0 %v486
        %v488 = vpop.xlane.xlu0 %487
        %v489 = vadd.f32 %v338, %v339
        %490 = vadd.xlane.f32.xlu0 %v489
        %v491 = vpop.xlane.xlu0 %490
        %v492 = vadd.f32 %v340, %v341
        %493 = vadd.xlane.f32.xlu0 %v492
        %v494 = vpop.xlane.xlu0 %493
        %v495 = vadd.f32 %v342, %v343
        %496 = vadd.xlane.f32.xlu0 %v495
        %v497 = vpop.xlane.xlu0 %496
        %v498 = vadd.f32 %v344, %v345
        %499 = vadd.xlane.f32.xlu0 %v498
        %v500 = vpop.xlane.xlu0 %499
        %v501 = vadd.f32 %v346, %v347
        %502 = vadd.xlane.f32.xlu0 %v501
        %v503 = vpop.xlane.xlu0 %502
        %v504 = vadd.f32 %v348, %v349
        %505 = vadd.xlane.f32.xlu0 %v504
        %v506 = vpop.xlane.xlu0 %505
        %v507 = vadd.f32 %v350, %v351
        %508 = vadd.xlane.f32.xlu0 %v507
        %v509 = vpop.xlane.xlu0 %508
        %v510 = vadd.f32 %v352, %v353
        %511 = vadd.xlane.f32.xlu0 %v510
        %v512 = vpop.xlane.xlu0 %511
        %v513 = vadd.f32 %v354, %v355
        %514 = vadd.xlane.f32.xlu0 %v513
        %v515 = vpop.xlane.xlu0 %514
        %v516 = vadd.f32 %v356, %v357
        %517 = vadd.xlane.f32.xlu0 %v516
        %v518 = vpop.xlane.xlu0 %517
        %v519 = vadd.f32 %v358, %v359
        %520 = vadd.xlane.f32.xlu0 %v519
        %v521 = vpop.xlane.xlu0 %520
        %v522 = vadd.f32 %v360, %v361
        %523 = vadd.xlane.f32.xlu0 %v522
        %v524 = vpop.xlane.xlu0 %523
        %v525 = vadd.f32 %v362, %v363
        %526 = vadd.xlane.f32.xlu0 %v525
        %v527 = vpop.xlane.xlu0 %526
        %v528 = vadd.f32 %v364, %v365
        %529 = vadd.xlane.f32.xlu0 %v528
        %v530 = vpop.xlane.xlu0 %529
        %v531 = vadd.f32 %v366, %v367
        %532 = vadd.xlane.f32.xlu0 %v531
        %v533 = vpop.xlane.xlu0 %532
        %v534 = vadd.f32 %v368, %v369
        %535 = vadd.xlane.f32.xlu0 %v534
        %v536 = vpop.xlane.xlu0 %535
        %v537 = vadd.f32 %v370, %v371
        %538 = vadd.xlane.f32.xlu0 %v537
        %v539 = vpop.xlane.xlu0 %538
        %v540 = vadd.f32 %v372, %v373
        %541 = vadd.xlane.f32.xlu0 %v540
        %v542 = vpop.xlane.xlu0 %541
        %v543 = vadd.f32 %v374, %v375
        %544 = vadd.xlane.f32.xlu0 %v543
        %v545 = vpop.xlane.xlu0 %544
        %v546 = vadd.f32 %v376, %v377
        %547 = vadd.xlane.f32.xlu0 %v546
        %v548 = vpop.xlane.xlu0 %547
        %v549 = vadd.f32 %v378, %v379
        %550 = vadd.xlane.f32.xlu0 %v549
        %v551 = vpop.xlane.xlu0 %550
        %v552 = vadd.f32 %v380, %v381
        %553 = vadd.xlane.f32.xlu0 %v552
        %v554 = vpop.xlane.xlu0 %553
        %v555 = vadd.f32 %v382, %v383
        %556 = vadd.xlane.f32.xlu0 %v555
        %v557 = vpop.xlane.xlu0 %556
        %v558 = vadd.f32 %v384, %v385
        %559 = vadd.xlane.f32.xlu0 %v558
        %v560 = vpop.xlane.xlu0 %559
        %v561 = vadd.f32 %v386, %v387
        %562 = vadd.xlane.f32.xlu0 %v561
        %v563 = vpop.xlane.xlu0 %562
        %v564 = vadd.f32 %v388, %v389
        %565 = vadd.xlane.f32.xlu0 %v564
        %v566 = vpop.xlane.xlu0 %565
        %v567 = vadd.f32 %v390, %v391
        %568 = vadd.xlane.f32.xlu0 %v567
        %v569 = vpop.xlane.xlu0 %568
        %v570 = vadd.f32 %v392, %v393
        %571 = vadd.xlane.f32.xlu0 %v570
        %v572 = vpop.xlane.xlu0 %571
        %v573 = vadd.f32 %v394, %v395
        %574 = vadd.xlane.f32.xlu0 %v573
        %v575 = vpop.xlane.xlu0 %574
        %v576 = vadd.f32 %v396, %v397
        %577 = vadd.xlane.f32.xlu0 %v576
        %v578 = vpop.xlane.xlu0 %577
        %v579 = vadd.f32 %v398, %v399
        %580 = vadd.xlane.f32.xlu0 %v579
        %v581 = vpop.xlane.xlu0 %580
        %v582 = vadd.f32 %v400, %v401
        %583 = vadd.xlane.f32.xlu0 %v582
        %v584 = vpop.xlane.xlu0 %583
        %v585 = vadd.f32 %v402, %v403
        %586 = vadd.xlane.f32.xlu0 %v585
        %v587 = vpop.xlane.xlu0 %586
        %v588 = vadd.f32 %v404, %v405
        %589 = vadd.xlane.f32.xlu0 %v588
        %v590 = vpop.xlane.xlu0 %589
        %v591 = vadd.f32 %v406, %v407
        %592 = vadd.xlane.f32.xlu0 %v591
        %v593 = vpop.xlane.xlu0 %592
        %v594 = vadd.f32 %v408, %v409
        %595 = vadd.xlane.f32.xlu0 %v594
        %v596 = vpop.xlane.xlu0 %595
        %v597 = vadd.f32 %v410, %v411
        %598 = vadd.xlane.f32.xlu0 %v597
        %v599 = vpop.xlane.xlu0 %598
        %v600 = vadd.f32 %v412, %v413
        %601 = vadd.xlane.f32.xlu0 %v600
        %v602 = vpop.xlane.xlu0 %601
        %v603 = vadd.f32 %v414, %v415
        %604 = vadd.xlane.f32.xlu0 %v603
        %v605 = vpop.xlane.xlu0 %604
        %v606 = vadd.f32 %v416, %v417
        %607 = vadd.xlane.f32.xlu0 %v606
        %v608 = vpop.xlane.xlu0 %607
        %v609 = vadd.f32 %v418, %v419
        %610 = vadd.xlane.f32.xlu0 %v609
        %v611 = vpop.xlane.xlu0 %610
        %v612 = vmul.f32 %v422, 0.00390625
        %v613 = vmul.f32 %v425, 0.00390625
        %v614 = vmul.f32 %v428, 0.00390625
        %v615 = vmul.f32 %v431, 0.00390625
        %v616 = vmul.f32 %v434, 0.00390625
        %v617 = vmul.f32 %v437, 0.00390625
        %v618 = vmul.f32 %v440, 0.00390625
        %v619 = vmul.f32 %v443, 0.00390625
        %v620 = vmul.f32 %v446, 0.00390625
        %v621 = vmul.f32 %v449, 0.00390625
        %v622 = vmul.f32 %v452, 0.00390625
        %v623 = vmul.f32 %v455, 0.00390625
        %v624 = vmul.f32 %v458, 0.00390625
        %v625 = vmul.f32 %v461, 0.00390625
        %v626 = vmul.f32 %v464, 0.00390625
        %v627 = vmul.f32 %v467, 0.00390625
        %v628 = vmul.f32 %v470, 0.00390625
        %v629 = vmul.f32 %v473, 0.00390625
        %v630 = vmul.f32 %v476, 0.00390625
        %v631 = vmul.f32 %v479, 0.00390625
        %v632 = vmul.f32 %v482, 0.00390625
        %v633 = vmul.f32 %v485, 0.00390625
        %v634 = vmul.f32 %v488, 0.00390625
        %v635 = vmul.f32 %v491, 0.00390625
        %v636 = vmul.f32 %v494, 0.00390625
        %v637 = vmul.f32 %v497, 0.00390625
        %v638 = vmul.f32 %v500, 0.00390625
        %v639 = vmul.f32 %v503, 0.00390625
        %v640 = vmul.f32 %v506, 0.00390625
        %v641 = vmul.f32 %v509, 0.00390625
        %v642 = vmul.f32 %v512, 0.00390625
        %v643 = vmul.f32 %v515, 0.00390625
        %v644 = vmul.f32 %v518, 0.00390625
        %v645 = vmul.f32 %v521, 0.00390625
        %v646 = vmul.f32 %v524, 0.00390625
        %v647 = vmul.f32 %v527, 0.00390625
        %v648 = vmul.f32 %v530, 0.00390625
        %v649 = vmul.f32 %v533, 0.00390625
        %v650 = vmul.f32 %v536, 0.00390625
        %v651 = vmul.f32 %v539, 0.00390625
        %v652 = vmul.f32 %v542, 0.00390625
        %v653 = vmul.f32 %v545, 0.00390625
        %v654 = vmul.f32 %v548, 0.00390625
        %v655 = vmul.f32 %v551, 0.00390625
        %v656 = vmul.f32 %v554, 0.00390625
        %v657 = vmul.f32 %v557, 0.00390625
        %v658 = vmul.f32 %v560, 0.00390625
        %v659 = vmul.f32 %v563, 0.00390625
        %v660 = vmul.f32 %v566, 0.00390625
        %v661 = vmul.f32 %v569, 0.00390625
        %v662 = vmul.f32 %v572, 0.00390625
        %v663 = vmul.f32 %v575, 0.00390625
        %v664 = vmul.f32 %v578, 0.00390625
        %v665 = vmul.f32 %v581, 0.00390625
        %v666 = vmul.f32 %v584, 0.00390625
        %v667 = vmul.f32 %v587, 0.00390625
        %v668 = vmul.f32 %v590, 0.00390625
        %v669 = vmul.f32 %v593, 0.00390625
        %v670 = vmul.f32 %v596, 0.00390625
        %v671 = vmul.f32 %v599, 0.00390625
        %v672 = vmul.f32 %v602, 0.00390625
        %v673 = vmul.f32 %v605, 0.00390625
        %v674 = vmul.f32 %v608, 0.00390625
        %v675 = vmul.f32 %v611, 0.00390625
        %v676 = vld [vmem:[%s291] sm:$0xff]
        %v677 = vld [vmem:[%s291 + $0x8] sm:$0xff]
        %v678 = vld [vmem:[%s291 + $0x10] sm:$0xff]
        %v679 = vld [vmem:[%s291 + $0x18] sm:$0xff]
        %v680 = vld [vmem:[%s291 + $0x20] sm:$0xff]
        %v681 = vld [vmem:[%s291 + $0x28] sm:$0xff]
        %v682 = vld [vmem:[%s291 + $0x30] sm:$0xff]
        %v683 = vld [vmem:[%s291 + $0x38] sm:$0xff]
        %v684 = vld [vmem:[%s1] sm:$0xff]
        %v685 = vld [vmem:[%s1 + $0x8] sm:$0xff]
        %v686 = vld [vmem:[%s1 + $0x10] sm:$0xff]
        %v687 = vld [vmem:[%s1 + $0x18] sm:$0xff]
        %v688 = vld [vmem:[%s1 + $0x20] sm:$0xff]
        %v689 = vld [vmem:[%s1 + $0x28] sm:$0xff]
        %v690 = vld [vmem:[%s1 + $0x30] sm:$0xff]
        %v691 = vld [vmem:[%s1 + $0x38] sm:$0xff]
        %v692 = vld [vmem:[%s1 + $0x40] sm:$0xff]
        %v693 = vld [vmem:[%s1 + $0x48] sm:$0xff]
        %v694 = vld [vmem:[%s1 + $0x50] sm:$0xff]
        %v695 = vld [vmem:[%s1 + $0x58] sm:$0xff]
        %v696 = vld [vmem:[%s1 + $0x60] sm:$0xff]
        %v697 = vld [vmem:[%s1 + $0x68] sm:$0xff]
        %v698 = vld [vmem:[%s1 + $0x70] sm:$0xff]
        %v699 = vld [vmem:[%s1 + $0x78] sm:$0xff]
        %v700 = vld [vmem:[%s1 + $0x80] sm:$0xff]
        %v701 = vld [vmem:[%s1 + $0x88] sm:$0xff]
        %v702 = vld [vmem:[%s1 + $0x90] sm:$0xff]
        %v703 = vld [vmem:[%s1 + $0x98] sm:$0xff]
        %v704 = vld [vmem:[%s1 + $0xa0] sm:$0xff]
        %v705 = vld [vmem:[%s1 + $0xa8] sm:$0xff]
        %v706 = vld [vmem:[%s1 + $0xb0] sm:$0xff]
        %v707 = vld [vmem:[%s1 + $0xb8] sm:$0xff]
        %v708 = vld [vmem:[%s2] sm:$0xff]
        %v709 = vld [vmem:[%s2 + $0x8] sm:$0xff]
        %v710 = vld [vmem:[%s2 + $0x10] sm:$0xff]
        %v711 = vld [vmem:[%s2 + $0x18] sm:$0xff]
        %v712 = vld [vmem:[%s2 + $0x20] sm:$0xff]
        %v713 = vld [vmem:[%s2 + $0x28] sm:$0xff]
        %v714 = vld [vmem:[%s2 + $0x30] sm:$0xff]
        %v715 = vld [vmem:[%s2 + $0x38] sm:$0xff]
        %v716 = vld [vmem:[%s2 + $0x40] sm:$0xff]
        %v717 = vld [vmem:[%s2 + $0x48] sm:$0xff]
        %v718 = vld [vmem:[%s2 + $0x50] sm:$0xff]
        %v719 = vld [vmem:[%s2 + $0x58] sm:$0xff]
        %v720 = vld [vmem:[%s2 + $0x60] sm:$0xff]
        %v721 = vld [vmem:[%s2 + $0x68] sm:$0xff]
        %v722 = vld [vmem:[%s2 + $0x70] sm:$0xff]
        %v723 = vld [vmem:[%s2 + $0x78] sm:$0xff]
        %v724 = vld [vmem:[%s2 + $0x80] sm:$0xff]
        %v725 = vld [vmem:[%s2 + $0x88] sm:$0xff]
        %v726 = vld [vmem:[%s2 + $0x90] sm:$0xff]
        %v727 = vld [vmem:[%s2 + $0x98] sm:$0xff]
        %v728 = vld [vmem:[%s2 + $0xa0] sm:$0xff]
        %v729 = vld [vmem:[%s2 + $0xa8] sm:$0xff]
        %v730 = vld [vmem:[%s2 + $0xb0] sm:$0xff]
        %v731 = vld [vmem:[%s2 + $0xb8] sm:$0xff]
        %v732 = vld [vmem:[%s3] sm:$0xff]
        %v733 = vld [vmem:[%s3 + $0x8] sm:$0xff]
        %v734 = vld [vmem:[%s3 + $0x10] sm:$0xff]
        %v735 = vld [vmem:[%s3 + $0x18] sm:$0xff]
        %v736 = vld [vmem:[%s3 + $0x20] sm:$0xff]
        %v737 = vld [vmem:[%s3 + $0x28] sm:$0xff]
        %v738 = vld [vmem:[%s3 + $0x30] sm:$0xff]
        %v739 = vld [vmem:[%s3 + $0x38] sm:$0xff]
        %v740 = vld [vmem:[%s4] sm:$0xff]
        %v741 = vld [vmem:[%s4 + $0x8] sm:$0xff]
        %v742 = vld [vmem:[%s4 + $0x10] sm:$0xff]
        %v743 = vld [vmem:[%s4 + $0x18] sm:$0xff]
        %v744 = vld [vmem:[%s4 + $0x20] sm:$0xff]
        %v745 = vld [vmem:[%s4 + $0x28] sm:$0xff]
        %v746 = vld [vmem:[%s4 + $0x30] sm:$0xff]
        %v747 = vld [vmem:[%s4 + $0x38] sm:$0xff]
        %749 = vset.pattern.permute.xlu0 0
        %750 = vperm.xlu0 %749, %v708
        %v751 = vpop.permute.xlu0 %750
        %754 = vset.pattern.permute.xlu0 0
        %755 = vperm.xlu0 %754, %v709
        %v756 = vpop.permute.xlu0 %755
        %759 = vset.pattern.permute.xlu0 0
        %760 = vperm.xlu0 %759, %v710
        %v761 = vpop.permute.xlu0 %760
        %764 = vset.pattern.permute.xlu0 0
        %765 = vperm.xlu0 %764, %v711
        %v766 = vpop.permute.xlu0 %765
        %769 = vset.pattern.permute.xlu0 0
        %770 = vperm.xlu0 %769, %v712
        %v771 = vpop.permute.xlu0 %770
        %774 = vset.pattern.permute.xlu0 0
        %775 = vperm.xlu0 %774, %v713
        %v776 = vpop.permute.xlu0 %775
        %779 = vset.pattern.permute.xlu0 0
        %780 = vperm.xlu0 %779, %v714
        %v781 = vpop.permute.xlu0 %780
        %784 = vset.pattern.permute.xlu0 0
        %785 = vperm.xlu0 %784, %v715
        %v786 = vpop.permute.xlu0 %785
        %vm788 = vcmask 523264
        %v790 = vsel %vm788, %v684, 0
        %v793 = vsel %vm788, %v685, 0
        %v796 = vsel %vm788, %v686, 0
        %v799 = vsel %vm788, %v687, 0
        %v802 = vsel %vm788, %v688, 0
        %v805 = vsel %vm788, %v689, 0
        %v808 = vsel %vm788, %v690, 0
        %v811 = vsel %vm788, %v691, 0
        %813 = vmatpush.msra.mxu0 0.0
        %814 = vmatpush.msra.mxu0 0.0
        %815 = vmatpush.msra.mxu0 0.0
        %816 = vmatpush.msra.mxu0 0.0
        %817 = vmatpush.msra.mxu0 0.0
        %818 = vmatpush.msra.mxu0 0.0
        %819 = vmatpush.msra.mxu0 0.0
        %820 = vmatpush.msra.mxu0 0.0
        %v821 = vand.u32 %v683, 4294901760
        %822 = vmatpush.msra.mxu0 %v821
        %v823 = vand.u32 %v682, 4294901760
        %824 = vmatpush.msra.mxu0 %v823
        %v825 = vand.u32 %v681, 4294901760
        %826 = vmatpush.msra.mxu0 %v825
        %v827 = vand.u32 %v680, 4294901760
        %828 = vmatpush.msra.mxu0 %v827
        %v829 = vand.u32 %v679, 4294901760
        %830 = vmatpush.msra.mxu0 %v829
        %v831 = vand.u32 %v678, 4294901760
        %832 = vmatpush.msra.mxu0 %v831
        %v833 = vand.u32 %v677, 4294901760
        %834 = vmatpush.msra.mxu0 %v833
        %v835 = vand.u32 %v676, 4294901760
        %836 = vmatpush.msra.mxu0 %v835
        %v837 = vand.u32 %v790, 4294901760
        %v838 = vsub.f32 %v790, %v837
        %v839 = vand.u32 %v838, 4294901760
        %v840 = vsub.f32 %v838, %v839
        %v841 = vand.u32 %v840, 4294901760
        %842 = vmatmul.f32.gmra.mxu0 %v841
        %v843 = vpop.f32.mrf.mxu0
        %v844 = vadd.f32 %v751, %v843
        %v845 = vand.u32 %v793, 4294901760
        %v846 = vsub.f32 %v793, %v845
        %v847 = vand.u32 %v846, 4294901760
        %v848 = vsub.f32 %v846, %v847
        %v849 = vand.u32 %v848, 4294901760
        %850 = vmatmul.f32.gmra.mxu0 %v849
        %v851 = vpop.f32.mrf.mxu0
        %v852 = vadd.f32 %v756, %v851
        %v853 = vand.u32 %v796, 4294901760
        %v854 = vsub.f32 %v796, %v853
        %v855 = vand.u32 %v854, 4294901760
        %v856 = vsub.f32 %v854, %v855
        %v857 = vand.u32 %v856, 4294901760
        %858 = vmatmul.f32.gmra.mxu0 %v857
        %v859 = vpop.f32.mrf.mxu0
        %v860 = vadd.f32 %v761, %v859
        %v861 = vand.u32 %v799, 4294901760
        %v862 = vsub.f32 %v799, %v861
        %v863 = vand.u32 %v862, 4294901760
        %v864 = vsub.f32 %v862, %v863
        %v865 = vand.u32 %v864, 4294901760
        %866 = vmatmul.f32.gmra.mxu0 %v865
        %v867 = vpop.f32.mrf.mxu0
        %v868 = vadd.f32 %v766, %v867
        %v869 = vand.u32 %v802, 4294901760
        %v870 = vsub.f32 %v802, %v869
        %v871 = vand.u32 %v870, 4294901760
        %v872 = vsub.f32 %v870, %v871
        %v873 = vand.u32 %v872, 4294901760
        %874 = vmatmul.f32.gmra.mxu0 %v873
        %v875 = vpop.f32.mrf.mxu0
        %v876 = vadd.f32 %v771, %v875
        %v877 = vand.u32 %v805, 4294901760
        %v878 = vsub.f32 %v805, %v877
        %v879 = vand.u32 %v878, 4294901760
        %v880 = vsub.f32 %v878, %v879
        %v881 = vand.u32 %v880, 4294901760
        %882 = vmatmul.f32.gmra.mxu0 %v881
        %v883 = vpop.f32.mrf.mxu0
        %v884 = vadd.f32 %v776, %v883
        %v885 = vand.u32 %v808, 4294901760
        %v886 = vsub.f32 %v808, %v885
        %v887 = vand.u32 %v886, 4294901760
        %v888 = vsub.f32 %v886, %v887
        %v889 = vand.u32 %v888, 4294901760
        %890 = vmatmul.f32.gmra.mxu0 %v889
        %v891 = vpop.f32.mrf.mxu0
        %v892 = vadd.f32 %v781, %v891
        %v893 = vand.u32 %v811, 4294901760
        %v894 = vsub.f32 %v811, %v893
        %v895 = vand.u32 %v894, 4294901760
        %v896 = vsub.f32 %v894, %v895
        %v897 = vand.u32 %v896, 4294901760
        %898 = vmatmul.f32.gmra.mxu0 %v897
        %v899 = vpop.f32.mrf.mxu0
        %v900 = vadd.f32 %v786, %v899
        %901 = vdwg.mxu0
        %902 = vmatpush.msra.mxu0 0.0
        %903 = vmatpush.msra.mxu0 0.0
        %904 = vmatpush.msra.mxu0 0.0
        %905 = vmatpush.msra.mxu0 0.0
        %906 = vmatpush.msra.mxu0 0.0
        %907 = vmatpush.msra.mxu0 0.0
        %908 = vmatpush.msra.mxu0 0.0
        %909 = vmatpush.msra.mxu0 0.0
        %v910 = vand.u32 %v683, 4294901760
        %v911 = vsub.f32 %v683, %v910
        %v912 = vand.u32 %v911, 4294901760
        %v913 = vsub.f32 %v911, %v912
        %v914 = vand.u32 %v913, 4294901760
        %915 = vmatpush.msra.mxu0 %v914
        %v916 = vand.u32 %v682, 4294901760
        %v917 = vsub.f32 %v682, %v916
        %v918 = vand.u32 %v917, 4294901760
        %v919 = vsub.f32 %v917, %v918
        %v920 = vand.u32 %v919, 4294901760
        %921 = vmatpush.msra.mxu0 %v920
        %v922 = vand.u32 %v681, 4294901760
        %v923 = vsub.f32 %v681, %v922
        %v924 = vand.u32 %v923, 4294901760
        %v925 = vsub.f32 %v923, %v924
        %v926 = vand.u32 %v925, 4294901760
        %927 = vmatpush.msra.mxu0 %v926
        %v928 = vand.u32 %v680, 4294901760
        %v929 = vsub.f32 %v680, %v928
        %v930 = vand.u32 %v929, 4294901760
        %v931 = vsub.f32 %v929, %v930
        %v932 = vand.u32 %v931, 4294901760
        %933 = vmatpush.msra.mxu0 %v932
        %v934 = vand.u32 %v679, 4294901760
        %v935 = vsub.f32 %v679, %v934
        %v936 = vand.u32 %v935, 4294901760
        %v937 = vsub.f32 %v935, %v936
        %v938 = vand.u32 %v937, 4294901760
        %939 = vmatpush.msra.mxu0 %v938
        %v940 = vand.u32 %v678, 4294901760
        %v941 = vsub.f32 %v678, %v940
        %v942 = vand.u32 %v941, 4294901760
        %v943 = vsub.f32 %v941, %v942
        %v944 = vand.u32 %v943, 4294901760
        %945 = vmatpush.msra.mxu0 %v944
        %v946 = vand.u32 %v677, 4294901760
        %v947 = vsub.f32 %v677, %v946
        %v948 = vand.u32 %v947, 4294901760
        %v949 = vsub.f32 %v947, %v948
        %v950 = vand.u32 %v949, 4294901760
        %951 = vmatpush.msra.mxu0 %v950
        %v952 = vand.u32 %v676, 4294901760
        %v953 = vsub.f32 %v676, %v952
        %v954 = vand.u32 %v953, 4294901760
        %v955 = vsub.f32 %v953, %v954
        %v956 = vand.u32 %v955, 4294901760
        %957 = vmatpush.msra.mxu0 %v956
        %v958 = vand.u32 %v790, 4294901760
        %959 = vmatmul.f32.gmra.mxu0 %v958
        %v960 = vpop.f32.mrf.mxu0
        %v961 = vadd.f32 %v844, %v960
        %v962 = vand.u32 %v793, 4294901760
        %963 = vmatmul.f32.gmra.mxu0 %v962
        %v964 = vpop.f32.mrf.mxu0
        %v965 = vadd.f32 %v852, %v964
        %v966 = vand.u32 %v796, 4294901760
        %967 = vmatmul.f32.gmra.mxu0 %v966
        %v968 = vpop.f32.mrf.mxu0
        %v969 = vadd.f32 %v860, %v968
        %v970 = vand.u32 %v799, 4294901760
        %971 = vmatmul.f32.gmra.mxu0 %v970
        %v972 = vpop.f32.mrf.mxu0
        %v973 = vadd.f32 %v868, %v972
        %v974 = vand.u32 %v802, 4294901760
        %975 = vmatmul.f32.gmra.mxu0 %v974
        %v976 = vpop.f32.mrf.mxu0
        %v977 = vadd.f32 %v876, %v976
        %v978 = vand.u32 %v805, 4294901760
        %979 = vmatmul.f32.gmra.mxu0 %v978
        %v980 = vpop.f32.mrf.mxu0
        %v981 = vadd.f32 %v884, %v980
        %v982 = vand.u32 %v808, 4294901760
        %983 = vmatmul.f32.gmra.mxu0 %v982
        %v984 = vpop.f32.mrf.mxu0
        %v985 = vadd.f32 %v892, %v984
        %v986 = vand.u32 %v811, 4294901760
        %987 = vmatmul.f32.gmra.mxu0 %v986
        %v988 = vpop.f32.mrf.mxu0
        %v989 = vadd.f32 %v900, %v988
        %990 = vdwg.mxu0
        %991 = vmatpush.msra.mxu0 0.0
        %992 = vmatpush.msra.mxu0 0.0
        %993 = vmatpush.msra.mxu0 0.0
        %994 = vmatpush.msra.mxu0 0.0
        %995 = vmatpush.msra.mxu0 0.0
        %996 = vmatpush.msra.mxu0 0.0
        %997 = vmatpush.msra.mxu0 0.0
        %998 = vmatpush.msra.mxu0 0.0
        %v999 = vand.u32 %v683, 4294901760
        %v1000 = vsub.f32 %v683, %v999
        %1001 = vmatpush.msra.mxu0 %v1000
        %v1002 = vand.u32 %v682, 4294901760
        %v1003 = vsub.f32 %v682, %v1002
        %1004 = vmatpush.msra.mxu0 %v1003
        %v1005 = vand.u32 %v681, 4294901760
        %v1006 = vsub.f32 %v681, %v1005
        %1007 = vmatpush.msra.mxu0 %v1006
        %v1008 = vand.u32 %v680, 4294901760
        %v1009 = vsub.f32 %v680, %v1008
        %1010 = vmatpush.msra.mxu0 %v1009
        %v1011 = vand.u32 %v679, 4294901760
        %v1012 = vsub.f32 %v679, %v1011
        %1013 = vmatpush.msra.mxu0 %v1012
        %v1014 = vand.u32 %v678, 4294901760
        %v1015 = vsub.f32 %v678, %v1014
        %1016 = vmatpush.msra.mxu0 %v1015
        %v1017 = vand.u32 %v677, 4294901760
        %v1018 = vsub.f32 %v677, %v1017
        %1019 = vmatpush.msra.mxu0 %v1018
        %v1020 = vand.u32 %v676, 4294901760
        %v1021 = vsub.f32 %v676, %v1020
        %1022 = vmatpush.msra.mxu0 %v1021
        %v1023 = vand.u32 %v790, 4294901760
        %v1024 = vsub.f32 %v790, %v1023
        %1025 = vmatmul.f32.gmra.mxu0 %v1024
        %v1026 = vpop.f32.mrf.mxu0
        %v1027 = vadd.f32 %v961, %v1026
        %v1028 = vand.u32 %v793, 4294901760
        %v1029 = vsub.f32 %v793, %v1028
        %1030 = vmatmul.f32.gmra.mxu0 %v1029
        %v1031 = vpop.f32.mrf.mxu0
        %v1032 = vadd.f32 %v965, %v1031
        %v1033 = vand.u32 %v796, 4294901760
        %v1034 = vsub.f32 %v796, %v1033
        %1035 = vmatmul.f32.gmra.mxu0 %v1034
        %v1036 = vpop.f32.mrf.mxu0
        %v1037 = vadd.f32 %v969, %v1036
        %v1038 = vand.u32 %v799, 4294901760
        %v1039 = vsub.f32 %v799, %v1038
        %1040 = vmatmul.f32.gmra.mxu0 %v1039
        %v1041 = vpop.f32.mrf.mxu0
        %v1042 = vadd.f32 %v973, %v1041
        %v1043 = vand.u32 %v802, 4294901760
        %v1044 = vsub.f32 %v802, %v1043
        %1045 = vmatmul.f32.gmra.mxu0 %v1044
        %v1046 = vpop.f32.mrf.mxu0
        %v1047 = vadd.f32 %v977, %v1046
        %v1048 = vand.u32 %v805, 4294901760
        %v1049 = vsub.f32 %v805, %v1048
        %1050 = vmatmul.f32.gmra.mxu0 %v1049
        %v1051 = vpop.f32.mrf.mxu0
        %v1052 = vadd.f32 %v981, %v1051
        %v1053 = vand.u32 %v808, 4294901760
        %v1054 = vsub.f32 %v808, %v1053
        %1055 = vmatmul.f32.gmra.mxu0 %v1054
        %v1056 = vpop.f32.mrf.mxu0
        %v1057 = vadd.f32 %v985, %v1056
        %v1058 = vand.u32 %v811, 4294901760
        %v1059 = vsub.f32 %v811, %v1058
        %1060 = vmatmul.f32.gmra.mxu0 %v1059
        %v1061 = vpop.f32.mrf.mxu0
        %v1062 = vadd.f32 %v989, %v1061
        %1063 = vdwg.mxu0
        %1064 = vmatpush.msra.mxu0 0.0
        %1065 = vmatpush.msra.mxu0 0.0
        %1066 = vmatpush.msra.mxu0 0.0
        %1067 = vmatpush.msra.mxu0 0.0
        %1068 = vmatpush.msra.mxu0 0.0
        %1069 = vmatpush.msra.mxu0 0.0
        %1070 = vmatpush.msra.mxu0 0.0
        %1071 = vmatpush.msra.mxu0 0.0
        %v1072 = vand.u32 %v683, 4294901760
        %1073 = vmatpush.msra.mxu0 %v1072
        %v1074 = vand.u32 %v682, 4294901760
        %1075 = vmatpush.msra.mxu0 %v1074
        %v1076 = vand.u32 %v681, 4294901760
        %1077 = vmatpush.msra.mxu0 %v1076
        %v1078 = vand.u32 %v680, 4294901760
        %1079 = vmatpush.msra.mxu0 %v1078
        %v1080 = vand.u32 %v679, 4294901760
        %1081 = vmatpush.msra.mxu0 %v1080
        %v1082 = vand.u32 %v678, 4294901760
        %1083 = vmatpush.msra.mxu0 %v1082
        %v1084 = vand.u32 %v677, 4294901760
        %1085 = vmatpush.msra.mxu0 %v1084
        %v1086 = vand.u32 %v676, 4294901760
        %1087 = vmatpush.msra.mxu0 %v1086
        %v1088 = vand.u32 %v790, 4294901760
        %v1089 = vsub.f32 %v790, %v1088
        %v1090 = vand.u32 %v1089, 4294901760
        %1091 = vmatmul.f32.gmra.mxu0 %v1090
        %v1092 = vpop.f32.mrf.mxu0
        %v1093 = vadd.f32 %v1027, %v1092
        %v1094 = vand.u32 %v793, 4294901760
        %v1095 = vsub.f32 %v793, %v1094
        %v1096 = vand.u32 %v1095, 4294901760
        %1097 = vmatmul.f32.gmra.mxu0 %v1096
        %v1098 = vpop.f32.mrf.mxu0
        %v1099 = vadd.f32 %v1032, %v1098
        %v1100 = vand.u32 %v796, 4294901760
        %v1101 = vsub.f32 %v796, %v1100
        %v1102 = vand.u32 %v1101, 4294901760
        %1103 = vmatmul.f32.gmra.mxu0 %v1102
        %v1104 = vpop.f32.mrf.mxu0
        %v1105 = vadd.f32 %v1037, %v1104
        %v1106 = vand.u32 %v799, 4294901760
        %v1107 = vsub.f32 %v799, %v1106
        %v1108 = vand.u32 %v1107, 4294901760
        %1109 = vmatmul.f32.gmra.mxu0 %v1108
        %v1110 = vpop.f32.mrf.mxu0
        %v1111 = vadd.f32 %v1042, %v1110
        %v1112 = vand.u32 %v802, 4294901760
        %v1113 = vsub.f32 %v802, %v1112
        %v1114 = vand.u32 %v1113, 4294901760
        %1115 = vmatmul.f32.gmra.mxu0 %v1114
        %v1116 = vpop.f32.mrf.mxu0
        %v1117 = vadd.f32 %v1047, %v1116
        %v1118 = vand.u32 %v805, 4294901760
        %v1119 = vsub.f32 %v805, %v1118
        %v1120 = vand.u32 %v1119, 4294901760
        %1121 = vmatmul.f32.gmra.mxu0 %v1120
        %v1122 = vpop.f32.mrf.mxu0
        %v1123 = vadd.f32 %v1052, %v1122
        %v1124 = vand.u32 %v808, 4294901760
        %v1125 = vsub.f32 %v808, %v1124
        %v1126 = vand.u32 %v1125, 4294901760
        %1127 = vmatmul.f32.gmra.mxu0 %v1126
        %v1128 = vpop.f32.mrf.mxu0
        %v1129 = vadd.f32 %v1057, %v1128
        %v1130 = vand.u32 %v811, 4294901760
        %v1131 = vsub.f32 %v811, %v1130
        %v1132 = vand.u32 %v1131, 4294901760
        %1133 = vmatmul.f32.gmra.mxu0 %v1132
        %v1134 = vpop.f32.mrf.mxu0
        %v1135 = vadd.f32 %v1062, %v1134
        %1136 = vdwg.mxu0
        %1137 = vmatpush.msra.mxu0 0.0
        %1138 = vmatpush.msra.mxu0 0.0
        %1139 = vmatpush.msra.mxu0 0.0
        %1140 = vmatpush.msra.mxu0 0.0
        %1141 = vmatpush.msra.mxu0 0.0
        %1142 = vmatpush.msra.mxu0 0.0
        %1143 = vmatpush.msra.mxu0 0.0
        %1144 = vmatpush.msra.mxu0 0.0
        %v1145 = vand.u32 %v683, 4294901760
        %v1146 = vsub.f32 %v683, %v1145
        %v1147 = vand.u32 %v1146, 4294901760
        %1148 = vmatpush.msra.mxu0 %v1147
        %v1149 = vand.u32 %v682, 4294901760
        %v1150 = vsub.f32 %v682, %v1149
        %v1151 = vand.u32 %v1150, 4294901760
        %1152 = vmatpush.msra.mxu0 %v1151
        %v1153 = vand.u32 %v681, 4294901760
        %v1154 = vsub.f32 %v681, %v1153
        %v1155 = vand.u32 %v1154, 4294901760
        %1156 = vmatpush.msra.mxu0 %v1155
        %v1157 = vand.u32 %v680, 4294901760
        %v1158 = vsub.f32 %v680, %v1157
        %v1159 = vand.u32 %v1158, 4294901760
        %1160 = vmatpush.msra.mxu0 %v1159
        %v1161 = vand.u32 %v679, 4294901760
        %v1162 = vsub.f32 %v679, %v1161
        %v1163 = vand.u32 %v1162, 4294901760
        %1164 = vmatpush.msra.mxu0 %v1163
        %v1165 = vand.u32 %v678, 4294901760
        %v1166 = vsub.f32 %v678, %v1165
        %v1167 = vand.u32 %v1166, 4294901760
        %1168 = vmatpush.msra.mxu0 %v1167
        %v1169 = vand.u32 %v677, 4294901760
        %v1170 = vsub.f32 %v677, %v1169
        %v1171 = vand.u32 %v1170, 4294901760
        %1172 = vmatpush.msra.mxu0 %v1171
        %v1173 = vand.u32 %v676, 4294901760
        %v1174 = vsub.f32 %v676, %v1173
        %v1175 = vand.u32 %v1174, 4294901760
        %1176 = vmatpush.msra.mxu0 %v1175
        %v1177 = vand.u32 %v790, 4294901760
        %1178 = vmatmul.f32.gmra.mxu0 %v1177
        %v1179 = vpop.f32.mrf.mxu0
        %v1180 = vadd.f32 %v1093, %v1179
        %v1181 = vand.u32 %v793, 4294901760
        %1182 = vmatmul.f32.gmra.mxu0 %v1181
        %v1183 = vpop.f32.mrf.mxu0
        %v1184 = vadd.f32 %v1099, %v1183
        %v1185 = vand.u32 %v796, 4294901760
        %1186 = vmatmul.f32.gmra.mxu0 %v1185
        %v1187 = vpop.f32.mrf.mxu0
        %v1188 = vadd.f32 %v1105, %v1187
        %v1189 = vand.u32 %v799, 4294901760
        %1190 = vmatmul.f32.gmra.mxu0 %v1189
        %v1191 = vpop.f32.mrf.mxu0
        %v1192 = vadd.f32 %v1111, %v1191
        %v1193 = vand.u32 %v802, 4294901760
        %1194 = vmatmul.f32.gmra.mxu0 %v1193
        %v1195 = vpop.f32.mrf.mxu0
        %v1196 = vadd.f32 %v1117, %v1195
        %v1197 = vand.u32 %v805, 4294901760
        %1198 = vmatmul.f32.gmra.mxu0 %v1197
        %v1199 = vpop.f32.mrf.mxu0
        %v1200 = vadd.f32 %v1123, %v1199
        %v1201 = vand.u32 %v808, 4294901760
        %1202 = vmatmul.f32.gmra.mxu0 %v1201
        %v1203 = vpop.f32.mrf.mxu0
        %v1204 = vadd.f32 %v1129, %v1203
        %v1205 = vand.u32 %v811, 4294901760
        %1206 = vmatmul.f32.gmra.mxu0 %v1205
        %v1207 = vpop.f32.mrf.mxu0
        %v1208 = vadd.f32 %v1135, %v1207
        %1209 = vdwg.mxu0
        %1210 = vmatpush.msra.mxu0 0.0
        %1211 = vmatpush.msra.mxu0 0.0
        %1212 = vmatpush.msra.mxu0 0.0
        %1213 = vmatpush.msra.mxu0 0.0
        %1214 = vmatpush.msra.mxu0 0.0
        %1215 = vmatpush.msra.mxu0 0.0
        %1216 = vmatpush.msra.mxu0 0.0
        %1217 = vmatpush.msra.mxu0 0.0
        %v1218 = vand.u32 %v683, 4294901760
        %1219 = vmatpush.msra.mxu0 %v1218
        %v1220 = vand.u32 %v682, 4294901760
        %1221 = vmatpush.msra.mxu0 %v1220
        %v1222 = vand.u32 %v681, 4294901760
        %1223 = vmatpush.msra.mxu0 %v1222
        %v1224 = vand.u32 %v680, 4294901760
        %1225 = vmatpush.msra.mxu0 %v1224
        %v1226 = vand.u32 %v679, 4294901760
        %1227 = vmatpush.msra.mxu0 %v1226
        %v1228 = vand.u32 %v678, 4294901760
        %1229 = vmatpush.msra.mxu0 %v1228
        %v1230 = vand.u32 %v677, 4294901760
        %1231 = vmatpush.msra.mxu0 %v1230
        %v1232 = vand.u32 %v676, 4294901760
        %1233 = vmatpush.msra.mxu0 %v1232
        %v1234 = vand.u32 %v790, 4294901760
        %1235 = vmatmul.f32.gmra.mxu0 %v1234
        %v1236 = vpop.f32.mrf.mxu0
        %v1237 = vadd.f32 %v1180, %v1236
        %v1238 = vand.u32 %v793, 4294901760
        %1239 = vmatmul.f32.gmra.mxu0 %v1238
        %v1240 = vpop.f32.mrf.mxu0
        %v1241 = vadd.f32 %v1184, %v1240
        %v1242 = vand.u32 %v796, 4294901760
        %1243 = vmatmul.f32.gmra.mxu0 %v1242
        %v1244 = vpop.f32.mrf.mxu0
        %v1245 = vadd.f32 %v1188, %v1244
        %v1246 = vand.u32 %v799, 4294901760
        %1247 = vmatmul.f32.gmra.mxu0 %v1246
        %v1248 = vpop.f32.mrf.mxu0
        %v1249 = vadd.f32 %v1192, %v1248
        %v1250 = vand.u32 %v802, 4294901760
        %1251 = vmatmul.f32.gmra.mxu0 %v1250
        %v1252 = vpop.f32.mrf.mxu0
        %v1253 = vadd.f32 %v1196, %v1252
        %v1254 = vand.u32 %v805, 4294901760
        %1255 = vmatmul.f32.gmra.mxu0 %v1254
        %v1256 = vpop.f32.mrf.mxu0
        %v1257 = vadd.f32 %v1200, %v1256
        %v1258 = vand.u32 %v808, 4294901760
        %1259 = vmatmul.f32.gmra.mxu0 %v1258
        %v1260 = vpop.f32.mrf.mxu0
        %v1261 = vadd.f32 %v1204, %v1260
        %v1262 = vand.u32 %v811, 4294901760
        %1263 = vmatmul.f32.gmra.mxu0 %v1262
        %v1264 = vpop.f32.mrf.mxu0
        %v1265 = vadd.f32 %v1208, %v1264
        %1266 = vdwg.mxu0
        %1268 = vset.pattern.permute.xlu0 0
        %1269 = vperm.xlu0 %1268, %v716
        %v1270 = vpop.permute.xlu0 %1269
        %1273 = vset.pattern.permute.xlu0 0
        %1274 = vperm.xlu0 %1273, %v717
        %v1275 = vpop.permute.xlu0 %1274
        %1278 = vset.pattern.permute.xlu0 0
        %1279 = vperm.xlu0 %1278, %v718
        %v1280 = vpop.permute.xlu0 %1279
        %1283 = vset.pattern.permute.xlu0 0
        %1284 = vperm.xlu0 %1283, %v719
        %v1285 = vpop.permute.xlu0 %1284
        %1288 = vset.pattern.permute.xlu0 0
        %1289 = vperm.xlu0 %1288, %v720
        %v1290 = vpop.permute.xlu0 %1289
        %1293 = vset.pattern.permute.xlu0 0
        %1294 = vperm.xlu0 %1293, %v721
        %v1295 = vpop.permute.xlu0 %1294
        %1298 = vset.pattern.permute.xlu0 0
        %1299 = vperm.xlu0 %1298, %v722
        %v1300 = vpop.permute.xlu0 %1299
        %1303 = vset.pattern.permute.xlu0 0
        %1304 = vperm.xlu0 %1303, %v723
        %v1305 = vpop.permute.xlu0 %1304
        %v1371 = vlaneseq
        %v1372 = vand.u32 %v1371, 127
        %v1373 = vperm.slane %v612, %v1372
        %v1374 = vperm.slane %v613, %v1372
        %v1375 = vperm.slane %v614, %v1372
        %v1376 = vperm.slane %v615, %v1372
        %v1377 = vperm.slane %v616, %v1372
        %v1378 = vperm.slane %v617, %v1372
        %v1379 = vperm.slane %v618, %v1372
        %v1380 = vperm.slane %v619, %v1372
        %v1381 = vperm.slane %v620, %v1372
        %v1382 = vperm.slane %v621, %v1372
        %v1383 = vperm.slane %v622, %v1372
        %v1384 = vperm.slane %v623, %v1372
        %v1385 = vperm.slane %v624, %v1372
        %v1386 = vperm.slane %v625, %v1372
        %v1387 = vperm.slane %v626, %v1372
        %v1388 = vperm.slane %v627, %v1372
        %v1389 = vperm.slane %v628, %v1372
        %v1390 = vperm.slane %v629, %v1372
        %v1391 = vperm.slane %v630, %v1372
        %v1392 = vperm.slane %v631, %v1372
        %v1393 = vperm.slane %v632, %v1372
        %v1394 = vperm.slane %v633, %v1372
        %v1395 = vperm.slane %v634, %v1372
        %v1396 = vperm.slane %v635, %v1372
        %v1397 = vperm.slane %v636, %v1372
        %v1398 = vperm.slane %v637, %v1372
        %v1399 = vperm.slane %v638, %v1372
        %v1400 = vperm.slane %v639, %v1372
        %v1401 = vperm.slane %v640, %v1372
        %v1402 = vperm.slane %v641, %v1372
        %v1403 = vperm.slane %v642, %v1372
        %v1404 = vperm.slane %v643, %v1372
        %v1405 = vperm.slane %v644, %v1372
        %v1406 = vperm.slane %v645, %v1372
        %v1407 = vperm.slane %v646, %v1372
        %v1408 = vperm.slane %v647, %v1372
        %v1409 = vperm.slane %v648, %v1372
        %v1410 = vperm.slane %v649, %v1372
        %v1411 = vperm.slane %v650, %v1372
        %v1412 = vperm.slane %v651, %v1372
        %v1413 = vperm.slane %v652, %v1372
        %v1414 = vperm.slane %v653, %v1372
        %v1415 = vperm.slane %v654, %v1372
        %v1416 = vperm.slane %v655, %v1372
        %v1417 = vperm.slane %v656, %v1372
        %v1418 = vperm.slane %v657, %v1372
        %v1419 = vperm.slane %v658, %v1372
        %v1420 = vperm.slane %v659, %v1372
        %v1421 = vperm.slane %v660, %v1372
        %v1422 = vperm.slane %v661, %v1372
        %v1423 = vperm.slane %v662, %v1372
        %v1424 = vperm.slane %v663, %v1372
        %v1425 = vperm.slane %v664, %v1372
        %v1426 = vperm.slane %v665, %v1372
        %v1427 = vperm.slane %v666, %v1372
        %v1428 = vperm.slane %v667, %v1372
        %v1429 = vperm.slane %v668, %v1372
        %v1430 = vperm.slane %v669, %v1372
        %v1431 = vperm.slane %v670, %v1372
        %v1432 = vperm.slane %v671, %v1372
        %v1433 = vperm.slane %v672, %v1372
        %v1434 = vperm.slane %v673, %v1372
        %v1435 = vperm.slane %v674, %v1372
        %v1436 = vperm.slane %v675, %v1372
        %vm1437 = vcmask 1041409
        %v1438 = vsel %vm1437, %v1374, %v1373
        %vm1439 = vcmask 1042434
        %v1440 = vsel %vm1439, %v1375, %v1438
        %vm1441 = vcmask 1043459
        %v1442 = vsel %vm1441, %v1376, %v1440
        %vm1443 = vcmask 1044484
        %v1444 = vsel %vm1443, %v1377, %v1442
        %vm1445 = vcmask 1045509
        %v1446 = vsel %vm1445, %v1378, %v1444
        %vm1447 = vcmask 1046534
        %v1448 = vsel %vm1447, %v1379, %v1446
        %vm1449 = vcmask 1047559
        %v1450 = vsel %vm1449, %v1380, %v1448
        %v1451 = vsel %vm1437, %v1382, %v1381
        %v1452 = vsel %vm1439, %v1383, %v1451
        %v1453 = vsel %vm1441, %v1384, %v1452
        %v1454 = vsel %vm1443, %v1385, %v1453
        %v1455 = vsel %vm1445, %v1386, %v1454
        %v1456 = vsel %vm1447, %v1387, %v1455
        %v1457 = vsel %vm1449, %v1388, %v1456
        %v1458 = vsel %vm1437, %v1390, %v1389
        %v1459 = vsel %vm1439, %v1391, %v1458
        %v1460 = vsel %vm1441, %v1392, %v1459
        %v1461 = vsel %vm1443, %v1393, %v1460
        %v1462 = vsel %vm1445, %v1394, %v1461
        %v1463 = vsel %vm1447, %v1395, %v1462
        %v1464 = vsel %vm1449, %v1396, %v1463
        %v1465 = vsel %vm1437, %v1398, %v1397
        %v1466 = vsel %vm1439, %v1399, %v1465
        %v1467 = vsel %vm1441, %v1400, %v1466
        %v1468 = vsel %vm1443, %v1401, %v1467
        %v1469 = vsel %vm1445, %v1402, %v1468
        %v1470 = vsel %vm1447, %v1403, %v1469
        %v1471 = vsel %vm1449, %v1404, %v1470
        %v1472 = vsel %vm1437, %v1406, %v1405
        %v1473 = vsel %vm1439, %v1407, %v1472
        %v1474 = vsel %vm1441, %v1408, %v1473
        %v1475 = vsel %vm1443, %v1409, %v1474
        %v1476 = vsel %vm1445, %v1410, %v1475
        %v1477 = vsel %vm1447, %v1411, %v1476
        %v1478 = vsel %vm1449, %v1412, %v1477
        %v1479 = vsel %vm1437, %v1414, %v1413
        %v1480 = vsel %vm1439, %v1415, %v1479
        %v1481 = vsel %vm1441, %v1416, %v1480
        %v1482 = vsel %vm1443, %v1417, %v1481
        %v1483 = vsel %vm1445, %v1418, %v1482
        %v1484 = vsel %vm1447, %v1419, %v1483
        %v1485 = vsel %vm1449, %v1420, %v1484
        %v1486 = vsel %vm1437, %v1422, %v1421
        %v1487 = vsel %vm1439, %v1423, %v1486
        %v1488 = vsel %vm1441, %v1424, %v1487
        %v1489 = vsel %vm1443, %v1425, %v1488
        %v1490 = vsel %vm1445, %v1426, %v1489
        %v1491 = vsel %vm1447, %v1427, %v1490
        %v1492 = vsel %vm1449, %v1428, %v1491
        %v1493 = vsel %vm1437, %v1430, %v1429
        %v1494 = vsel %vm1439, %v1431, %v1493
        %v1495 = vsel %vm1441, %v1432, %v1494
        %v1496 = vsel %vm1443, %v1433, %v1495
        %v1497 = vsel %vm1445, %v1434, %v1496
        %v1498 = vsel %vm1447, %v1435, %v1497
        %v1499 = vsel %vm1449, %v1436, %v1498
        %v1509 = vsel %vm788, %v692, 0
        %v1512 = vsel %vm788, %v693, 0
        %v1515 = vsel %vm788, %v694, 0
        %v1518 = vsel %vm788, %v695, 0
        %v1521 = vsel %vm788, %v696, 0
        %v1524 = vsel %vm788, %v697, 0
        %v1527 = vsel %vm788, %v698, 0
        %v1530 = vsel %vm788, %v699, 0
        %1532 = vmatpush.msra.mxu0 0.0
        %1533 = vmatpush.msra.mxu0 0.0
        %1534 = vmatpush.msra.mxu0 0.0
        %1535 = vmatpush.msra.mxu0 0.0
        %1536 = vmatpush.msra.mxu0 0.0
        %1537 = vmatpush.msra.mxu0 0.0
        %1538 = vmatpush.msra.mxu0 0.0
        %1539 = vmatpush.msra.mxu0 0.0
        %v1540 = vand.u32 %v1499, 4294901760
        %1541 = vmatpush.msra.mxu0 %v1540
        %v1542 = vand.u32 %v1492, 4294901760
        %1543 = vmatpush.msra.mxu0 %v1542
        %v1544 = vand.u32 %v1485, 4294901760
        %1545 = vmatpush.msra.mxu0 %v1544
        %v1546 = vand.u32 %v1478, 4294901760
        %1547 = vmatpush.msra.mxu0 %v1546
        %v1548 = vand.u32 %v1471, 4294901760
        %1549 = vmatpush.msra.mxu0 %v1548
        %v1550 = vand.u32 %v1464, 4294901760
        %1551 = vmatpush.msra.mxu0 %v1550
        %v1552 = vand.u32 %v1457, 4294901760
        %1553 = vmatpush.msra.mxu0 %v1552
        %v1554 = vand.u32 %v1450, 4294901760
        %1555 = vmatpush.msra.mxu0 %v1554
        %v1556 = vand.u32 %v1509, 4294901760
        %v1557 = vsub.f32 %v1509, %v1556
        %v1558 = vand.u32 %v1557, 4294901760
        %v1559 = vsub.f32 %v1557, %v1558
        %v1560 = vand.u32 %v1559, 4294901760
        %1561 = vmatmul.f32.gmra.mxu0 %v1560
        %v1562 = vpop.f32.mrf.mxu0
        %v1563 = vadd.f32 %v1270, %v1562
        %v1564 = vand.u32 %v1512, 4294901760
        %v1565 = vsub.f32 %v1512, %v1564
        %v1566 = vand.u32 %v1565, 4294901760
        %v1567 = vsub.f32 %v1565, %v1566
        %v1568 = vand.u32 %v1567, 4294901760
        %1569 = vmatmul.f32.gmra.mxu0 %v1568
        %v1570 = vpop.f32.mrf.mxu0
        %v1571 = vadd.f32 %v1275, %v1570
        %v1572 = vand.u32 %v1515, 4294901760
        %v1573 = vsub.f32 %v1515, %v1572
        %v1574 = vand.u32 %v1573, 4294901760
        %v1575 = vsub.f32 %v1573, %v1574
        %v1576 = vand.u32 %v1575, 4294901760
        %1577 = vmatmul.f32.gmra.mxu0 %v1576
        %v1578 = vpop.f32.mrf.mxu0
        %v1579 = vadd.f32 %v1280, %v1578
        %v1580 = vand.u32 %v1518, 4294901760
        %v1581 = vsub.f32 %v1518, %v1580
        %v1582 = vand.u32 %v1581, 4294901760
        %v1583 = vsub.f32 %v1581, %v1582
        %v1584 = vand.u32 %v1583, 4294901760
        %1585 = vmatmul.f32.gmra.mxu0 %v1584
        %v1586 = vpop.f32.mrf.mxu0
        %v1587 = vadd.f32 %v1285, %v1586
        %v1588 = vand.u32 %v1521, 4294901760
        %v1589 = vsub.f32 %v1521, %v1588
        %v1590 = vand.u32 %v1589, 4294901760
        %v1591 = vsub.f32 %v1589, %v1590
        %v1592 = vand.u32 %v1591, 4294901760
        %1593 = vmatmul.f32.gmra.mxu0 %v1592
        %v1594 = vpop.f32.mrf.mxu0
        %v1595 = vadd.f32 %v1290, %v1594
        %v1596 = vand.u32 %v1524, 4294901760
        %v1597 = vsub.f32 %v1524, %v1596
        %v1598 = vand.u32 %v1597, 4294901760
        %v1599 = vsub.f32 %v1597, %v1598
        %v1600 = vand.u32 %v1599, 4294901760
        %1601 = vmatmul.f32.gmra.mxu0 %v1600
        %v1602 = vpop.f32.mrf.mxu0
        %v1603 = vadd.f32 %v1295, %v1602
        %v1604 = vand.u32 %v1527, 4294901760
        %v1605 = vsub.f32 %v1527, %v1604
        %v1606 = vand.u32 %v1605, 4294901760
        %v1607 = vsub.f32 %v1605, %v1606
        %v1608 = vand.u32 %v1607, 4294901760
        %1609 = vmatmul.f32.gmra.mxu0 %v1608
        %v1610 = vpop.f32.mrf.mxu0
        %v1611 = vadd.f32 %v1300, %v1610
        %v1612 = vand.u32 %v1530, 4294901760
        %v1613 = vsub.f32 %v1530, %v1612
        %v1614 = vand.u32 %v1613, 4294901760
        %v1615 = vsub.f32 %v1613, %v1614
        %v1616 = vand.u32 %v1615, 4294901760
        %1617 = vmatmul.f32.gmra.mxu0 %v1616
        %v1618 = vpop.f32.mrf.mxu0
        %v1619 = vadd.f32 %v1305, %v1618
        %1620 = vdwg.mxu0
        %1621 = vmatpush.msra.mxu0 0.0
        %1622 = vmatpush.msra.mxu0 0.0
        %1623 = vmatpush.msra.mxu0 0.0
        %1624 = vmatpush.msra.mxu0 0.0
        %1625 = vmatpush.msra.mxu0 0.0
        %1626 = vmatpush.msra.mxu0 0.0
        %1627 = vmatpush.msra.mxu0 0.0
        %1628 = vmatpush.msra.mxu0 0.0
        %v1629 = vand.u32 %v1499, 4294901760
        %v1630 = vsub.f32 %v1499, %v1629
        %v1631 = vand.u32 %v1630, 4294901760
        %v1632 = vsub.f32 %v1630, %v1631
        %v1633 = vand.u32 %v1632, 4294901760
        %1634 = vmatpush.msra.mxu0 %v1633
        %v1635 = vand.u32 %v1492, 4294901760
        %v1636 = vsub.f32 %v1492, %v1635
        %v1637 = vand.u32 %v1636, 4294901760
        %v1638 = vsub.f32 %v1636, %v1637
        %v1639 = vand.u32 %v1638, 4294901760
        %1640 = vmatpush.msra.mxu0 %v1639
        %v1641 = vand.u32 %v1485, 4294901760
        %v1642 = vsub.f32 %v1485, %v1641
        %v1643 = vand.u32 %v1642, 4294901760
        %v1644 = vsub.f32 %v1642, %v1643
        %v1645 = vand.u32 %v1644, 4294901760
        %1646 = vmatpush.msra.mxu0 %v1645
        %v1647 = vand.u32 %v1478, 4294901760
        %v1648 = vsub.f32 %v1478, %v1647
        %v1649 = vand.u32 %v1648, 4294901760
        %v1650 = vsub.f32 %v1648, %v1649
        %v1651 = vand.u32 %v1650, 4294901760
        %1652 = vmatpush.msra.mxu0 %v1651
        %v1653 = vand.u32 %v1471, 4294901760
        %v1654 = vsub.f32 %v1471, %v1653
        %v1655 = vand.u32 %v1654, 4294901760
        %v1656 = vsub.f32 %v1654, %v1655
        %v1657 = vand.u32 %v1656, 4294901760
        %1658 = vmatpush.msra.mxu0 %v1657
        %v1659 = vand.u32 %v1464, 4294901760
        %v1660 = vsub.f32 %v1464, %v1659
        %v1661 = vand.u32 %v1660, 4294901760
        %v1662 = vsub.f32 %v1660, %v1661
        %v1663 = vand.u32 %v1662, 4294901760
        %1664 = vmatpush.msra.mxu0 %v1663
        %v1665 = vand.u32 %v1457, 4294901760
        %v1666 = vsub.f32 %v1457, %v1665
        %v1667 = vand.u32 %v1666, 4294901760
        %v1668 = vsub.f32 %v1666, %v1667
        %v1669 = vand.u32 %v1668, 4294901760
        %1670 = vmatpush.msra.mxu0 %v1669
        %v1671 = vand.u32 %v1450, 4294901760
        %v1672 = vsub.f32 %v1450, %v1671
        %v1673 = vand.u32 %v1672, 4294901760
        %v1674 = vsub.f32 %v1672, %v1673
        %v1675 = vand.u32 %v1674, 4294901760
        %1676 = vmatpush.msra.mxu0 %v1675
        %v1677 = vand.u32 %v1509, 4294901760
        %1678 = vmatmul.f32.gmra.mxu0 %v1677
        %v1679 = vpop.f32.mrf.mxu0
        %v1680 = vadd.f32 %v1563, %v1679
        %v1681 = vand.u32 %v1512, 4294901760
        %1682 = vmatmul.f32.gmra.mxu0 %v1681
        %v1683 = vpop.f32.mrf.mxu0
        %v1684 = vadd.f32 %v1571, %v1683
        %v1685 = vand.u32 %v1515, 4294901760
        %1686 = vmatmul.f32.gmra.mxu0 %v1685
        %v1687 = vpop.f32.mrf.mxu0
        %v1688 = vadd.f32 %v1579, %v1687
        %v1689 = vand.u32 %v1518, 4294901760
        %1690 = vmatmul.f32.gmra.mxu0 %v1689
        %v1691 = vpop.f32.mrf.mxu0
        %v1692 = vadd.f32 %v1587, %v1691
        %v1693 = vand.u32 %v1521, 4294901760
        %1694 = vmatmul.f32.gmra.mxu0 %v1693
        %v1695 = vpop.f32.mrf.mxu0
        %v1696 = vadd.f32 %v1595, %v1695
        %v1697 = vand.u32 %v1524, 4294901760
        %1698 = vmatmul.f32.gmra.mxu0 %v1697
        %v1699 = vpop.f32.mrf.mxu0
        %v1700 = vadd.f32 %v1603, %v1699
        %v1701 = vand.u32 %v1527, 4294901760
        %1702 = vmatmul.f32.gmra.mxu0 %v1701
        %v1703 = vpop.f32.mrf.mxu0
        %v1704 = vadd.f32 %v1611, %v1703
        %v1705 = vand.u32 %v1530, 4294901760
        %1706 = vmatmul.f32.gmra.mxu0 %v1705
        %v1707 = vpop.f32.mrf.mxu0
        %v1708 = vadd.f32 %v1619, %v1707
        %1709 = vdwg.mxu0
        %1710 = vmatpush.msra.mxu0 0.0
        %1711 = vmatpush.msra.mxu0 0.0
        %1712 = vmatpush.msra.mxu0 0.0
        %1713 = vmatpush.msra.mxu0 0.0
        %1714 = vmatpush.msra.mxu0 0.0
        %1715 = vmatpush.msra.mxu0 0.0
        %1716 = vmatpush.msra.mxu0 0.0
        %1717 = vmatpush.msra.mxu0 0.0
        %v1718 = vand.u32 %v1499, 4294901760
        %v1719 = vsub.f32 %v1499, %v1718
        %1720 = vmatpush.msra.mxu0 %v1719
        %v1721 = vand.u32 %v1492, 4294901760
        %v1722 = vsub.f32 %v1492, %v1721
        %1723 = vmatpush.msra.mxu0 %v1722
        %v1724 = vand.u32 %v1485, 4294901760
        %v1725 = vsub.f32 %v1485, %v1724
        %1726 = vmatpush.msra.mxu0 %v1725
        %v1727 = vand.u32 %v1478, 4294901760
        %v1728 = vsub.f32 %v1478, %v1727
        %1729 = vmatpush.msra.mxu0 %v1728
        %v1730 = vand.u32 %v1471, 4294901760
        %v1731 = vsub.f32 %v1471, %v1730
        %1732 = vmatpush.msra.mxu0 %v1731
        %v1733 = vand.u32 %v1464, 4294901760
        %v1734 = vsub.f32 %v1464, %v1733
        %1735 = vmatpush.msra.mxu0 %v1734
        %v1736 = vand.u32 %v1457, 4294901760
        %v1737 = vsub.f32 %v1457, %v1736
        %1738 = vmatpush.msra.mxu0 %v1737
        %v1739 = vand.u32 %v1450, 4294901760
        %v1740 = vsub.f32 %v1450, %v1739
        %1741 = vmatpush.msra.mxu0 %v1740
        %v1742 = vand.u32 %v1509, 4294901760
        %v1743 = vsub.f32 %v1509, %v1742
        %1744 = vmatmul.f32.gmra.mxu0 %v1743
        %v1745 = vpop.f32.mrf.mxu0
        %v1746 = vadd.f32 %v1680, %v1745
        %v1747 = vand.u32 %v1512, 4294901760
        %v1748 = vsub.f32 %v1512, %v1747
        %1749 = vmatmul.f32.gmra.mxu0 %v1748
        %v1750 = vpop.f32.mrf.mxu0
        %v1751 = vadd.f32 %v1684, %v1750
        %v1752 = vand.u32 %v1515, 4294901760
        %v1753 = vsub.f32 %v1515, %v1752
        %1754 = vmatmul.f32.gmra.mxu0 %v1753
        %v1755 = vpop.f32.mrf.mxu0
        %v1756 = vadd.f32 %v1688, %v1755
        %v1757 = vand.u32 %v1518, 4294901760
        %v1758 = vsub.f32 %v1518, %v1757
        %1759 = vmatmul.f32.gmra.mxu0 %v1758
        %v1760 = vpop.f32.mrf.mxu0
        %v1761 = vadd.f32 %v1692, %v1760
        %v1762 = vand.u32 %v1521, 4294901760
        %v1763 = vsub.f32 %v1521, %v1762
        %1764 = vmatmul.f32.gmra.mxu0 %v1763
        %v1765 = vpop.f32.mrf.mxu0
        %v1766 = vadd.f32 %v1696, %v1765
        %v1767 = vand.u32 %v1524, 4294901760
        %v1768 = vsub.f32 %v1524, %v1767
        %1769 = vmatmul.f32.gmra.mxu0 %v1768
        %v1770 = vpop.f32.mrf.mxu0
        %v1771 = vadd.f32 %v1700, %v1770
        %v1772 = vand.u32 %v1527, 4294901760
        %v1773 = vsub.f32 %v1527, %v1772
        %1774 = vmatmul.f32.gmra.mxu0 %v1773
        %v1775 = vpop.f32.mrf.mxu0
        %v1776 = vadd.f32 %v1704, %v1775
        %v1777 = vand.u32 %v1530, 4294901760
        %v1778 = vsub.f32 %v1530, %v1777
        %1779 = vmatmul.f32.gmra.mxu0 %v1778
        %v1780 = vpop.f32.mrf.mxu0
        %v1781 = vadd.f32 %v1708, %v1780
        %1782 = vdwg.mxu0
        %1783 = vmatpush.msra.mxu0 0.0
        %1784 = vmatpush.msra.mxu0 0.0
        %1785 = vmatpush.msra.mxu0 0.0
        %1786 = vmatpush.msra.mxu0 0.0
        %1787 = vmatpush.msra.mxu0 0.0
        %1788 = vmatpush.msra.mxu0 0.0
        %1789 = vmatpush.msra.mxu0 0.0
        %1790 = vmatpush.msra.mxu0 0.0
        %v1791 = vand.u32 %v1499, 4294901760
        %1792 = vmatpush.msra.mxu0 %v1791
        %v1793 = vand.u32 %v1492, 4294901760
        %1794 = vmatpush.msra.mxu0 %v1793
        %v1795 = vand.u32 %v1485, 4294901760
        %1796 = vmatpush.msra.mxu0 %v1795
        %v1797 = vand.u32 %v1478, 4294901760
        %1798 = vmatpush.msra.mxu0 %v1797
        %v1799 = vand.u32 %v1471, 4294901760
        %1800 = vmatpush.msra.mxu0 %v1799
        %v1801 = vand.u32 %v1464, 4294901760
        %1802 = vmatpush.msra.mxu0 %v1801
        %v1803 = vand.u32 %v1457, 4294901760
        %1804 = vmatpush.msra.mxu0 %v1803
        %v1805 = vand.u32 %v1450, 4294901760
        %1806 = vmatpush.msra.mxu0 %v1805
        %v1807 = vand.u32 %v1509, 4294901760
        %v1808 = vsub.f32 %v1509, %v1807
        %v1809 = vand.u32 %v1808, 4294901760
        %1810 = vmatmul.f32.gmra.mxu0 %v1809
        %v1811 = vpop.f32.mrf.mxu0
        %v1812 = vadd.f32 %v1746, %v1811
        %v1813 = vand.u32 %v1512, 4294901760
        %v1814 = vsub.f32 %v1512, %v1813
        %v1815 = vand.u32 %v1814, 4294901760
        %1816 = vmatmul.f32.gmra.mxu0 %v1815
        %v1817 = vpop.f32.mrf.mxu0
        %v1818 = vadd.f32 %v1751, %v1817
        %v1819 = vand.u32 %v1515, 4294901760
        %v1820 = vsub.f32 %v1515, %v1819
        %v1821 = vand.u32 %v1820, 4294901760
        %1822 = vmatmul.f32.gmra.mxu0 %v1821
        %v1823 = vpop.f32.mrf.mxu0
        %v1824 = vadd.f32 %v1756, %v1823
        %v1825 = vand.u32 %v1518, 4294901760
        %v1826 = vsub.f32 %v1518, %v1825
        %v1827 = vand.u32 %v1826, 4294901760
        %1828 = vmatmul.f32.gmra.mxu0 %v1827
        %v1829 = vpop.f32.mrf.mxu0
        %v1830 = vadd.f32 %v1761, %v1829
        %v1831 = vand.u32 %v1521, 4294901760
        %v1832 = vsub.f32 %v1521, %v1831
        %v1833 = vand.u32 %v1832, 4294901760
        %1834 = vmatmul.f32.gmra.mxu0 %v1833
        %v1835 = vpop.f32.mrf.mxu0
        %v1836 = vadd.f32 %v1766, %v1835
        %v1837 = vand.u32 %v1524, 4294901760
        %v1838 = vsub.f32 %v1524, %v1837
        %v1839 = vand.u32 %v1838, 4294901760
        %1840 = vmatmul.f32.gmra.mxu0 %v1839
        %v1841 = vpop.f32.mrf.mxu0
        %v1842 = vadd.f32 %v1771, %v1841
        %v1843 = vand.u32 %v1527, 4294901760
        %v1844 = vsub.f32 %v1527, %v1843
        %v1845 = vand.u32 %v1844, 4294901760
        %1846 = vmatmul.f32.gmra.mxu0 %v1845
        %v1847 = vpop.f32.mrf.mxu0
        %v1848 = vadd.f32 %v1776, %v1847
        %v1849 = vand.u32 %v1530, 4294901760
        %v1850 = vsub.f32 %v1530, %v1849
        %v1851 = vand.u32 %v1850, 4294901760
        %1852 = vmatmul.f32.gmra.mxu0 %v1851
        %v1853 = vpop.f32.mrf.mxu0
        %v1854 = vadd.f32 %v1781, %v1853
        %1855 = vdwg.mxu0
        %1856 = vmatpush.msra.mxu0 0.0
        %1857 = vmatpush.msra.mxu0 0.0
        %1858 = vmatpush.msra.mxu0 0.0
        %1859 = vmatpush.msra.mxu0 0.0
        %1860 = vmatpush.msra.mxu0 0.0
        %1861 = vmatpush.msra.mxu0 0.0
        %1862 = vmatpush.msra.mxu0 0.0
        %1863 = vmatpush.msra.mxu0 0.0
        %v1864 = vand.u32 %v1499, 4294901760
        %v1865 = vsub.f32 %v1499, %v1864
        %v1866 = vand.u32 %v1865, 4294901760
        %1867 = vmatpush.msra.mxu0 %v1866
        %v1868 = vand.u32 %v1492, 4294901760
        %v1869 = vsub.f32 %v1492, %v1868
        %v1870 = vand.u32 %v1869, 4294901760
        %1871 = vmatpush.msra.mxu0 %v1870
        %v1872 = vand.u32 %v1485, 4294901760
        %v1873 = vsub.f32 %v1485, %v1872
        %v1874 = vand.u32 %v1873, 4294901760
        %1875 = vmatpush.msra.mxu0 %v1874
        %v1876 = vand.u32 %v1478, 4294901760
        %v1877 = vsub.f32 %v1478, %v1876
        %v1878 = vand.u32 %v1877, 4294901760
        %1879 = vmatpush.msra.mxu0 %v1878
        %v1880 = vand.u32 %v1471, 4294901760
        %v1881 = vsub.f32 %v1471, %v1880
        %v1882 = vand.u32 %v1881, 4294901760
        %1883 = vmatpush.msra.mxu0 %v1882
        %v1884 = vand.u32 %v1464, 4294901760
        %v1885 = vsub.f32 %v1464, %v1884
        %v1886 = vand.u32 %v1885, 4294901760
        %1887 = vmatpush.msra.mxu0 %v1886
        %v1888 = vand.u32 %v1457, 4294901760
        %v1889 = vsub.f32 %v1457, %v1888
        %v1890 = vand.u32 %v1889, 4294901760
        %1891 = vmatpush.msra.mxu0 %v1890
        %v1892 = vand.u32 %v1450, 4294901760
        %v1893 = vsub.f32 %v1450, %v1892
        %v1894 = vand.u32 %v1893, 4294901760
        %1895 = vmatpush.msra.mxu0 %v1894
        %v1896 = vand.u32 %v1509, 4294901760
        %1897 = vmatmul.f32.gmra.mxu0 %v1896
        %v1898 = vpop.f32.mrf.mxu0
        %v1899 = vadd.f32 %v1812, %v1898
        %v1900 = vand.u32 %v1512, 4294901760
        %1901 = vmatmul.f32.gmra.mxu0 %v1900
        %v1902 = vpop.f32.mrf.mxu0
        %v1903 = vadd.f32 %v1818, %v1902
        %v1904 = vand.u32 %v1515, 4294901760
        %1905 = vmatmul.f32.gmra.mxu0 %v1904
        %v1906 = vpop.f32.mrf.mxu0
        %v1907 = vadd.f32 %v1824, %v1906
        %v1908 = vand.u32 %v1518, 4294901760
        %1909 = vmatmul.f32.gmra.mxu0 %v1908
        %v1910 = vpop.f32.mrf.mxu0
        %v1911 = vadd.f32 %v1830, %v1910
        %v1912 = vand.u32 %v1521, 4294901760
        %1913 = vmatmul.f32.gmra.mxu0 %v1912
        %v1914 = vpop.f32.mrf.mxu0
        %v1915 = vadd.f32 %v1836, %v1914
        %v1916 = vand.u32 %v1524, 4294901760
        %1917 = vmatmul.f32.gmra.mxu0 %v1916
        %v1918 = vpop.f32.mrf.mxu0
        %v1919 = vadd.f32 %v1842, %v1918
        %v1920 = vand.u32 %v1527, 4294901760
        %1921 = vmatmul.f32.gmra.mxu0 %v1920
        %v1922 = vpop.f32.mrf.mxu0
        %v1923 = vadd.f32 %v1848, %v1922
        %v1924 = vand.u32 %v1530, 4294901760
        %1925 = vmatmul.f32.gmra.mxu0 %v1924
        %v1926 = vpop.f32.mrf.mxu0
        %v1927 = vadd.f32 %v1854, %v1926
        %1928 = vdwg.mxu0
        %1929 = vmatpush.msra.mxu0 0.0
        %1930 = vmatpush.msra.mxu0 0.0
        %1931 = vmatpush.msra.mxu0 0.0
        %1932 = vmatpush.msra.mxu0 0.0
        %1933 = vmatpush.msra.mxu0 0.0
        %1934 = vmatpush.msra.mxu0 0.0
        %1935 = vmatpush.msra.mxu0 0.0
        %1936 = vmatpush.msra.mxu0 0.0
        %v1937 = vand.u32 %v1499, 4294901760
        %1938 = vmatpush.msra.mxu0 %v1937
        %v1939 = vand.u32 %v1492, 4294901760
        %1940 = vmatpush.msra.mxu0 %v1939
        %v1941 = vand.u32 %v1485, 4294901760
        %1942 = vmatpush.msra.mxu0 %v1941
        %v1943 = vand.u32 %v1478, 4294901760
        %1944 = vmatpush.msra.mxu0 %v1943
        %v1945 = vand.u32 %v1471, 4294901760
        %1946 = vmatpush.msra.mxu0 %v1945
        %v1947 = vand.u32 %v1464, 4294901760
        %1948 = vmatpush.msra.mxu0 %v1947
        %v1949 = vand.u32 %v1457, 4294901760
        %1950 = vmatpush.msra.mxu0 %v1949
        %v1951 = vand.u32 %v1450, 4294901760
        %1952 = vmatpush.msra.mxu0 %v1951
        %v1953 = vand.u32 %v1509, 4294901760
        %1954 = vmatmul.f32.gmra.mxu0 %v1953
        %v1955 = vpop.f32.mrf.mxu0
        %v1956 = vadd.f32 %v1899, %v1955
        %v1957 = vand.u32 %v1512, 4294901760
        %1958 = vmatmul.f32.gmra.mxu0 %v1957
        %v1959 = vpop.f32.mrf.mxu0
        %v1960 = vadd.f32 %v1903, %v1959
        %v1961 = vand.u32 %v1515, 4294901760
        %1962 = vmatmul.f32.gmra.mxu0 %v1961
        %v1963 = vpop.f32.mrf.mxu0
        %v1964 = vadd.f32 %v1907, %v1963
        %v1965 = vand.u32 %v1518, 4294901760
        %1966 = vmatmul.f32.gmra.mxu0 %v1965
        %v1967 = vpop.f32.mrf.mxu0
        %v1968 = vadd.f32 %v1911, %v1967
        %v1969 = vand.u32 %v1521, 4294901760
        %1970 = vmatmul.f32.gmra.mxu0 %v1969
        %v1971 = vpop.f32.mrf.mxu0
        %v1972 = vadd.f32 %v1915, %v1971
        %v1973 = vand.u32 %v1524, 4294901760
        %1974 = vmatmul.f32.gmra.mxu0 %v1973
        %v1975 = vpop.f32.mrf.mxu0
        %v1976 = vadd.f32 %v1919, %v1975
        %v1977 = vand.u32 %v1527, 4294901760
        %1978 = vmatmul.f32.gmra.mxu0 %v1977
        %v1979 = vpop.f32.mrf.mxu0
        %v1980 = vadd.f32 %v1923, %v1979
        %v1981 = vand.u32 %v1530, 4294901760
        %1982 = vmatmul.f32.gmra.mxu0 %v1981
        %v1983 = vpop.f32.mrf.mxu0
        %v1984 = vadd.f32 %v1927, %v1983
        %1985 = vdwg.mxu0
        %1987 = vset.pattern.permute.xlu0 0
        %1988 = vperm.xlu0 %1987, %v724
        %v1989 = vpop.permute.xlu0 %1988
        %1992 = vset.pattern.permute.xlu0 0
        %1993 = vperm.xlu0 %1992, %v725
        %v1994 = vpop.permute.xlu0 %1993
        %1997 = vset.pattern.permute.xlu0 0
        %1998 = vperm.xlu0 %1997, %v726
        %v1999 = vpop.permute.xlu0 %1998
        %2002 = vset.pattern.permute.xlu0 0
        %2003 = vperm.xlu0 %2002, %v727
        %v2004 = vpop.permute.xlu0 %2003
        %2007 = vset.pattern.permute.xlu0 0
        %2008 = vperm.xlu0 %2007, %v728
        %v2009 = vpop.permute.xlu0 %2008
        %2012 = vset.pattern.permute.xlu0 0
        %2013 = vperm.xlu0 %2012, %v729
        %v2014 = vpop.permute.xlu0 %2013
        %2017 = vset.pattern.permute.xlu0 0
        %2018 = vperm.xlu0 %2017, %v730
        %v2019 = vpop.permute.xlu0 %2018
        %2022 = vset.pattern.permute.xlu0 0
        %2023 = vperm.xlu0 %2022, %v731
        %v2024 = vpop.permute.xlu0 %2023
        %v2027 = vsel %vm788, %v700, 0
        %v2030 = vsel %vm788, %v701, 0
        %v2033 = vsel %vm788, %v702, 0
        %v2036 = vsel %vm788, %v703, 0
        %v2039 = vsel %vm788, %v704, 0
        %v2042 = vsel %vm788, %v705, 0
        %v2045 = vsel %vm788, %v706, 0
        %v2048 = vsel %vm788, %v707, 0
        %2050 = vmatpush.msra.mxu0 0.0
        %2051 = vmatpush.msra.mxu0 0.0
        %2052 = vmatpush.msra.mxu0 0.0
        %2053 = vmatpush.msra.mxu0 0.0
        %2054 = vmatpush.msra.mxu0 0.0
        %2055 = vmatpush.msra.mxu0 0.0
        %2056 = vmatpush.msra.mxu0 0.0
        %2057 = vmatpush.msra.mxu0 0.0
        %v2058 = vand.u32 %v1499, 4294901760
        %2059 = vmatpush.msra.mxu0 %v2058
        %v2060 = vand.u32 %v1492, 4294901760
        %2061 = vmatpush.msra.mxu0 %v2060
        %v2062 = vand.u32 %v1485, 4294901760
        %2063 = vmatpush.msra.mxu0 %v2062
        %v2064 = vand.u32 %v1478, 4294901760
        %2065 = vmatpush.msra.mxu0 %v2064
        %v2066 = vand.u32 %v1471, 4294901760
        %2067 = vmatpush.msra.mxu0 %v2066
        %v2068 = vand.u32 %v1464, 4294901760
        %2069 = vmatpush.msra.mxu0 %v2068
        %v2070 = vand.u32 %v1457, 4294901760
        %2071 = vmatpush.msra.mxu0 %v2070
        %v2072 = vand.u32 %v1450, 4294901760
        %2073 = vmatpush.msra.mxu0 %v2072
        %v2074 = vand.u32 %v2027, 4294901760
        %v2075 = vsub.f32 %v2027, %v2074
        %v2076 = vand.u32 %v2075, 4294901760
        %v2077 = vsub.f32 %v2075, %v2076
        %v2078 = vand.u32 %v2077, 4294901760
        %2079 = vmatmul.f32.gmra.mxu0 %v2078
        %v2080 = vpop.f32.mrf.mxu0
        %v2081 = vadd.f32 %v1989, %v2080
        %v2082 = vand.u32 %v2030, 4294901760
        %v2083 = vsub.f32 %v2030, %v2082
        %v2084 = vand.u32 %v2083, 4294901760
        %v2085 = vsub.f32 %v2083, %v2084
        %v2086 = vand.u32 %v2085, 4294901760
        %2087 = vmatmul.f32.gmra.mxu0 %v2086
        %v2088 = vpop.f32.mrf.mxu0
        %v2089 = vadd.f32 %v1994, %v2088
        %v2090 = vand.u32 %v2033, 4294901760
        %v2091 = vsub.f32 %v2033, %v2090
        %v2092 = vand.u32 %v2091, 4294901760
        %v2093 = vsub.f32 %v2091, %v2092
        %v2094 = vand.u32 %v2093, 4294901760
        %2095 = vmatmul.f32.gmra.mxu0 %v2094
        %v2096 = vpop.f32.mrf.mxu0
        %v2097 = vadd.f32 %v1999, %v2096
        %v2098 = vand.u32 %v2036, 4294901760
        %v2099 = vsub.f32 %v2036, %v2098
        %v2100 = vand.u32 %v2099, 4294901760
        %v2101 = vsub.f32 %v2099, %v2100
        %v2102 = vand.u32 %v2101, 4294901760
        %2103 = vmatmul.f32.gmra.mxu0 %v2102
        %v2104 = vpop.f32.mrf.mxu0
        %v2105 = vadd.f32 %v2004, %v2104
        %v2106 = vand.u32 %v2039, 4294901760
        %v2107 = vsub.f32 %v2039, %v2106
        %v2108 = vand.u32 %v2107, 4294901760
        %v2109 = vsub.f32 %v2107, %v2108
        %v2110 = vand.u32 %v2109, 4294901760
        %2111 = vmatmul.f32.gmra.mxu0 %v2110
        %v2112 = vpop.f32.mrf.mxu0
        %v2113 = vadd.f32 %v2009, %v2112
        %v2114 = vand.u32 %v2042, 4294901760
        %v2115 = vsub.f32 %v2042, %v2114
        %v2116 = vand.u32 %v2115, 4294901760
        %v2117 = vsub.f32 %v2115, %v2116
        %v2118 = vand.u32 %v2117, 4294901760
        %2119 = vmatmul.f32.gmra.mxu0 %v2118
        %v2120 = vpop.f32.mrf.mxu0
        %v2121 = vadd.f32 %v2014, %v2120
        %v2122 = vand.u32 %v2045, 4294901760
        %v2123 = vsub.f32 %v2045, %v2122
        %v2124 = vand.u32 %v2123, 4294901760
        %v2125 = vsub.f32 %v2123, %v2124
        %v2126 = vand.u32 %v2125, 4294901760
        %2127 = vmatmul.f32.gmra.mxu0 %v2126
        %v2128 = vpop.f32.mrf.mxu0
        %v2129 = vadd.f32 %v2019, %v2128
        %v2130 = vand.u32 %v2048, 4294901760
        %v2131 = vsub.f32 %v2048, %v2130
        %v2132 = vand.u32 %v2131, 4294901760
        %v2133 = vsub.f32 %v2131, %v2132
        %v2134 = vand.u32 %v2133, 4294901760
        %2135 = vmatmul.f32.gmra.mxu0 %v2134
        %v2136 = vpop.f32.mrf.mxu0
        %v2137 = vadd.f32 %v2024, %v2136
        %2138 = vdwg.mxu0
        %2139 = vmatpush.msra.mxu0 0.0
        %2140 = vmatpush.msra.mxu0 0.0
        %2141 = vmatpush.msra.mxu0 0.0
        %2142 = vmatpush.msra.mxu0 0.0
        %2143 = vmatpush.msra.mxu0 0.0
        %2144 = vmatpush.msra.mxu0 0.0
        %2145 = vmatpush.msra.mxu0 0.0
        %2146 = vmatpush.msra.mxu0 0.0
        %v2147 = vand.u32 %v1499, 4294901760
        %v2148 = vsub.f32 %v1499, %v2147
        %v2149 = vand.u32 %v2148, 4294901760
        %v2150 = vsub.f32 %v2148, %v2149
        %v2151 = vand.u32 %v2150, 4294901760
        %2152 = vmatpush.msra.mxu0 %v2151
        %v2153 = vand.u32 %v1492, 4294901760
        %v2154 = vsub.f32 %v1492, %v2153
        %v2155 = vand.u32 %v2154, 4294901760
        %v2156 = vsub.f32 %v2154, %v2155
        %v2157 = vand.u32 %v2156, 4294901760
        %2158 = vmatpush.msra.mxu0 %v2157
        %v2159 = vand.u32 %v1485, 4294901760
        %v2160 = vsub.f32 %v1485, %v2159
        %v2161 = vand.u32 %v2160, 4294901760
        %v2162 = vsub.f32 %v2160, %v2161
        %v2163 = vand.u32 %v2162, 4294901760
        %2164 = vmatpush.msra.mxu0 %v2163
        %v2165 = vand.u32 %v1478, 4294901760
        %v2166 = vsub.f32 %v1478, %v2165
        %v2167 = vand.u32 %v2166, 4294901760
        %v2168 = vsub.f32 %v2166, %v2167
        %v2169 = vand.u32 %v2168, 4294901760
        %2170 = vmatpush.msra.mxu0 %v2169
        %v2171 = vand.u32 %v1471, 4294901760
        %v2172 = vsub.f32 %v1471, %v2171
        %v2173 = vand.u32 %v2172, 4294901760
        %v2174 = vsub.f32 %v2172, %v2173
        %v2175 = vand.u32 %v2174, 4294901760
        %2176 = vmatpush.msra.mxu0 %v2175
        %v2177 = vand.u32 %v1464, 4294901760
        %v2178 = vsub.f32 %v1464, %v2177
        %v2179 = vand.u32 %v2178, 4294901760
        %v2180 = vsub.f32 %v2178, %v2179
        %v2181 = vand.u32 %v2180, 4294901760
        %2182 = vmatpush.msra.mxu0 %v2181
        %v2183 = vand.u32 %v1457, 4294901760
        %v2184 = vsub.f32 %v1457, %v2183
        %v2185 = vand.u32 %v2184, 4294901760
        %v2186 = vsub.f32 %v2184, %v2185
        %v2187 = vand.u32 %v2186, 4294901760
        %2188 = vmatpush.msra.mxu0 %v2187
        %v2189 = vand.u32 %v1450, 4294901760
        %v2190 = vsub.f32 %v1450, %v2189
        %v2191 = vand.u32 %v2190, 4294901760
        %v2192 = vsub.f32 %v2190, %v2191
        %v2193 = vand.u32 %v2192, 4294901760
        %2194 = vmatpush.msra.mxu0 %v2193
        %v2195 = vand.u32 %v2027, 4294901760
        %2196 = vmatmul.f32.gmra.mxu0 %v2195
        %v2197 = vpop.f32.mrf.mxu0
        %v2198 = vadd.f32 %v2081, %v2197
        %v2199 = vand.u32 %v2030, 4294901760
        %2200 = vmatmul.f32.gmra.mxu0 %v2199
        %v2201 = vpop.f32.mrf.mxu0
        %v2202 = vadd.f32 %v2089, %v2201
        %v2203 = vand.u32 %v2033, 4294901760
        %2204 = vmatmul.f32.gmra.mxu0 %v2203
        %v2205 = vpop.f32.mrf.mxu0
        %v2206 = vadd.f32 %v2097, %v2205
        %v2207 = vand.u32 %v2036, 4294901760
        %2208 = vmatmul.f32.gmra.mxu0 %v2207
        %v2209 = vpop.f32.mrf.mxu0
        %v2210 = vadd.f32 %v2105, %v2209
        %v2211 = vand.u32 %v2039, 4294901760
        %2212 = vmatmul.f32.gmra.mxu0 %v2211
        %v2213 = vpop.f32.mrf.mxu0
        %v2214 = vadd.f32 %v2113, %v2213
        %v2215 = vand.u32 %v2042, 4294901760
        %2216 = vmatmul.f32.gmra.mxu0 %v2215
        %v2217 = vpop.f32.mrf.mxu0
        %v2218 = vadd.f32 %v2121, %v2217
        %v2219 = vand.u32 %v2045, 4294901760
        %2220 = vmatmul.f32.gmra.mxu0 %v2219
        %v2221 = vpop.f32.mrf.mxu0
        %v2222 = vadd.f32 %v2129, %v2221
        %v2223 = vand.u32 %v2048, 4294901760
        %2224 = vmatmul.f32.gmra.mxu0 %v2223
        %v2225 = vpop.f32.mrf.mxu0
        %v2226 = vadd.f32 %v2137, %v2225
        %2227 = vdwg.mxu0
        %2228 = vmatpush.msra.mxu0 0.0
        %2229 = vmatpush.msra.mxu0 0.0
        %2230 = vmatpush.msra.mxu0 0.0
        %2231 = vmatpush.msra.mxu0 0.0
        %2232 = vmatpush.msra.mxu0 0.0
        %2233 = vmatpush.msra.mxu0 0.0
        %2234 = vmatpush.msra.mxu0 0.0
        %2235 = vmatpush.msra.mxu0 0.0
        %v2236 = vand.u32 %v1499, 4294901760
        %v2237 = vsub.f32 %v1499, %v2236
        %2238 = vmatpush.msra.mxu0 %v2237
        %v2239 = vand.u32 %v1492, 4294901760
        %v2240 = vsub.f32 %v1492, %v2239
        %2241 = vmatpush.msra.mxu0 %v2240
        %v2242 = vand.u32 %v1485, 4294901760
        %v2243 = vsub.f32 %v1485, %v2242
        %2244 = vmatpush.msra.mxu0 %v2243
        %v2245 = vand.u32 %v1478, 4294901760
        %v2246 = vsub.f32 %v1478, %v2245
        %2247 = vmatpush.msra.mxu0 %v2246
        %v2248 = vand.u32 %v1471, 4294901760
        %v2249 = vsub.f32 %v1471, %v2248
        %2250 = vmatpush.msra.mxu0 %v2249
        %v2251 = vand.u32 %v1464, 4294901760
        %v2252 = vsub.f32 %v1464, %v2251
        %2253 = vmatpush.msra.mxu0 %v2252
        %v2254 = vand.u32 %v1457, 4294901760
        %v2255 = vsub.f32 %v1457, %v2254
        %2256 = vmatpush.msra.mxu0 %v2255
        %v2257 = vand.u32 %v1450, 4294901760
        %v2258 = vsub.f32 %v1450, %v2257
        %2259 = vmatpush.msra.mxu0 %v2258
        %v2260 = vand.u32 %v2027, 4294901760
        %v2261 = vsub.f32 %v2027, %v2260
        %2262 = vmatmul.f32.gmra.mxu0 %v2261
        %v2263 = vpop.f32.mrf.mxu0
        %v2264 = vadd.f32 %v2198, %v2263
        %v2265 = vand.u32 %v2030, 4294901760
        %v2266 = vsub.f32 %v2030, %v2265
        %2267 = vmatmul.f32.gmra.mxu0 %v2266
        %v2268 = vpop.f32.mrf.mxu0
        %v2269 = vadd.f32 %v2202, %v2268
        %v2270 = vand.u32 %v2033, 4294901760
        %v2271 = vsub.f32 %v2033, %v2270
        %2272 = vmatmul.f32.gmra.mxu0 %v2271
        %v2273 = vpop.f32.mrf.mxu0
        %v2274 = vadd.f32 %v2206, %v2273
        %v2275 = vand.u32 %v2036, 4294901760
        %v2276 = vsub.f32 %v2036, %v2275
        %2277 = vmatmul.f32.gmra.mxu0 %v2276
        %v2278 = vpop.f32.mrf.mxu0
        %v2279 = vadd.f32 %v2210, %v2278
        %v2280 = vand.u32 %v2039, 4294901760
        %v2281 = vsub.f32 %v2039, %v2280
        %2282 = vmatmul.f32.gmra.mxu0 %v2281
        %v2283 = vpop.f32.mrf.mxu0
        %v2284 = vadd.f32 %v2214, %v2283
        %v2285 = vand.u32 %v2042, 4294901760
        %v2286 = vsub.f32 %v2042, %v2285
        %2287 = vmatmul.f32.gmra.mxu0 %v2286
        %v2288 = vpop.f32.mrf.mxu0
        %v2289 = vadd.f32 %v2218, %v2288
        %v2290 = vand.u32 %v2045, 4294901760
        %v2291 = vsub.f32 %v2045, %v2290
        %2292 = vmatmul.f32.gmra.mxu0 %v2291
        %v2293 = vpop.f32.mrf.mxu0
        %v2294 = vadd.f32 %v2222, %v2293
        %v2295 = vand.u32 %v2048, 4294901760
        %v2296 = vsub.f32 %v2048, %v2295
        %2297 = vmatmul.f32.gmra.mxu0 %v2296
        %v2298 = vpop.f32.mrf.mxu0
        %v2299 = vadd.f32 %v2226, %v2298
        %2300 = vdwg.mxu0
        %2301 = vmatpush.msra.mxu0 0.0
        %2302 = vmatpush.msra.mxu0 0.0
        %2303 = vmatpush.msra.mxu0 0.0
        %2304 = vmatpush.msra.mxu0 0.0
        %2305 = vmatpush.msra.mxu0 0.0
        %2306 = vmatpush.msra.mxu0 0.0
        %2307 = vmatpush.msra.mxu0 0.0
        %2308 = vmatpush.msra.mxu0 0.0
        %v2309 = vand.u32 %v1499, 4294901760
        %2310 = vmatpush.msra.mxu0 %v2309
        %v2311 = vand.u32 %v1492, 4294901760
        %2312 = vmatpush.msra.mxu0 %v2311
        %v2313 = vand.u32 %v1485, 4294901760
        %2314 = vmatpush.msra.mxu0 %v2313
        %v2315 = vand.u32 %v1478, 4294901760
        %2316 = vmatpush.msra.mxu0 %v2315
        %v2317 = vand.u32 %v1471, 4294901760
        %2318 = vmatpush.msra.mxu0 %v2317
        %v2319 = vand.u32 %v1464, 4294901760
        %2320 = vmatpush.msra.mxu0 %v2319
        %v2321 = vand.u32 %v1457, 4294901760
        %2322 = vmatpush.msra.mxu0 %v2321
        %v2323 = vand.u32 %v1450, 4294901760
        %2324 = vmatpush.msra.mxu0 %v2323
        %v2325 = vand.u32 %v2027, 4294901760
        %v2326 = vsub.f32 %v2027, %v2325
        %v2327 = vand.u32 %v2326, 4294901760
        %2328 = vmatmul.f32.gmra.mxu0 %v2327
        %v2329 = vpop.f32.mrf.mxu0
        %v2330 = vadd.f32 %v2264, %v2329
        %v2331 = vand.u32 %v2030, 4294901760
        %v2332 = vsub.f32 %v2030, %v2331
        %v2333 = vand.u32 %v2332, 4294901760
        %2334 = vmatmul.f32.gmra.mxu0 %v2333
        %v2335 = vpop.f32.mrf.mxu0
        %v2336 = vadd.f32 %v2269, %v2335
        %v2337 = vand.u32 %v2033, 4294901760
        %v2338 = vsub.f32 %v2033, %v2337
        %v2339 = vand.u32 %v2338, 4294901760
        %2340 = vmatmul.f32.gmra.mxu0 %v2339
        %v2341 = vpop.f32.mrf.mxu0
        %v2342 = vadd.f32 %v2274, %v2341
        %v2343 = vand.u32 %v2036, 4294901760
        %v2344 = vsub.f32 %v2036, %v2343
        %v2345 = vand.u32 %v2344, 4294901760
        %2346 = vmatmul.f32.gmra.mxu0 %v2345
        %v2347 = vpop.f32.mrf.mxu0
        %v2348 = vadd.f32 %v2279, %v2347
        %v2349 = vand.u32 %v2039, 4294901760
        %v2350 = vsub.f32 %v2039, %v2349
        %v2351 = vand.u32 %v2350, 4294901760
        %2352 = vmatmul.f32.gmra.mxu0 %v2351
        %v2353 = vpop.f32.mrf.mxu0
        %v2354 = vadd.f32 %v2284, %v2353
        %v2355 = vand.u32 %v2042, 4294901760
        %v2356 = vsub.f32 %v2042, %v2355
        %v2357 = vand.u32 %v2356, 4294901760
        %2358 = vmatmul.f32.gmra.mxu0 %v2357
        %v2359 = vpop.f32.mrf.mxu0
        %v2360 = vadd.f32 %v2289, %v2359
        %v2361 = vand.u32 %v2045, 4294901760
        %v2362 = vsub.f32 %v2045, %v2361
        %v2363 = vand.u32 %v2362, 4294901760
        %2364 = vmatmul.f32.gmra.mxu0 %v2363
        %v2365 = vpop.f32.mrf.mxu0
        %v2366 = vadd.f32 %v2294, %v2365
        %v2367 = vand.u32 %v2048, 4294901760
        %v2368 = vsub.f32 %v2048, %v2367
        %v2369 = vand.u32 %v2368, 4294901760
        %2370 = vmatmul.f32.gmra.mxu0 %v2369
        %v2371 = vpop.f32.mrf.mxu0
        %v2372 = vadd.f32 %v2299, %v2371
        %2373 = vdwg.mxu0
        %2374 = vmatpush.msra.mxu0 0.0
        %2375 = vmatpush.msra.mxu0 0.0
        %2376 = vmatpush.msra.mxu0 0.0
        %2377 = vmatpush.msra.mxu0 0.0
        %2378 = vmatpush.msra.mxu0 0.0
        %2379 = vmatpush.msra.mxu0 0.0
        %2380 = vmatpush.msra.mxu0 0.0
        %2381 = vmatpush.msra.mxu0 0.0
        %v2382 = vand.u32 %v1499, 4294901760
        %v2383 = vsub.f32 %v1499, %v2382
        %v2384 = vand.u32 %v2383, 4294901760
        %2385 = vmatpush.msra.mxu0 %v2384
        %v2386 = vand.u32 %v1492, 4294901760
        %v2387 = vsub.f32 %v1492, %v2386
        %v2388 = vand.u32 %v2387, 4294901760
        %2389 = vmatpush.msra.mxu0 %v2388
        %v2390 = vand.u32 %v1485, 4294901760
        %v2391 = vsub.f32 %v1485, %v2390
        %v2392 = vand.u32 %v2391, 4294901760
        %2393 = vmatpush.msra.mxu0 %v2392
        %v2394 = vand.u32 %v1478, 4294901760
        %v2395 = vsub.f32 %v1478, %v2394
        %v2396 = vand.u32 %v2395, 4294901760
        %2397 = vmatpush.msra.mxu0 %v2396
        %v2398 = vand.u32 %v1471, 4294901760
        %v2399 = vsub.f32 %v1471, %v2398
        %v2400 = vand.u32 %v2399, 4294901760
        %2401 = vmatpush.msra.mxu0 %v2400
        %v2402 = vand.u32 %v1464, 4294901760
        %v2403 = vsub.f32 %v1464, %v2402
        %v2404 = vand.u32 %v2403, 4294901760
        %2405 = vmatpush.msra.mxu0 %v2404
        %v2406 = vand.u32 %v1457, 4294901760
        %v2407 = vsub.f32 %v1457, %v2406
        %v2408 = vand.u32 %v2407, 4294901760
        %2409 = vmatpush.msra.mxu0 %v2408
        %v2410 = vand.u32 %v1450, 4294901760
        %v2411 = vsub.f32 %v1450, %v2410
        %v2412 = vand.u32 %v2411, 4294901760
        %2413 = vmatpush.msra.mxu0 %v2412
        %v2414 = vand.u32 %v2027, 4294901760
        %2415 = vmatmul.f32.gmra.mxu0 %v2414
        %v2416 = vpop.f32.mrf.mxu0
        %v2417 = vadd.f32 %v2330, %v2416
        %v2418 = vand.u32 %v2030, 4294901760
        %2419 = vmatmul.f32.gmra.mxu0 %v2418
        %v2420 = vpop.f32.mrf.mxu0
        %v2421 = vadd.f32 %v2336, %v2420
        %v2422 = vand.u32 %v2033, 4294901760
        %2423 = vmatmul.f32.gmra.mxu0 %v2422
        %v2424 = vpop.f32.mrf.mxu0
        %v2425 = vadd.f32 %v2342, %v2424
        %v2426 = vand.u32 %v2036, 4294901760
        %2427 = vmatmul.f32.gmra.mxu0 %v2426
        %v2428 = vpop.f32.mrf.mxu0
        %v2429 = vadd.f32 %v2348, %v2428
        %v2430 = vand.u32 %v2039, 4294901760
        %2431 = vmatmul.f32.gmra.mxu0 %v2430
        %v2432 = vpop.f32.mrf.mxu0
        %v2433 = vadd.f32 %v2354, %v2432
        %v2434 = vand.u32 %v2042, 4294901760
        %2435 = vmatmul.f32.gmra.mxu0 %v2434
        %v2436 = vpop.f32.mrf.mxu0
        %v2437 = vadd.f32 %v2360, %v2436
        %v2438 = vand.u32 %v2045, 4294901760
        %2439 = vmatmul.f32.gmra.mxu0 %v2438
        %v2440 = vpop.f32.mrf.mxu0
        %v2441 = vadd.f32 %v2366, %v2440
        %v2442 = vand.u32 %v2048, 4294901760
        %2443 = vmatmul.f32.gmra.mxu0 %v2442
        %v2444 = vpop.f32.mrf.mxu0
        %v2445 = vadd.f32 %v2372, %v2444
        %2446 = vdwg.mxu0
        %2447 = vmatpush.msra.mxu0 0.0
        %2448 = vmatpush.msra.mxu0 0.0
        %2449 = vmatpush.msra.mxu0 0.0
        %2450 = vmatpush.msra.mxu0 0.0
        %2451 = vmatpush.msra.mxu0 0.0
        %2452 = vmatpush.msra.mxu0 0.0
        %2453 = vmatpush.msra.mxu0 0.0
        %2454 = vmatpush.msra.mxu0 0.0
        %v2455 = vand.u32 %v1499, 4294901760
        %2456 = vmatpush.msra.mxu0 %v2455
        %v2457 = vand.u32 %v1492, 4294901760
        %2458 = vmatpush.msra.mxu0 %v2457
        %v2459 = vand.u32 %v1485, 4294901760
        %2460 = vmatpush.msra.mxu0 %v2459
        %v2461 = vand.u32 %v1478, 4294901760
        %2462 = vmatpush.msra.mxu0 %v2461
        %v2463 = vand.u32 %v1471, 4294901760
        %2464 = vmatpush.msra.mxu0 %v2463
        %v2465 = vand.u32 %v1464, 4294901760
        %2466 = vmatpush.msra.mxu0 %v2465
        %v2467 = vand.u32 %v1457, 4294901760
        %2468 = vmatpush.msra.mxu0 %v2467
        %v2469 = vand.u32 %v1450, 4294901760
        %2470 = vmatpush.msra.mxu0 %v2469
        %v2471 = vand.u32 %v2027, 4294901760
        %2472 = vmatmul.f32.gmra.mxu0 %v2471
        %v2473 = vpop.f32.mrf.mxu0
        %v2474 = vadd.f32 %v2417, %v2473
        %v2475 = vand.u32 %v2030, 4294901760
        %2476 = vmatmul.f32.gmra.mxu0 %v2475
        %v2477 = vpop.f32.mrf.mxu0
        %v2478 = vadd.f32 %v2421, %v2477
        %v2479 = vand.u32 %v2033, 4294901760
        %2480 = vmatmul.f32.gmra.mxu0 %v2479
        %v2481 = vpop.f32.mrf.mxu0
        %v2482 = vadd.f32 %v2425, %v2481
        %v2483 = vand.u32 %v2036, 4294901760
        %2484 = vmatmul.f32.gmra.mxu0 %v2483
        %v2485 = vpop.f32.mrf.mxu0
        %v2486 = vadd.f32 %v2429, %v2485
        %v2487 = vand.u32 %v2039, 4294901760
        %2488 = vmatmul.f32.gmra.mxu0 %v2487
        %v2489 = vpop.f32.mrf.mxu0
        %v2490 = vadd.f32 %v2433, %v2489
        %v2491 = vand.u32 %v2042, 4294901760
        %2492 = vmatmul.f32.gmra.mxu0 %v2491
        %v2493 = vpop.f32.mrf.mxu0
        %v2494 = vadd.f32 %v2437, %v2493
        %v2495 = vand.u32 %v2045, 4294901760
        %2496 = vmatmul.f32.gmra.mxu0 %v2495
        %v2497 = vpop.f32.mrf.mxu0
        %v2498 = vadd.f32 %v2441, %v2497
        %v2499 = vand.u32 %v2048, 4294901760
        %2500 = vmatmul.f32.gmra.mxu0 %v2499
        %v2501 = vpop.f32.mrf.mxu0
        %v2502 = vadd.f32 %v2445, %v2501
        %2503 = vdwg.mxu0
        %2504 = vxpose.xlu0.b32.start [1/16] %v1237, 128
        %2505 = vxpose.xlu0.b32.cont [2/16] %v1241, 128
        %2506 = vxpose.xlu0.b32.cont [3/16] 0.0, 128
        %2507 = vxpose.xlu0.b32.cont [4/16] 0.0, 128
        %2508 = vxpose.xlu0.b32.cont [5/16] 0.0, 128
        %2509 = vxpose.xlu0.b32.cont [6/16] 0.0, 128
        %2510 = vxpose.xlu0.b32.cont [7/16] 0.0, 128
        %2511 = vxpose.xlu0.b32.cont [8/16] 0.0, 128
        %2512 = vxpose.xlu0.b32.cont [9/16] 0.0, 128
        %2513 = vxpose.xlu0.b32.cont [10/16] 0.0, 128
        %2514 = vxpose.xlu0.b32.cont [11/16] 0.0, 128
        %2515 = vxpose.xlu0.b32.cont [12/16] 0.0, 128
        %2516 = vxpose.xlu0.b32.cont [13/16] 0.0, 128
        %2517 = vxpose.xlu0.b32.cont [14/16] 0.0, 128
        %2518 = vxpose.xlu0.b32.cont [15/16] 0.0, 128
        %2519 = vxpose.xlu0.b32.end [16/16] 0.0, 128
        %v2520 = vpop.trf.xlu0
        %v2521 = vpop.trf.xlu0
        %v2522 = vpop.trf.xlu0
        %v2523 = vpop.trf.xlu0
        %v2524 = vpop.trf.xlu0
        %v2525 = vpop.trf.xlu0
        %v2526 = vpop.trf.xlu0
        %v2527 = vpop.trf.xlu0
        %v2528 = vpop.trf.xlu0
        %v2529 = vpop.trf.xlu0
        %v2530 = vpop.trf.xlu0
        %v2531 = vpop.trf.xlu0
        %v2532 = vpop.trf.xlu0
        %v2533 = vpop.trf.xlu0
        %v2534 = vpop.trf.xlu0
        %v2535 = vpop.trf.xlu0
        %vm2536 = vcmask 130048
        %v2538 = vsel %vm2536, %v2520, 0
        %2540 = vmatpush.msra.mxu0 0.0
        %2541 = vmatpush.msra.mxu0 0.0
        %2542 = vmatpush.msra.mxu0 0.0
        %2543 = vmatpush.msra.mxu0 0.0
        %2544 = vmatpush.msra.mxu0 0.0
        %2545 = vmatpush.msra.mxu0 0.0
        %2546 = vmatpush.msra.mxu0 0.0
        %2547 = vmatpush.msra.mxu0 0.0
        %2548 = vmatpush.msra.mxu0 0.0
        %2549 = vmatpush.msra.mxu0 0.0
        %2550 = vmatpush.msra.mxu0 0.0
        %2551 = vmatpush.msra.mxu0 0.0
        %2552 = vmatpush.msra.mxu0 0.0
        %2553 = vmatpush.msra.mxu0 0.0
        %v2554 = vand.u32 %v1960, 4294901760
        %2555 = vmatpush.msra.mxu0 %v2554
        %v2556 = vand.u32 %v1956, 4294901760
        %2557 = vmatpush.msra.mxu0 %v2556
        %v2558 = vand.u32 %v2538, 4294901760
        %v2559 = vsub.f32 %v2538, %v2558
        %v2560 = vand.u32 %v2559, 4294901760
        %v2561 = vsub.f32 %v2559, %v2560
        %v2562 = vand.u32 %v2561, 4294901760
        %2563 = vmatmul.f32.gmra.mxu0 %v2562
        %v2564 = vpop.f32.mrf.mxu0
        %v2565 = vadd.f32 0.0, %v2564
        %2566 = vdwg.mxu0
        %2567 = vmatpush.msra.mxu0 0.0
        %2568 = vmatpush.msra.mxu0 0.0
        %2569 = vmatpush.msra.mxu0 0.0
        %2570 = vmatpush.msra.mxu0 0.0
        %2571 = vmatpush.msra.mxu0 0.0
        %2572 = vmatpush.msra.mxu0 0.0
        %2573 = vmatpush.msra.mxu0 0.0
        %2574 = vmatpush.msra.mxu0 0.0
        %2575 = vmatpush.msra.mxu0 0.0
        %2576 = vmatpush.msra.mxu0 0.0
        %2577 = vmatpush.msra.mxu0 0.0
        %2578 = vmatpush.msra.mxu0 0.0
        %2579 = vmatpush.msra.mxu0 0.0
        %2580 = vmatpush.msra.mxu0 0.0
        %v2581 = vand.u32 %v1960, 4294901760
        %v2582 = vsub.f32 %v1960, %v2581
        %v2583 = vand.u32 %v2582, 4294901760
        %v2584 = vsub.f32 %v2582, %v2583
        %v2585 = vand.u32 %v2584, 4294901760
        %2586 = vmatpush.msra.mxu0 %v2585
        %v2587 = vand.u32 %v1956, 4294901760
        %v2588 = vsub.f32 %v1956, %v2587
        %v2589 = vand.u32 %v2588, 4294901760
        %v2590 = vsub.f32 %v2588, %v2589
        %v2591 = vand.u32 %v2590, 4294901760
        %2592 = vmatpush.msra.mxu0 %v2591
        %v2593 = vand.u32 %v2538, 4294901760
        %2594 = vmatmul.f32.gmra.mxu0 %v2593
        %v2595 = vpop.f32.mrf.mxu0
        %v2596 = vadd.f32 %v2565, %v2595
        %2597 = vdwg.mxu0
        %2598 = vmatpush.msra.mxu0 0.0
        %2599 = vmatpush.msra.mxu0 0.0
        %2600 = vmatpush.msra.mxu0 0.0
        %2601 = vmatpush.msra.mxu0 0.0
        %2602 = vmatpush.msra.mxu0 0.0
        %2603 = vmatpush.msra.mxu0 0.0
        %2604 = vmatpush.msra.mxu0 0.0
        %2605 = vmatpush.msra.mxu0 0.0
        %2606 = vmatpush.msra.mxu0 0.0
        %2607 = vmatpush.msra.mxu0 0.0
        %2608 = vmatpush.msra.mxu0 0.0
        %2609 = vmatpush.msra.mxu0 0.0
        %2610 = vmatpush.msra.mxu0 0.0
        %2611 = vmatpush.msra.mxu0 0.0
        %v2612 = vand.u32 %v1960, 4294901760
        %v2613 = vsub.f32 %v1960, %v2612
        %2614 = vmatpush.msra.mxu0 %v2613
        %v2615 = vand.u32 %v1956, 4294901760
        %v2616 = vsub.f32 %v1956, %v2615
        %2617 = vmatpush.msra.mxu0 %v2616
        %v2618 = vand.u32 %v2538, 4294901760
        %v2619 = vsub.f32 %v2538, %v2618
        %2620 = vmatmul.f32.gmra.mxu0 %v2619
        %v2621 = vpop.f32.mrf.mxu0
        %v2622 = vadd.f32 %v2596, %v2621
        %2623 = vdwg.mxu0
        %2624 = vmatpush.msra.mxu0 0.0
        %2625 = vmatpush.msra.mxu0 0.0
        %2626 = vmatpush.msra.mxu0 0.0
        %2627 = vmatpush.msra.mxu0 0.0
        %2628 = vmatpush.msra.mxu0 0.0
        %2629 = vmatpush.msra.mxu0 0.0
        %2630 = vmatpush.msra.mxu0 0.0
        %2631 = vmatpush.msra.mxu0 0.0
        %2632 = vmatpush.msra.mxu0 0.0
        %2633 = vmatpush.msra.mxu0 0.0
        %2634 = vmatpush.msra.mxu0 0.0
        %2635 = vmatpush.msra.mxu0 0.0
        %2636 = vmatpush.msra.mxu0 0.0
        %2637 = vmatpush.msra.mxu0 0.0
        %v2638 = vand.u32 %v1960, 4294901760
        %2639 = vmatpush.msra.mxu0 %v2638
        %v2640 = vand.u32 %v1956, 4294901760
        %2641 = vmatpush.msra.mxu0 %v2640
        %v2642 = vand.u32 %v2538, 4294901760
        %v2643 = vsub.f32 %v2538, %v2642
        %v2644 = vand.u32 %v2643, 4294901760
        %2645 = vmatmul.f32.gmra.mxu0 %v2644
        %v2646 = vpop.f32.mrf.mxu0
        %v2647 = vadd.f32 %v2622, %v2646
        %2648 = vdwg.mxu0
        %2649 = vmatpush.msra.mxu0 0.0
        %2650 = vmatpush.msra.mxu0 0.0
        %2651 = vmatpush.msra.mxu0 0.0
        %2652 = vmatpush.msra.mxu0 0.0
        %2653 = vmatpush.msra.mxu0 0.0
        %2654 = vmatpush.msra.mxu0 0.0
        %2655 = vmatpush.msra.mxu0 0.0
        %2656 = vmatpush.msra.mxu0 0.0
        %2657 = vmatpush.msra.mxu0 0.0
        %2658 = vmatpush.msra.mxu0 0.0
        %2659 = vmatpush.msra.mxu0 0.0
        %2660 = vmatpush.msra.mxu0 0.0
        %2661 = vmatpush.msra.mxu0 0.0
        %2662 = vmatpush.msra.mxu0 0.0
        %v2663 = vand.u32 %v1960, 4294901760
        %v2664 = vsub.f32 %v1960, %v2663
        %v2665 = vand.u32 %v2664, 4294901760
        %2666 = vmatpush.msra.mxu0 %v2665
        %v2667 = vand.u32 %v1956, 4294901760
        %v2668 = vsub.f32 %v1956, %v2667
        %v2669 = vand.u32 %v2668, 4294901760
        %2670 = vmatpush.msra.mxu0 %v2669
        %v2671 = vand.u32 %v2538, 4294901760
        %2672 = vmatmul.f32.gmra.mxu0 %v2671
        %v2673 = vpop.f32.mrf.mxu0
        %v2674 = vadd.f32 %v2647, %v2673
        %2675 = vdwg.mxu0
        %2676 = vmatpush.msra.mxu0 0.0
        %2677 = vmatpush.msra.mxu0 0.0
        %2678 = vmatpush.msra.mxu0 0.0
        %2679 = vmatpush.msra.mxu0 0.0
        %2680 = vmatpush.msra.mxu0 0.0
        %2681 = vmatpush.msra.mxu0 0.0
        %2682 = vmatpush.msra.mxu0 0.0
        %2683 = vmatpush.msra.mxu0 0.0
        %2684 = vmatpush.msra.mxu0 0.0
        %2685 = vmatpush.msra.mxu0 0.0
        %2686 = vmatpush.msra.mxu0 0.0
        %2687 = vmatpush.msra.mxu0 0.0
        %2688 = vmatpush.msra.mxu0 0.0
        %2689 = vmatpush.msra.mxu0 0.0
        %v2690 = vand.u32 %v1960, 4294901760
        %2691 = vmatpush.msra.mxu0 %v2690
        %v2692 = vand.u32 %v1956, 4294901760
        %2693 = vmatpush.msra.mxu0 %v2692
        %v2694 = vand.u32 %v2538, 4294901760
        %2695 = vmatmul.f32.gmra.mxu0 %v2694
        %v2696 = vpop.f32.mrf.mxu0
        %v2697 = vadd.f32 %v2674, %v2696
        %2698 = vdwg.mxu0
        %v2699 = vmul.f32 %v2697, 0.25
        %vm2700 = vcmask 64512
        %v2701 = vsel %vm2700, %v2699, -inf
        %2702 = vmax.xlane.f32.xlu0 %v2701
        %v2703 = vpop.xlane.xlu0 %2702
        %v2704 = vsub.f32 %v2699, %v2703
        %v2705 = vmul.f32 %v2704, 1.442695
        %v2706 = vpow.pop %v2705
        %v2707 = vsel %vm2700, %v2706, 0.0
        %2708 = vadd.xlane.f32.xlu0 %v2707
        %v2709 = vpop.xlane.xlu0 %2708
        %v2710 = vrcp.pop %v2709
        %v2711 = vmul.f32 %v2706, %v2710
        %v2713 = vsel %vm2700, %v2474, 0
        %v2716 = vsel %vm2700, %v2478, 0
        %v2719 = vsel %vm2700, %v2711, 0
        %2721 = vmatpush.xpose.msra.mxu0 0.0
        %2722 = vmatpush.xpose.msra.mxu0 0.0
        %2723 = vmatpush.xpose.msra.mxu0 0.0
        %2724 = vmatpush.xpose.msra.mxu0 0.0
        %2725 = vmatpush.xpose.msra.mxu0 0.0
        %2726 = vmatpush.xpose.msra.mxu0 0.0
        %2727 = vmatpush.xpose.msra.mxu0 0.0
        %2728 = vmatpush.xpose.msra.mxu0 0.0
        %2729 = vmatpush.xpose.msra.mxu0 0.0
        %2730 = vmatpush.xpose.msra.mxu0 0.0
        %2731 = vmatpush.xpose.msra.mxu0 0.0
        %2732 = vmatpush.xpose.msra.mxu0 0.0
        %2733 = vmatpush.xpose.msra.mxu0 0.0
        %2734 = vmatpush.xpose.msra.mxu0 0.0
        %2735 = vmatpush.xpose.msra.mxu0 0.0
        %v2736 = vand.u32 %v2719, 4294901760
        %2737 = vmatpush.xpose.msra.mxu0 %v2736
        %v2738 = vand.u32 %v2713, 4294901760
        %v2739 = vsub.f32 %v2713, %v2738
        %v2740 = vand.u32 %v2739, 4294901760
        %v2741 = vsub.f32 %v2739, %v2740
        %v2742 = vand.u32 %v2741, 4294901760
        %2743 = vmatmul.f32.gmra.mxu0 %v2742
        %v2744 = vpop.f32.mrf.mxu0
        %v2745 = vadd.f32 0.0, %v2744
        %v2746 = vand.u32 %v2716, 4294901760
        %v2747 = vsub.f32 %v2716, %v2746
        %v2748 = vand.u32 %v2747, 4294901760
        %v2749 = vsub.f32 %v2747, %v2748
        %v2750 = vand.u32 %v2749, 4294901760
        %2751 = vmatmul.f32.gmra.mxu0 %v2750
        %v2752 = vpop.f32.mrf.mxu0
        %v2753 = vadd.f32 0.0, %v2752
        %2754 = vdwg.mxu0
        %2755 = vmatpush.xpose.msra.mxu0 0.0
        %2756 = vmatpush.xpose.msra.mxu0 0.0
        %2757 = vmatpush.xpose.msra.mxu0 0.0
        %2758 = vmatpush.xpose.msra.mxu0 0.0
        %2759 = vmatpush.xpose.msra.mxu0 0.0
        %2760 = vmatpush.xpose.msra.mxu0 0.0
        %2761 = vmatpush.xpose.msra.mxu0 0.0
        %2762 = vmatpush.xpose.msra.mxu0 0.0
        %2763 = vmatpush.xpose.msra.mxu0 0.0
        %2764 = vmatpush.xpose.msra.mxu0 0.0
        %2765 = vmatpush.xpose.msra.mxu0 0.0
        %2766 = vmatpush.xpose.msra.mxu0 0.0
        %2767 = vmatpush.xpose.msra.mxu0 0.0
        %2768 = vmatpush.xpose.msra.mxu0 0.0
        %2769 = vmatpush.xpose.msra.mxu0 0.0
        %v2770 = vand.u32 %v2719, 4294901760
        %v2771 = vsub.f32 %v2719, %v2770
        %v2772 = vand.u32 %v2771, 4294901760
        %v2773 = vsub.f32 %v2771, %v2772
        %v2774 = vand.u32 %v2773, 4294901760
        %2775 = vmatpush.xpose.msra.mxu0 %v2774
        %v2776 = vand.u32 %v2713, 4294901760
        %2777 = vmatmul.f32.gmra.mxu0 %v2776
        %v2778 = vpop.f32.mrf.mxu0
        %v2779 = vadd.f32 %v2745, %v2778
        %v2780 = vand.u32 %v2716, 4294901760
        %2781 = vmatmul.f32.gmra.mxu0 %v2780
        %v2782 = vpop.f32.mrf.mxu0
        %v2783 = vadd.f32 %v2753, %v2782
        %2784 = vdwg.mxu0
        %2785 = vmatpush.xpose.msra.mxu0 0.0
        %2786 = vmatpush.xpose.msra.mxu0 0.0
        %2787 = vmatpush.xpose.msra.mxu0 0.0
        %2788 = vmatpush.xpose.msra.mxu0 0.0
        %2789 = vmatpush.xpose.msra.mxu0 0.0
        %2790 = vmatpush.xpose.msra.mxu0 0.0
        %2791 = vmatpush.xpose.msra.mxu0 0.0
        %2792 = vmatpush.xpose.msra.mxu0 0.0
        %2793 = vmatpush.xpose.msra.mxu0 0.0
        %2794 = vmatpush.xpose.msra.mxu0 0.0
        %2795 = vmatpush.xpose.msra.mxu0 0.0
        %2796 = vmatpush.xpose.msra.mxu0 0.0
        %2797 = vmatpush.xpose.msra.mxu0 0.0
        %2798 = vmatpush.xpose.msra.mxu0 0.0
        %2799 = vmatpush.xpose.msra.mxu0 0.0
        %v2800 = vand.u32 %v2719, 4294901760
        %v2801 = vsub.f32 %v2719, %v2800
        %2802 = vmatpush.xpose.msra.mxu0 %v2801
        %v2803 = vand.u32 %v2713, 4294901760
        %v2804 = vsub.f32 %v2713, %v2803
        %2805 = vmatmul.f32.gmra.mxu0 %v2804
        %v2806 = vpop.f32.mrf.mxu0
        %v2807 = vadd.f32 %v2779, %v2806
        %v2808 = vand.u32 %v2716, 4294901760
        %v2809 = vsub.f32 %v2716, %v2808
        %2810 = vmatmul.f32.gmra.mxu0 %v2809
        %v2811 = vpop.f32.mrf.mxu0
        %v2812 = vadd.f32 %v2783, %v2811
        %2813 = vdwg.mxu0
        %2814 = vmatpush.xpose.msra.mxu0 0.0
        %2815 = vmatpush.xpose.msra.mxu0 0.0
        %2816 = vmatpush.xpose.msra.mxu0 0.0
        %2817 = vmatpush.xpose.msra.mxu0 0.0
        %2818 = vmatpush.xpose.msra.mxu0 0.0
        %2819 = vmatpush.xpose.msra.mxu0 0.0
        %2820 = vmatpush.xpose.msra.mxu0 0.0
        %2821 = vmatpush.xpose.msra.mxu0 0.0
        %2822 = vmatpush.xpose.msra.mxu0 0.0
        %2823 = vmatpush.xpose.msra.mxu0 0.0
        %2824 = vmatpush.xpose.msra.mxu0 0.0
        %2825 = vmatpush.xpose.msra.mxu0 0.0
        %2826 = vmatpush.xpose.msra.mxu0 0.0
        %2827 = vmatpush.xpose.msra.mxu0 0.0
        %2828 = vmatpush.xpose.msra.mxu0 0.0
        %v2829 = vand.u32 %v2719, 4294901760
        %2830 = vmatpush.xpose.msra.mxu0 %v2829
        %v2831 = vand.u32 %v2713, 4294901760
        %v2832 = vsub.f32 %v2713, %v2831
        %v2833 = vand.u32 %v2832, 4294901760
        %2834 = vmatmul.f32.gmra.mxu0 %v2833
        %v2835 = vpop.f32.mrf.mxu0
        %v2836 = vadd.f32 %v2807, %v2835
        %v2837 = vand.u32 %v2716, 4294901760
        %v2838 = vsub.f32 %v2716, %v2837
        %v2839 = vand.u32 %v2838, 4294901760
        %2840 = vmatmul.f32.gmra.mxu0 %v2839
        %v2841 = vpop.f32.mrf.mxu0
        %v2842 = vadd.f32 %v2812, %v2841
        %2843 = vdwg.mxu0
        %2844 = vmatpush.xpose.msra.mxu0 0.0
        %2845 = vmatpush.xpose.msra.mxu0 0.0
        %2846 = vmatpush.xpose.msra.mxu0 0.0
        %2847 = vmatpush.xpose.msra.mxu0 0.0
        %2848 = vmatpush.xpose.msra.mxu0 0.0
        %2849 = vmatpush.xpose.msra.mxu0 0.0
        %2850 = vmatpush.xpose.msra.mxu0 0.0
        %2851 = vmatpush.xpose.msra.mxu0 0.0
        %2852 = vmatpush.xpose.msra.mxu0 0.0
        %2853 = vmatpush.xpose.msra.mxu0 0.0
        %2854 = vmatpush.xpose.msra.mxu0 0.0
        %2855 = vmatpush.xpose.msra.mxu0 0.0
        %2856 = vmatpush.xpose.msra.mxu0 0.0
        %2857 = vmatpush.xpose.msra.mxu0 0.0
        %2858 = vmatpush.xpose.msra.mxu0 0.0
        %v2859 = vand.u32 %v2719, 4294901760
        %v2860 = vsub.f32 %v2719, %v2859
        %v2861 = vand.u32 %v2860, 4294901760
        %2862 = vmatpush.xpose.msra.mxu0 %v2861
        %v2863 = vand.u32 %v2713, 4294901760
        %2864 = vmatmul.f32.gmra.mxu0 %v2863
        %v2865 = vpop.f32.mrf.mxu0
        %v2866 = vadd.f32 %v2836, %v2865
        %v2867 = vand.u32 %v2716, 4294901760
        %2868 = vmatmul.f32.gmra.mxu0 %v2867
        %v2869 = vpop.f32.mrf.mxu0
        %v2870 = vadd.f32 %v2842, %v2869
        %2871 = vdwg.mxu0
        %2872 = vmatpush.xpose.msra.mxu0 0.0
        %2873 = vmatpush.xpose.msra.mxu0 0.0
        %2874 = vmatpush.xpose.msra.mxu0 0.0
        %2875 = vmatpush.xpose.msra.mxu0 0.0
        %2876 = vmatpush.xpose.msra.mxu0 0.0
        %2877 = vmatpush.xpose.msra.mxu0 0.0
        %2878 = vmatpush.xpose.msra.mxu0 0.0
        %2879 = vmatpush.xpose.msra.mxu0 0.0
        %2880 = vmatpush.xpose.msra.mxu0 0.0
        %2881 = vmatpush.xpose.msra.mxu0 0.0
        %2882 = vmatpush.xpose.msra.mxu0 0.0
        %2883 = vmatpush.xpose.msra.mxu0 0.0
        %2884 = vmatpush.xpose.msra.mxu0 0.0
        %2885 = vmatpush.xpose.msra.mxu0 0.0
        %2886 = vmatpush.xpose.msra.mxu0 0.0
        %v2887 = vand.u32 %v2719, 4294901760
        %2888 = vmatpush.xpose.msra.mxu0 %v2887
        %v2889 = vand.u32 %v2713, 4294901760
        %2890 = vmatmul.f32.gmra.mxu0 %v2889
        %v2891 = vpop.f32.mrf.mxu0
        %v2892 = vadd.f32 %v2866, %v2891
        %v2893 = vand.u32 %v2716, 4294901760
        %2894 = vmatmul.f32.gmra.mxu0 %v2893
        %v2895 = vpop.f32.mrf.mxu0
        %v2896 = vadd.f32 %v2870, %v2895
        %2897 = vdwg.mxu0
        %2898 = vxpose.xlu0.b32.start [1/16] %v1245, 128
        %2899 = vxpose.xlu0.b32.cont [2/16] %v1249, 128
        %2900 = vxpose.xlu0.b32.cont [3/16] 0.0, 128
        %2901 = vxpose.xlu0.b32.cont [4/16] 0.0, 128
        %2902 = vxpose.xlu0.b32.cont [5/16] 0.0, 128
        %2903 = vxpose.xlu0.b32.cont [6/16] 0.0, 128
        %2904 = vxpose.xlu0.b32.cont [7/16] 0.0, 128
        %2905 = vxpose.xlu0.b32.cont [8/16] 0.0, 128
        %2906 = vxpose.xlu0.b32.cont [9/16] 0.0, 128
        %2907 = vxpose.xlu0.b32.cont [10/16] 0.0, 128
        %2908 = vxpose.xlu0.b32.cont [11/16] 0.0, 128
        %2909 = vxpose.xlu0.b32.cont [12/16] 0.0, 128
        %2910 = vxpose.xlu0.b32.cont [13/16] 0.0, 128
        %2911 = vxpose.xlu0.b32.cont [14/16] 0.0, 128
        %2912 = vxpose.xlu0.b32.cont [15/16] 0.0, 128
        %2913 = vxpose.xlu0.b32.end [16/16] 0.0, 128
        %v2914 = vpop.trf.xlu0
        %v2915 = vpop.trf.xlu0
        %v2916 = vpop.trf.xlu0
        %v2917 = vpop.trf.xlu0
        %v2918 = vpop.trf.xlu0
        %v2919 = vpop.trf.xlu0
        %v2920 = vpop.trf.xlu0
        %v2921 = vpop.trf.xlu0
        %v2922 = vpop.trf.xlu0
        %v2923 = vpop.trf.xlu0
        %v2924 = vpop.trf.xlu0
        %v2925 = vpop.trf.xlu0
        %v2926 = vpop.trf.xlu0
        %v2927 = vpop.trf.xlu0
        %v2928 = vpop.trf.xlu0
        %v2929 = vpop.trf.xlu0
        %v2931 = vsel %vm2536, %v2914, 0
        %2933 = vmatpush.msra.mxu0 0.0
        %2934 = vmatpush.msra.mxu0 0.0
        %2935 = vmatpush.msra.mxu0 0.0
        %2936 = vmatpush.msra.mxu0 0.0
        %2937 = vmatpush.msra.mxu0 0.0
        %2938 = vmatpush.msra.mxu0 0.0
        %2939 = vmatpush.msra.mxu0 0.0
        %2940 = vmatpush.msra.mxu0 0.0
        %2941 = vmatpush.msra.mxu0 0.0
        %2942 = vmatpush.msra.mxu0 0.0
        %2943 = vmatpush.msra.mxu0 0.0
        %2944 = vmatpush.msra.mxu0 0.0
        %2945 = vmatpush.msra.mxu0 0.0
        %2946 = vmatpush.msra.mxu0 0.0
        %v2947 = vand.u32 %v1968, 4294901760
        %2948 = vmatpush.msra.mxu0 %v2947
        %v2949 = vand.u32 %v1964, 4294901760
        %2950 = vmatpush.msra.mxu0 %v2949
        %v2951 = vand.u32 %v2931, 4294901760
        %v2952 = vsub.f32 %v2931, %v2951
        %v2953 = vand.u32 %v2952, 4294901760
        %v2954 = vsub.f32 %v2952, %v2953
        %v2955 = vand.u32 %v2954, 4294901760
        %2956 = vmatmul.f32.gmra.mxu0 %v2955
        %v2957 = vpop.f32.mrf.mxu0
        %v2958 = vadd.f32 0.0, %v2957
        %2959 = vdwg.mxu0
        %2960 = vmatpush.msra.mxu0 0.0
        %2961 = vmatpush.msra.mxu0 0.0
        %2962 = vmatpush.msra.mxu0 0.0
        %2963 = vmatpush.msra.mxu0 0.0
        %2964 = vmatpush.msra.mxu0 0.0
        %2965 = vmatpush.msra.mxu0 0.0
        %2966 = vmatpush.msra.mxu0 0.0
        %2967 = vmatpush.msra.mxu0 0.0
        %2968 = vmatpush.msra.mxu0 0.0
        %2969 = vmatpush.msra.mxu0 0.0
        %2970 = vmatpush.msra.mxu0 0.0
        %2971 = vmatpush.msra.mxu0 0.0
        %2972 = vmatpush.msra.mxu0 0.0
        %2973 = vmatpush.msra.mxu0 0.0
        %v2974 = vand.u32 %v1968, 4294901760
        %v2975 = vsub.f32 %v1968, %v2974
        %v2976 = vand.u32 %v2975, 4294901760
        %v2977 = vsub.f32 %v2975, %v2976
        %v2978 = vand.u32 %v2977, 4294901760
        %2979 = vmatpush.msra.mxu0 %v2978
        %v2980 = vand.u32 %v1964, 4294901760
        %v2981 = vsub.f32 %v1964, %v2980
        %v2982 = vand.u32 %v2981, 4294901760
        %v2983 = vsub.f32 %v2981, %v2982
        %v2984 = vand.u32 %v2983, 4294901760
        %2985 = vmatpush.msra.mxu0 %v2984
        %v2986 = vand.u32 %v2931, 4294901760
        %2987 = vmatmul.f32.gmra.mxu0 %v2986
        %v2988 = vpop.f32.mrf.mxu0
        %v2989 = vadd.f32 %v2958, %v2988
        %2990 = vdwg.mxu0
        %2991 = vmatpush.msra.mxu0 0.0
        %2992 = vmatpush.msra.mxu0 0.0
        %2993 = vmatpush.msra.mxu0 0.0
        %2994 = vmatpush.msra.mxu0 0.0
        %2995 = vmatpush.msra.mxu0 0.0
        %2996 = vmatpush.msra.mxu0 0.0
        %2997 = vmatpush.msra.mxu0 0.0
        %2998 = vmatpush.msra.mxu0 0.0
        %2999 = vmatpush.msra.mxu0 0.0
        %3000 = vmatpush.msra.mxu0 0.0
        %3001 = vmatpush.msra.mxu0 0.0
        %3002 = vmatpush.msra.mxu0 0.0
        %3003 = vmatpush.msra.mxu0 0.0
        %3004 = vmatpush.msra.mxu0 0.0
        %v3005 = vand.u32 %v1968, 4294901760
        %v3006 = vsub.f32 %v1968, %v3005
        %3007 = vmatpush.msra.mxu0 %v3006
        %v3008 = vand.u32 %v1964, 4294901760
        %v3009 = vsub.f32 %v1964, %v3008
        %3010 = vmatpush.msra.mxu0 %v3009
        %v3011 = vand.u32 %v2931, 4294901760
        %v3012 = vsub.f32 %v2931, %v3011
        %3013 = vmatmul.f32.gmra.mxu0 %v3012
        %v3014 = vpop.f32.mrf.mxu0
        %v3015 = vadd.f32 %v2989, %v3014
        %3016 = vdwg.mxu0
        %3017 = vmatpush.msra.mxu0 0.0
        %3018 = vmatpush.msra.mxu0 0.0
        %3019 = vmatpush.msra.mxu0 0.0
        %3020 = vmatpush.msra.mxu0 0.0
        %3021 = vmatpush.msra.mxu0 0.0
        %3022 = vmatpush.msra.mxu0 0.0
        %3023 = vmatpush.msra.mxu0 0.0
        %3024 = vmatpush.msra.mxu0 0.0
        %3025 = vmatpush.msra.mxu0 0.0
        %3026 = vmatpush.msra.mxu0 0.0
        %3027 = vmatpush.msra.mxu0 0.0
        %3028 = vmatpush.msra.mxu0 0.0
        %3029 = vmatpush.msra.mxu0 0.0
        %3030 = vmatpush.msra.mxu0 0.0
        %v3031 = vand.u32 %v1968, 4294901760
        %3032 = vmatpush.msra.mxu0 %v3031
        %v3033 = vand.u32 %v1964, 4294901760
        %3034 = vmatpush.msra.mxu0 %v3033
        %v3035 = vand.u32 %v2931, 4294901760
        %v3036 = vsub.f32 %v2931, %v3035
        %v3037 = vand.u32 %v3036, 4294901760
        %3038 = vmatmul.f32.gmra.mxu0 %v3037
        %v3039 = vpop.f32.mrf.mxu0
        %v3040 = vadd.f32 %v3015, %v3039
        %3041 = vdwg.mxu0
        %3042 = vmatpush.msra.mxu0 0.0
        %3043 = vmatpush.msra.mxu0 0.0
        %3044 = vmatpush.msra.mxu0 0.0
        %3045 = vmatpush.msra.mxu0 0.0
        %3046 = vmatpush.msra.mxu0 0.0
        %3047 = vmatpush.msra.mxu0 0.0
        %3048 = vmatpush.msra.mxu0 0.0
        %3049 = vmatpush.msra.mxu0 0.0
        %3050 = vmatpush.msra.mxu0 0.0
        %3051 = vmatpush.msra.mxu0 0.0
        %3052 = vmatpush.msra.mxu0 0.0
        %3053 = vmatpush.msra.mxu0 0.0
        %3054 = vmatpush.msra.mxu0 0.0
        %3055 = vmatpush.msra.mxu0 0.0
        %v3056 = vand.u32 %v1968, 4294901760
        %v3057 = vsub.f32 %v1968, %v3056
        %v3058 = vand.u32 %v3057, 4294901760
        %3059 = vmatpush.msra.mxu0 %v3058
        %v3060 = vand.u32 %v1964, 4294901760
        %v3061 = vsub.f32 %v1964, %v3060
        %v3062 = vand.u32 %v3061, 4294901760
        %3063 = vmatpush.msra.mxu0 %v3062
        %v3064 = vand.u32 %v2931, 4294901760
        %3065 = vmatmul.f32.gmra.mxu0 %v3064
        %v3066 = vpop.f32.mrf.mxu0
        %v3067 = vadd.f32 %v3040, %v3066
        %3068 = vdwg.mxu0
        %3069 = vmatpush.msra.mxu0 0.0
        %3070 = vmatpush.msra.mxu0 0.0
        %3071 = vmatpush.msra.mxu0 0.0
        %3072 = vmatpush.msra.mxu0 0.0
        %3073 = vmatpush.msra.mxu0 0.0
        %3074 = vmatpush.msra.mxu0 0.0
        %3075 = vmatpush.msra.mxu0 0.0
        %3076 = vmatpush.msra.mxu0 0.0
        %3077 = vmatpush.msra.mxu0 0.0
        %3078 = vmatpush.msra.mxu0 0.0
        %3079 = vmatpush.msra.mxu0 0.0
        %3080 = vmatpush.msra.mxu0 0.0
        %3081 = vmatpush.msra.mxu0 0.0
        %3082 = vmatpush.msra.mxu0 0.0
        %v3083 = vand.u32 %v1968, 4294901760
        %3084 = vmatpush.msra.mxu0 %v3083
        %v3085 = vand.u32 %v1964, 4294901760
        %3086 = vmatpush.msra.mxu0 %v3085
        %v3087 = vand.u32 %v2931, 4294901760
        %3088 = vmatmul.f32.gmra.mxu0 %v3087
        %v3089 = vpop.f32.mrf.mxu0
        %v3090 = vadd.f32 %v3067, %v3089
        %3091 = vdwg.mxu0
        %v3092 = vmul.f32 %v3090, 0.25
        %v3093 = vsel %vm2700, %v3092, -inf
        %3094 = vmax.xlane.f32.xlu0 %v3093
        %v3095 = vpop.xlane.xlu0 %3094
        %v3096 = vsub.f32 %v3092, %v3095
        %v3097 = vmul.f32 %v3096, 1.442695
        %v3098 = vpow.pop %v3097
        %v3099 = vsel %vm2700, %v3098, 0.0
        %3100 = vadd.xlane.f32.xlu0 %v3099
        %v3101 = vpop.xlane.xlu0 %3100
        %v3102 = vrcp.pop %v3101
        %v3103 = vmul.f32 %v3098, %v3102
        %v3105 = vsel %vm2700, %v2482, 0
        %v3108 = vsel %vm2700, %v2486, 0
        %v3111 = vsel %vm2700, %v3103, 0
        %3113 = vmatpush.xpose.msra.mxu0 0.0
        %3114 = vmatpush.xpose.msra.mxu0 0.0
        %3115 = vmatpush.xpose.msra.mxu0 0.0
        %3116 = vmatpush.xpose.msra.mxu0 0.0
        %3117 = vmatpush.xpose.msra.mxu0 0.0
        %3118 = vmatpush.xpose.msra.mxu0 0.0
        %3119 = vmatpush.xpose.msra.mxu0 0.0
        %3120 = vmatpush.xpose.msra.mxu0 0.0
        %3121 = vmatpush.xpose.msra.mxu0 0.0
        %3122 = vmatpush.xpose.msra.mxu0 0.0
        %3123 = vmatpush.xpose.msra.mxu0 0.0
        %3124 = vmatpush.xpose.msra.mxu0 0.0
        %3125 = vmatpush.xpose.msra.mxu0 0.0
        %3126 = vmatpush.xpose.msra.mxu0 0.0
        %3127 = vmatpush.xpose.msra.mxu0 0.0
        %v3128 = vand.u32 %v3111, 4294901760
        %3129 = vmatpush.xpose.msra.mxu0 %v3128
        %v3130 = vand.u32 %v3105, 4294901760
        %v3131 = vsub.f32 %v3105, %v3130
        %v3132 = vand.u32 %v3131, 4294901760
        %v3133 = vsub.f32 %v3131, %v3132
        %v3134 = vand.u32 %v3133, 4294901760
        %3135 = vmatmul.f32.gmra.mxu0 %v3134
        %v3136 = vpop.f32.mrf.mxu0
        %v3137 = vadd.f32 0.0, %v3136
        %v3138 = vand.u32 %v3108, 4294901760
        %v3139 = vsub.f32 %v3108, %v3138
        %v3140 = vand.u32 %v3139, 4294901760
        %v3141 = vsub.f32 %v3139, %v3140
        %v3142 = vand.u32 %v3141, 4294901760
        %3143 = vmatmul.f32.gmra.mxu0 %v3142
        %v3144 = vpop.f32.mrf.mxu0
        %v3145 = vadd.f32 0.0, %v3144
        %3146 = vdwg.mxu0
        %3147 = vmatpush.xpose.msra.mxu0 0.0
        %3148 = vmatpush.xpose.msra.mxu0 0.0
        %3149 = vmatpush.xpose.msra.mxu0 0.0
        %3150 = vmatpush.xpose.msra.mxu0 0.0
        %3151 = vmatpush.xpose.msra.mxu0 0.0
        %3152 = vmatpush.xpose.msra.mxu0 0.0
        %3153 = vmatpush.xpose.msra.mxu0 0.0
        %3154 = vmatpush.xpose.msra.mxu0 0.0
        %3155 = vmatpush.xpose.msra.mxu0 0.0
        %3156 = vmatpush.xpose.msra.mxu0 0.0
        %3157 = vmatpush.xpose.msra.mxu0 0.0
        %3158 = vmatpush.xpose.msra.mxu0 0.0
        %3159 = vmatpush.xpose.msra.mxu0 0.0
        %3160 = vmatpush.xpose.msra.mxu0 0.0
        %3161 = vmatpush.xpose.msra.mxu0 0.0
        %v3162 = vand.u32 %v3111, 4294901760
        %v3163 = vsub.f32 %v3111, %v3162
        %v3164 = vand.u32 %v3163, 4294901760
        %v3165 = vsub.f32 %v3163, %v3164
        %v3166 = vand.u32 %v3165, 4294901760
        %3167 = vmatpush.xpose.msra.mxu0 %v3166
        %v3168 = vand.u32 %v3105, 4294901760
        %3169 = vmatmul.f32.gmra.mxu0 %v3168
        %v3170 = vpop.f32.mrf.mxu0
        %v3171 = vadd.f32 %v3137, %v3170
        %v3172 = vand.u32 %v3108, 4294901760
        %3173 = vmatmul.f32.gmra.mxu0 %v3172
        %v3174 = vpop.f32.mrf.mxu0
        %v3175 = vadd.f32 %v3145, %v3174
        %3176 = vdwg.mxu0
        %3177 = vmatpush.xpose.msra.mxu0 0.0
        %3178 = vmatpush.xpose.msra.mxu0 0.0
        %3179 = vmatpush.xpose.msra.mxu0 0.0
        %3180 = vmatpush.xpose.msra.mxu0 0.0
        %3181 = vmatpush.xpose.msra.mxu0 0.0
        %3182 = vmatpush.xpose.msra.mxu0 0.0
        %3183 = vmatpush.xpose.msra.mxu0 0.0
        %3184 = vmatpush.xpose.msra.mxu0 0.0
        %3185 = vmatpush.xpose.msra.mxu0 0.0
        %3186 = vmatpush.xpose.msra.mxu0 0.0
        %3187 = vmatpush.xpose.msra.mxu0 0.0
        %3188 = vmatpush.xpose.msra.mxu0 0.0
        %3189 = vmatpush.xpose.msra.mxu0 0.0
        %3190 = vmatpush.xpose.msra.mxu0 0.0
        %3191 = vmatpush.xpose.msra.mxu0 0.0
        %v3192 = vand.u32 %v3111, 4294901760
        %v3193 = vsub.f32 %v3111, %v3192
        %3194 = vmatpush.xpose.msra.mxu0 %v3193
        %v3195 = vand.u32 %v3105, 4294901760
        %v3196 = vsub.f32 %v3105, %v3195
        %3197 = vmatmul.f32.gmra.mxu0 %v3196
        %v3198 = vpop.f32.mrf.mxu0
        %v3199 = vadd.f32 %v3171, %v3198
        %v3200 = vand.u32 %v3108, 4294901760
        %v3201 = vsub.f32 %v3108, %v3200
        %3202 = vmatmul.f32.gmra.mxu0 %v3201
        %v3203 = vpop.f32.mrf.mxu0
        %v3204 = vadd.f32 %v3175, %v3203
        %3205 = vdwg.mxu0
        %3206 = vmatpush.xpose.msra.mxu0 0.0
        %3207 = vmatpush.xpose.msra.mxu0 0.0
        %3208 = vmatpush.xpose.msra.mxu0 0.0
        %3209 = vmatpush.xpose.msra.mxu0 0.0
        %3210 = vmatpush.xpose.msra.mxu0 0.0
        %3211 = vmatpush.xpose.msra.mxu0 0.0
        %3212 = vmatpush.xpose.msra.mxu0 0.0
        %3213 = vmatpush.xpose.msra.mxu0 0.0
        %3214 = vmatpush.xpose.msra.mxu0 0.0
        %3215 = vmatpush.xpose.msra.mxu0 0.0
        %3216 = vmatpush.xpose.msra.mxu0 0.0
        %3217 = vmatpush.xpose.msra.mxu0 0.0
        %3218 = vmatpush.xpose.msra.mxu0 0.0
        %3219 = vmatpush.xpose.msra.mxu0 0.0
        %3220 = vmatpush.xpose.msra.mxu0 0.0
        %v3221 = vand.u32 %v3111, 4294901760
        %3222 = vmatpush.xpose.msra.mxu0 %v3221
        %v3223 = vand.u32 %v3105, 4294901760
        %v3224 = vsub.f32 %v3105, %v3223
        %v3225 = vand.u32 %v3224, 4294901760
        %3226 = vmatmul.f32.gmra.mxu0 %v3225
        %v3227 = vpop.f32.mrf.mxu0
        %v3228 = vadd.f32 %v3199, %v3227
        %v3229 = vand.u32 %v3108, 4294901760
        %v3230 = vsub.f32 %v3108, %v3229
        %v3231 = vand.u32 %v3230, 4294901760
        %3232 = vmatmul.f32.gmra.mxu0 %v3231
        %v3233 = vpop.f32.mrf.mxu0
        %v3234 = vadd.f32 %v3204, %v3233
        %3235 = vdwg.mxu0
        %3236 = vmatpush.xpose.msra.mxu0 0.0
        %3237 = vmatpush.xpose.msra.mxu0 0.0
        %3238 = vmatpush.xpose.msra.mxu0 0.0
        %3239 = vmatpush.xpose.msra.mxu0 0.0
        %3240 = vmatpush.xpose.msra.mxu0 0.0
        %3241 = vmatpush.xpose.msra.mxu0 0.0
        %3242 = vmatpush.xpose.msra.mxu0 0.0
        %3243 = vmatpush.xpose.msra.mxu0 0.0
        %3244 = vmatpush.xpose.msra.mxu0 0.0
        %3245 = vmatpush.xpose.msra.mxu0 0.0
        %3246 = vmatpush.xpose.msra.mxu0 0.0
        %3247 = vmatpush.xpose.msra.mxu0 0.0
        %3248 = vmatpush.xpose.msra.mxu0 0.0
        %3249 = vmatpush.xpose.msra.mxu0 0.0
        %3250 = vmatpush.xpose.msra.mxu0 0.0
        %v3251 = vand.u32 %v3111, 4294901760
        %v3252 = vsub.f32 %v3111, %v3251
        %v3253 = vand.u32 %v3252, 4294901760
        %3254 = vmatpush.xpose.msra.mxu0 %v3253
        %v3255 = vand.u32 %v3105, 4294901760
        %3256 = vmatmul.f32.gmra.mxu0 %v3255
        %v3257 = vpop.f32.mrf.mxu0
        %v3258 = vadd.f32 %v3228, %v3257
        %v3259 = vand.u32 %v3108, 4294901760
        %3260 = vmatmul.f32.gmra.mxu0 %v3259
        %v3261 = vpop.f32.mrf.mxu0
        %v3262 = vadd.f32 %v3234, %v3261
        %3263 = vdwg.mxu0
        %3264 = vmatpush.xpose.msra.mxu0 0.0
        %3265 = vmatpush.xpose.msra.mxu0 0.0
        %3266 = vmatpush.xpose.msra.mxu0 0.0
        %3267 = vmatpush.xpose.msra.mxu0 0.0
        %3268 = vmatpush.xpose.msra.mxu0 0.0
        %3269 = vmatpush.xpose.msra.mxu0 0.0
        %3270 = vmatpush.xpose.msra.mxu0 0.0
        %3271 = vmatpush.xpose.msra.mxu0 0.0
        %3272 = vmatpush.xpose.msra.mxu0 0.0
        %3273 = vmatpush.xpose.msra.mxu0 0.0
        %3274 = vmatpush.xpose.msra.mxu0 0.0
        %3275 = vmatpush.xpose.msra.mxu0 0.0
        %3276 = vmatpush.xpose.msra.mxu0 0.0
        %3277 = vmatpush.xpose.msra.mxu0 0.0
        %3278 = vmatpush.xpose.msra.mxu0 0.0
        %v3279 = vand.u32 %v3111, 4294901760
        %3280 = vmatpush.xpose.msra.mxu0 %v3279
        %v3281 = vand.u32 %v3105, 4294901760
        %3282 = vmatmul.f32.gmra.mxu0 %v3281
        %v3283 = vpop.f32.mrf.mxu0
        %v3284 = vadd.f32 %v3258, %v3283
        %v3285 = vand.u32 %v3108, 4294901760
        %3286 = vmatmul.f32.gmra.mxu0 %v3285
        %v3287 = vpop.f32.mrf.mxu0
        %v3288 = vadd.f32 %v3262, %v3287
        %3289 = vdwg.mxu0
        %3290 = vxpose.xlu0.b32.start [1/16] %v1253, 128
        %3291 = vxpose.xlu0.b32.cont [2/16] %v1257, 128
        %3292 = vxpose.xlu0.b32.cont [3/16] 0.0, 128
        %3293 = vxpose.xlu0.b32.cont [4/16] 0.0, 128
        %3294 = vxpose.xlu0.b32.cont [5/16] 0.0, 128
        %3295 = vxpose.xlu0.b32.cont [6/16] 0.0, 128
        %3296 = vxpose.xlu0.b32.cont [7/16] 0.0, 128
        %3297 = vxpose.xlu0.b32.cont [8/16] 0.0, 128
        %3298 = vxpose.xlu0.b32.cont [9/16] 0.0, 128
        %3299 = vxpose.xlu0.b32.cont [10/16] 0.0, 128
        %3300 = vxpose.xlu0.b32.cont [11/16] 0.0, 128
        %3301 = vxpose.xlu0.b32.cont [12/16] 0.0, 128
        %3302 = vxpose.xlu0.b32.cont [13/16] 0.0, 128
        %3303 = vxpose.xlu0.b32.cont [14/16] 0.0, 128
        %3304 = vxpose.xlu0.b32.cont [15/16] 0.0, 128
        %3305 = vxpose.xlu0.b32.end [16/16] 0.0, 128
        %v3306 = vpop.trf.xlu0
        %v3307 = vpop.trf.xlu0
        %v3308 = vpop.trf.xlu0
        %v3309 = vpop.trf.xlu0
        %v3310 = vpop.trf.xlu0
        %v3311 = vpop.trf.xlu0
        %v3312 = vpop.trf.xlu0
        %v3313 = vpop.trf.xlu0
        %v3314 = vpop.trf.xlu0
        %v3315 = vpop.trf.xlu0
        %v3316 = vpop.trf.xlu0
        %v3317 = vpop.trf.xlu0
        %v3318 = vpop.trf.xlu0
        %v3319 = vpop.trf.xlu0
        %v3320 = vpop.trf.xlu0
        %v3321 = vpop.trf.xlu0
        %v3323 = vsel %vm2536, %v3306, 0
        %3325 = vmatpush.msra.mxu0 0.0
        %3326 = vmatpush.msra.mxu0 0.0
        %3327 = vmatpush.msra.mxu0 0.0
        %3328 = vmatpush.msra.mxu0 0.0
        %3329 = vmatpush.msra.mxu0 0.0
        %3330 = vmatpush.msra.mxu0 0.0
        %3331 = vmatpush.msra.mxu0 0.0
        %3332 = vmatpush.msra.mxu0 0.0
        %3333 = vmatpush.msra.mxu0 0.0
        %3334 = vmatpush.msra.mxu0 0.0
        %3335 = vmatpush.msra.mxu0 0.0
        %3336 = vmatpush.msra.mxu0 0.0
        %3337 = vmatpush.msra.mxu0 0.0
        %3338 = vmatpush.msra.mxu0 0.0
        %v3339 = vand.u32 %v1976, 4294901760
        %3340 = vmatpush.msra.mxu0 %v3339
        %v3341 = vand.u32 %v1972, 4294901760
        %3342 = vmatpush.msra.mxu0 %v3341
        %v3343 = vand.u32 %v3323, 4294901760
        %v3344 = vsub.f32 %v3323, %v3343
        %v3345 = vand.u32 %v3344, 4294901760
        %v3346 = vsub.f32 %v3344, %v3345
        %v3347 = vand.u32 %v3346, 4294901760
        %3348 = vmatmul.f32.gmra.mxu0 %v3347
        %v3349 = vpop.f32.mrf.mxu0
        %v3350 = vadd.f32 0.0, %v3349
        %3351 = vdwg.mxu0
        %3352 = vmatpush.msra.mxu0 0.0
        %3353 = vmatpush.msra.mxu0 0.0
        %3354 = vmatpush.msra.mxu0 0.0
        %3355 = vmatpush.msra.mxu0 0.0
        %3356 = vmatpush.msra.mxu0 0.0
        %3357 = vmatpush.msra.mxu0 0.0
        %3358 = vmatpush.msra.mxu0 0.0
        %3359 = vmatpush.msra.mxu0 0.0
        %3360 = vmatpush.msra.mxu0 0.0
        %3361 = vmatpush.msra.mxu0 0.0
        %3362 = vmatpush.msra.mxu0 0.0
        %3363 = vmatpush.msra.mxu0 0.0
        %3364 = vmatpush.msra.mxu0 0.0
        %3365 = vmatpush.msra.mxu0 0.0
        %v3366 = vand.u32 %v1976, 4294901760
        %v3367 = vsub.f32 %v1976, %v3366
        %v3368 = vand.u32 %v3367, 4294901760
        %v3369 = vsub.f32 %v3367, %v3368
        %v3370 = vand.u32 %v3369, 4294901760
        %3371 = vmatpush.msra.mxu0 %v3370
        %v3372 = vand.u32 %v1972, 4294901760
        %v3373 = vsub.f32 %v1972, %v3372
        %v3374 = vand.u32 %v3373, 4294901760
        %v3375 = vsub.f32 %v3373, %v3374
        %v3376 = vand.u32 %v3375, 4294901760
        %3377 = vmatpush.msra.mxu0 %v3376
        %v3378 = vand.u32 %v3323, 4294901760
        %3379 = vmatmul.f32.gmra.mxu0 %v3378
        %v3380 = vpop.f32.mrf.mxu0
        %v3381 = vadd.f32 %v3350, %v3380
        %3382 = vdwg.mxu0
        %3383 = vmatpush.msra.mxu0 0.0
        %3384 = vmatpush.msra.mxu0 0.0
        %3385 = vmatpush.msra.mxu0 0.0
        %3386 = vmatpush.msra.mxu0 0.0
        %3387 = vmatpush.msra.mxu0 0.0
        %3388 = vmatpush.msra.mxu0 0.0
        %3389 = vmatpush.msra.mxu0 0.0
        %3390 = vmatpush.msra.mxu0 0.0
        %3391 = vmatpush.msra.mxu0 0.0
        %3392 = vmatpush.msra.mxu0 0.0
        %3393 = vmatpush.msra.mxu0 0.0
        %3394 = vmatpush.msra.mxu0 0.0
        %3395 = vmatpush.msra.mxu0 0.0
        %3396 = vmatpush.msra.mxu0 0.0
        %v3397 = vand.u32 %v1976, 4294901760
        %v3398 = vsub.f32 %v1976, %v3397
        %3399 = vmatpush.msra.mxu0 %v3398
        %v3400 = vand.u32 %v1972, 4294901760
        %v3401 = vsub.f32 %v1972, %v3400
        %3402 = vmatpush.msra.mxu0 %v3401
        %v3403 = vand.u32 %v3323, 4294901760
        %v3404 = vsub.f32 %v3323, %v3403
        %3405 = vmatmul.f32.gmra.mxu0 %v3404
        %v3406 = vpop.f32.mrf.mxu0
        %v3407 = vadd.f32 %v3381, %v3406
        %3408 = vdwg.mxu0
        %3409 = vmatpush.msra.mxu0 0.0
        %3410 = vmatpush.msra.mxu0 0.0
        %3411 = vmatpush.msra.mxu0 0.0
        %3412 = vmatpush.msra.mxu0 0.0
        %3413 = vmatpush.msra.mxu0 0.0
        %3414 = vmatpush.msra.mxu0 0.0
        %3415 = vmatpush.msra.mxu0 0.0
        %3416 = vmatpush.msra.mxu0 0.0
        %3417 = vmatpush.msra.mxu0 0.0
        %3418 = vmatpush.msra.mxu0 0.0
        %3419 = vmatpush.msra.mxu0 0.0
        %3420 = vmatpush.msra.mxu0 0.0
        %3421 = vmatpush.msra.mxu0 0.0
        %3422 = vmatpush.msra.mxu0 0.0
        %v3423 = vand.u32 %v1976, 4294901760
        %3424 = vmatpush.msra.mxu0 %v3423
        %v3425 = vand.u32 %v1972, 4294901760
        %3426 = vmatpush.msra.mxu0 %v3425
        %v3427 = vand.u32 %v3323, 4294901760
        %v3428 = vsub.f32 %v3323, %v3427
        %v3429 = vand.u32 %v3428, 4294901760
        %3430 = vmatmul.f32.gmra.mxu0 %v3429
        %v3431 = vpop.f32.mrf.mxu0
        %v3432 = vadd.f32 %v3407, %v3431
        %3433 = vdwg.mxu0
        %3434 = vmatpush.msra.mxu0 0.0
        %3435 = vmatpush.msra.mxu0 0.0
        %3436 = vmatpush.msra.mxu0 0.0
        %3437 = vmatpush.msra.mxu0 0.0
        %3438 = vmatpush.msra.mxu0 0.0
        %3439 = vmatpush.msra.mxu0 0.0
        %3440 = vmatpush.msra.mxu0 0.0
        %3441 = vmatpush.msra.mxu0 0.0
        %3442 = vmatpush.msra.mxu0 0.0
        %3443 = vmatpush.msra.mxu0 0.0
        %3444 = vmatpush.msra.mxu0 0.0
        %3445 = vmatpush.msra.mxu0 0.0
        %3446 = vmatpush.msra.mxu0 0.0
        %3447 = vmatpush.msra.mxu0 0.0
        %v3448 = vand.u32 %v1976, 4294901760
        %v3449 = vsub.f32 %v1976, %v3448
        %v3450 = vand.u32 %v3449, 4294901760
        %3451 = vmatpush.msra.mxu0 %v3450
        %v3452 = vand.u32 %v1972, 4294901760
        %v3453 = vsub.f32 %v1972, %v3452
        %v3454 = vand.u32 %v3453, 4294901760
        %3455 = vmatpush.msra.mxu0 %v3454
        %v3456 = vand.u32 %v3323, 4294901760
        %3457 = vmatmul.f32.gmra.mxu0 %v3456
        %v3458 = vpop.f32.mrf.mxu0
        %v3459 = vadd.f32 %v3432, %v3458
        %3460 = vdwg.mxu0
        %3461 = vmatpush.msra.mxu0 0.0
        %3462 = vmatpush.msra.mxu0 0.0
        %3463 = vmatpush.msra.mxu0 0.0
        %3464 = vmatpush.msra.mxu0 0.0
        %3465 = vmatpush.msra.mxu0 0.0
        %3466 = vmatpush.msra.mxu0 0.0
        %3467 = vmatpush.msra.mxu0 0.0
        %3468 = vmatpush.msra.mxu0 0.0
        %3469 = vmatpush.msra.mxu0 0.0
        %3470 = vmatpush.msra.mxu0 0.0
        %3471 = vmatpush.msra.mxu0 0.0
        %3472 = vmatpush.msra.mxu0 0.0
        %3473 = vmatpush.msra.mxu0 0.0
        %3474 = vmatpush.msra.mxu0 0.0
        %v3475 = vand.u32 %v1976, 4294901760
        %3476 = vmatpush.msra.mxu0 %v3475
        %v3477 = vand.u32 %v1972, 4294901760
        %3478 = vmatpush.msra.mxu0 %v3477
        %v3479 = vand.u32 %v3323, 4294901760
        %3480 = vmatmul.f32.gmra.mxu0 %v3479
        %v3481 = vpop.f32.mrf.mxu0
        %v3482 = vadd.f32 %v3459, %v3481
        %3483 = vdwg.mxu0
        %v3484 = vmul.f32 %v3482, 0.25
        %v3485 = vsel %vm2700, %v3484, -inf
        %3486 = vmax.xlane.f32.xlu0 %v3485
        %v3487 = vpop.xlane.xlu0 %3486
        %v3488 = vsub.f32 %v3484, %v3487
        %v3489 = vmul.f32 %v3488, 1.442695
        %v3490 = vpow.pop %v3489
        %v3491 = vsel %vm2700, %v3490, 0.0
        %3492 = vadd.xlane.f32.xlu0 %v3491
        %v3493 = vpop.xlane.xlu0 %3492
        %v3494 = vrcp.pop %v3493
        %v3495 = vmul.f32 %v3490, %v3494
        %v3497 = vsel %vm2700, %v2490, 0
        %v3500 = vsel %vm2700, %v2494, 0
        %v3503 = vsel %vm2700, %v3495, 0
        %3505 = vmatpush.xpose.msra.mxu0 0.0
        %3506 = vmatpush.xpose.msra.mxu0 0.0
        %3507 = vmatpush.xpose.msra.mxu0 0.0
        %3508 = vmatpush.xpose.msra.mxu0 0.0
        %3509 = vmatpush.xpose.msra.mxu0 0.0
        %3510 = vmatpush.xpose.msra.mxu0 0.0
        %3511 = vmatpush.xpose.msra.mxu0 0.0
        %3512 = vmatpush.xpose.msra.mxu0 0.0
        %3513 = vmatpush.xpose.msra.mxu0 0.0
        %3514 = vmatpush.xpose.msra.mxu0 0.0
        %3515 = vmatpush.xpose.msra.mxu0 0.0
        %3516 = vmatpush.xpose.msra.mxu0 0.0
        %3517 = vmatpush.xpose.msra.mxu0 0.0
        %3518 = vmatpush.xpose.msra.mxu0 0.0
        %3519 = vmatpush.xpose.msra.mxu0 0.0
        %v3520 = vand.u32 %v3503, 4294901760
        %3521 = vmatpush.xpose.msra.mxu0 %v3520
        %v3522 = vand.u32 %v3497, 4294901760
        %v3523 = vsub.f32 %v3497, %v3522
        %v3524 = vand.u32 %v3523, 4294901760
        %v3525 = vsub.f32 %v3523, %v3524
        %v3526 = vand.u32 %v3525, 4294901760
        %3527 = vmatmul.f32.gmra.mxu0 %v3526
        %v3528 = vpop.f32.mrf.mxu0
        %v3529 = vadd.f32 0.0, %v3528
        %v3530 = vand.u32 %v3500, 4294901760
        %v3531 = vsub.f32 %v3500, %v3530
        %v3532 = vand.u32 %v3531, 4294901760
        %v3533 = vsub.f32 %v3531, %v3532
        %v3534 = vand.u32 %v3533, 4294901760
        %3535 = vmatmul.f32.gmra.mxu0 %v3534
        %v3536 = vpop.f32.mrf.mxu0
        %v3537 = vadd.f32 0.0, %v3536
        %3538 = vdwg.mxu0
        %3539 = vmatpush.xpose.msra.mxu0 0.0
        %3540 = vmatpush.xpose.msra.mxu0 0.0
        %3541 = vmatpush.xpose.msra.mxu0 0.0
        %3542 = vmatpush.xpose.msra.mxu0 0.0
        %3543 = vmatpush.xpose.msra.mxu0 0.0
        %3544 = vmatpush.xpose.msra.mxu0 0.0
        %3545 = vmatpush.xpose.msra.mxu0 0.0
        %3546 = vmatpush.xpose.msra.mxu0 0.0
        %3547 = vmatpush.xpose.msra.mxu0 0.0
        %3548 = vmatpush.xpose.msra.mxu0 0.0
        %3549 = vmatpush.xpose.msra.mxu0 0.0
        %3550 = vmatpush.xpose.msra.mxu0 0.0
        %3551 = vmatpush.xpose.msra.mxu0 0.0
        %3552 = vmatpush.xpose.msra.mxu0 0.0
        %3553 = vmatpush.xpose.msra.mxu0 0.0
        %v3554 = vand.u32 %v3503, 4294901760
        %v3555 = vsub.f32 %v3503, %v3554
        %v3556 = vand.u32 %v3555, 4294901760
        %v3557 = vsub.f32 %v3555, %v3556
        %v3558 = vand.u32 %v3557, 4294901760
        %3559 = vmatpush.xpose.msra.mxu0 %v3558
        %v3560 = vand.u32 %v3497, 4294901760
        %3561 = vmatmul.f32.gmra.mxu0 %v3560
        %v3562 = vpop.f32.mrf.mxu0
        %v3563 = vadd.f32 %v3529, %v3562
        %v3564 = vand.u32 %v3500, 4294901760
        %3565 = vmatmul.f32.gmra.mxu0 %v3564
        %v3566 = vpop.f32.mrf.mxu0
        %v3567 = vadd.f32 %v3537, %v3566
        %3568 = vdwg.mxu0
        %3569 = vmatpush.xpose.msra.mxu0 0.0
        %3570 = vmatpush.xpose.msra.mxu0 0.0
        %3571 = vmatpush.xpose.msra.mxu0 0.0
        %3572 = vmatpush.xpose.msra.mxu0 0.0
        %3573 = vmatpush.xpose.msra.mxu0 0.0
        %3574 = vmatpush.xpose.msra.mxu0 0.0
        %3575 = vmatpush.xpose.msra.mxu0 0.0
        %3576 = vmatpush.xpose.msra.mxu0 0.0
        %3577 = vmatpush.xpose.msra.mxu0 0.0
        %3578 = vmatpush.xpose.msra.mxu0 0.0
        %3579 = vmatpush.xpose.msra.mxu0 0.0
        %3580 = vmatpush.xpose.msra.mxu0 0.0
        %3581 = vmatpush.xpose.msra.mxu0 0.0
        %3582 = vmatpush.xpose.msra.mxu0 0.0
        %3583 = vmatpush.xpose.msra.mxu0 0.0
        %v3584 = vand.u32 %v3503, 4294901760
        %v3585 = vsub.f32 %v3503, %v3584
        %3586 = vmatpush.xpose.msra.mxu0 %v3585
        %v3587 = vand.u32 %v3497, 4294901760
        %v3588 = vsub.f32 %v3497, %v3587
        %3589 = vmatmul.f32.gmra.mxu0 %v3588
        %v3590 = vpop.f32.mrf.mxu0
        %v3591 = vadd.f32 %v3563, %v3590
        %v3592 = vand.u32 %v3500, 4294901760
        %v3593 = vsub.f32 %v3500, %v3592
        %3594 = vmatmul.f32.gmra.mxu0 %v3593
        %v3595 = vpop.f32.mrf.mxu0
        %v3596 = vadd.f32 %v3567, %v3595
        %3597 = vdwg.mxu0
        %3598 = vmatpush.xpose.msra.mxu0 0.0
        %3599 = vmatpush.xpose.msra.mxu0 0.0
        %3600 = vmatpush.xpose.msra.mxu0 0.0
        %3601 = vmatpush.xpose.msra.mxu0 0.0
        %3602 = vmatpush.xpose.msra.mxu0 0.0
        %3603 = vmatpush.xpose.msra.mxu0 0.0
        %3604 = vmatpush.xpose.msra.mxu0 0.0
        %3605 = vmatpush.xpose.msra.mxu0 0.0
        %3606 = vmatpush.xpose.msra.mxu0 0.0
        %3607 = vmatpush.xpose.msra.mxu0 0.0
        %3608 = vmatpush.xpose.msra.mxu0 0.0
        %3609 = vmatpush.xpose.msra.mxu0 0.0
        %3610 = vmatpush.xpose.msra.mxu0 0.0
        %3611 = vmatpush.xpose.msra.mxu0 0.0
        %3612 = vmatpush.xpose.msra.mxu0 0.0
        %v3613 = vand.u32 %v3503, 4294901760
        %3614 = vmatpush.xpose.msra.mxu0 %v3613
        %v3615 = vand.u32 %v3497, 4294901760
        %v3616 = vsub.f32 %v3497, %v3615
        %v3617 = vand.u32 %v3616, 4294901760
        %3618 = vmatmul.f32.gmra.mxu0 %v3617
        %v3619 = vpop.f32.mrf.mxu0
        %v3620 = vadd.f32 %v3591, %v3619
        %v3621 = vand.u32 %v3500, 4294901760
        %v3622 = vsub.f32 %v3500, %v3621
        %v3623 = vand.u32 %v3622, 4294901760
        %3624 = vmatmul.f32.gmra.mxu0 %v3623
        %v3625 = vpop.f32.mrf.mxu0
        %v3626 = vadd.f32 %v3596, %v3625
        %3627 = vdwg.mxu0
        %3628 = vmatpush.xpose.msra.mxu0 0.0
        %3629 = vmatpush.xpose.msra.mxu0 0.0
        %3630 = vmatpush.xpose.msra.mxu0 0.0
        %3631 = vmatpush.xpose.msra.mxu0 0.0
        %3632 = vmatpush.xpose.msra.mxu0 0.0
        %3633 = vmatpush.xpose.msra.mxu0 0.0
        %3634 = vmatpush.xpose.msra.mxu0 0.0
        %3635 = vmatpush.xpose.msra.mxu0 0.0
        %3636 = vmatpush.xpose.msra.mxu0 0.0
        %3637 = vmatpush.xpose.msra.mxu0 0.0
        %3638 = vmatpush.xpose.msra.mxu0 0.0
        %3639 = vmatpush.xpose.msra.mxu0 0.0
        %3640 = vmatpush.xpose.msra.mxu0 0.0
        %3641 = vmatpush.xpose.msra.mxu0 0.0
        %3642 = vmatpush.xpose.msra.mxu0 0.0
        %v3643 = vand.u32 %v3503, 4294901760
        %v3644 = vsub.f32 %v3503, %v3643
        %v3645 = vand.u32 %v3644, 4294901760
        %3646 = vmatpush.xpose.msra.mxu0 %v3645
        %v3647 = vand.u32 %v3497, 4294901760
        %3648 = vmatmul.f32.gmra.mxu0 %v3647
        %v3649 = vpop.f32.mrf.mxu0
        %v3650 = vadd.f32 %v3620, %v3649
        %v3651 = vand.u32 %v3500, 4294901760
        %3652 = vmatmul.f32.gmra.mxu0 %v3651
        %v3653 = vpop.f32.mrf.mxu0
        %v3654 = vadd.f32 %v3626, %v3653
        %3655 = vdwg.mxu0
        %3656 = vmatpush.xpose.msra.mxu0 0.0
        %3657 = vmatpush.xpose.msra.mxu0 0.0
        %3658 = vmatpush.xpose.msra.mxu0 0.0
        %3659 = vmatpush.xpose.msra.mxu0 0.0
        %3660 = vmatpush.xpose.msra.mxu0 0.0
        %3661 = vmatpush.xpose.msra.mxu0 0.0
        %3662 = vmatpush.xpose.msra.mxu0 0.0
        %3663 = vmatpush.xpose.msra.mxu0 0.0
        %3664 = vmatpush.xpose.msra.mxu0 0.0
        %3665 = vmatpush.xpose.msra.mxu0 0.0
        %3666 = vmatpush.xpose.msra.mxu0 0.0
        %3667 = vmatpush.xpose.msra.mxu0 0.0
        %3668 = vmatpush.xpose.msra.mxu0 0.0
        %3669 = vmatpush.xpose.msra.mxu0 0.0
        %3670 = vmatpush.xpose.msra.mxu0 0.0
        %v3671 = vand.u32 %v3503, 4294901760
        %3672 = vmatpush.xpose.msra.mxu0 %v3671
        %v3673 = vand.u32 %v3497, 4294901760
        %3674 = vmatmul.f32.gmra.mxu0 %v3673
        %v3675 = vpop.f32.mrf.mxu0
        %v3676 = vadd.f32 %v3650, %v3675
        %v3677 = vand.u32 %v3500, 4294901760
        %3678 = vmatmul.f32.gmra.mxu0 %v3677
        %v3679 = vpop.f32.mrf.mxu0
        %v3680 = vadd.f32 %v3654, %v3679
        %3681 = vdwg.mxu0
        %3682 = vxpose.xlu0.b32.start [1/16] %v1261, 128
        %3683 = vxpose.xlu0.b32.cont [2/16] %v1265, 128
        %3684 = vxpose.xlu0.b32.cont [3/16] 0.0, 128
        %3685 = vxpose.xlu0.b32.cont [4/16] 0.0, 128
        %3686 = vxpose.xlu0.b32.cont [5/16] 0.0, 128
        %3687 = vxpose.xlu0.b32.cont [6/16] 0.0, 128
        %3688 = vxpose.xlu0.b32.cont [7/16] 0.0, 128
        %3689 = vxpose.xlu0.b32.cont [8/16] 0.0, 128
        %3690 = vxpose.xlu0.b32.cont [9/16] 0.0, 128
        %3691 = vxpose.xlu0.b32.cont [10/16] 0.0, 128
        %3692 = vxpose.xlu0.b32.cont [11/16] 0.0, 128
        %3693 = vxpose.xlu0.b32.cont [12/16] 0.0, 128
        %3694 = vxpose.xlu0.b32.cont [13/16] 0.0, 128
        %3695 = vxpose.xlu0.b32.cont [14/16] 0.0, 128
        %3696 = vxpose.xlu0.b32.cont [15/16] 0.0, 128
        %3697 = vxpose.xlu0.b32.end [16/16] 0.0, 128
        %v3698 = vpop.trf.xlu0
        %v3699 = vpop.trf.xlu0
        %v3700 = vpop.trf.xlu0
        %v3701 = vpop.trf.xlu0
        %v3702 = vpop.trf.xlu0
        %v3703 = vpop.trf.xlu0
        %v3704 = vpop.trf.xlu0
        %v3705 = vpop.trf.xlu0
        %v3706 = vpop.trf.xlu0
        %v3707 = vpop.trf.xlu0
        %v3708 = vpop.trf.xlu0
        %v3709 = vpop.trf.xlu0
        %v3710 = vpop.trf.xlu0
        %v3711 = vpop.trf.xlu0
        %v3712 = vpop.trf.xlu0
        %v3713 = vpop.trf.xlu0
        %v3715 = vsel %vm2536, %v3698, 0
        %3717 = vmatpush.msra.mxu0 0.0
        %3718 = vmatpush.msra.mxu0 0.0
        %3719 = vmatpush.msra.mxu0 0.0
        %3720 = vmatpush.msra.mxu0 0.0
        %3721 = vmatpush.msra.mxu0 0.0
        %3722 = vmatpush.msra.mxu0 0.0
        %3723 = vmatpush.msra.mxu0 0.0
        %3724 = vmatpush.msra.mxu0 0.0
        %3725 = vmatpush.msra.mxu0 0.0
        %3726 = vmatpush.msra.mxu0 0.0
        %3727 = vmatpush.msra.mxu0 0.0
        %3728 = vmatpush.msra.mxu0 0.0
        %3729 = vmatpush.msra.mxu0 0.0
        %3730 = vmatpush.msra.mxu0 0.0
        %v3731 = vand.u32 %v1984, 4294901760
        %3732 = vmatpush.msra.mxu0 %v3731
        %v3733 = vand.u32 %v1980, 4294901760
        %3734 = vmatpush.msra.mxu0 %v3733
        %v3735 = vand.u32 %v3715, 4294901760
        %v3736 = vsub.f32 %v3715, %v3735
        %v3737 = vand.u32 %v3736, 4294901760
        %v3738 = vsub.f32 %v3736, %v3737
        %v3739 = vand.u32 %v3738, 4294901760
        %3740 = vmatmul.f32.gmra.mxu0 %v3739
        %v3741 = vpop.f32.mrf.mxu0
        %v3742 = vadd.f32 0.0, %v3741
        %3743 = vdwg.mxu0
        %3744 = vmatpush.msra.mxu0 0.0
        %3745 = vmatpush.msra.mxu0 0.0
        %3746 = vmatpush.msra.mxu0 0.0
        %3747 = vmatpush.msra.mxu0 0.0
        %3748 = vmatpush.msra.mxu0 0.0
        %3749 = vmatpush.msra.mxu0 0.0
        %3750 = vmatpush.msra.mxu0 0.0
        %3751 = vmatpush.msra.mxu0 0.0
        %3752 = vmatpush.msra.mxu0 0.0
        %3753 = vmatpush.msra.mxu0 0.0
        %3754 = vmatpush.msra.mxu0 0.0
        %3755 = vmatpush.msra.mxu0 0.0
        %3756 = vmatpush.msra.mxu0 0.0
        %3757 = vmatpush.msra.mxu0 0.0
        %v3758 = vand.u32 %v1984, 4294901760
        %v3759 = vsub.f32 %v1984, %v3758
        %v3760 = vand.u32 %v3759, 4294901760
        %v3761 = vsub.f32 %v3759, %v3760
        %v3762 = vand.u32 %v3761, 4294901760
        %3763 = vmatpush.msra.mxu0 %v3762
        %v3764 = vand.u32 %v1980, 4294901760
        %v3765 = vsub.f32 %v1980, %v3764
        %v3766 = vand.u32 %v3765, 4294901760
        %v3767 = vsub.f32 %v3765, %v3766
        %v3768 = vand.u32 %v3767, 4294901760
        %3769 = vmatpush.msra.mxu0 %v3768
        %v3770 = vand.u32 %v3715, 4294901760
        %3771 = vmatmul.f32.gmra.mxu0 %v3770
        %v3772 = vpop.f32.mrf.mxu0
        %v3773 = vadd.f32 %v3742, %v3772
        %3774 = vdwg.mxu0
        %3775 = vmatpush.msra.mxu0 0.0
        %3776 = vmatpush.msra.mxu0 0.0
        %3777 = vmatpush.msra.mxu0 0.0
        %3778 = vmatpush.msra.mxu0 0.0
        %3779 = vmatpush.msra.mxu0 0.0
        %3780 = vmatpush.msra.mxu0 0.0
        %3781 = vmatpush.msra.mxu0 0.0
        %3782 = vmatpush.msra.mxu0 0.0
        %3783 = vmatpush.msra.mxu0 0.0
        %3784 = vmatpush.msra.mxu0 0.0
        %3785 = vmatpush.msra.mxu0 0.0
        %3786 = vmatpush.msra.mxu0 0.0
        %3787 = vmatpush.msra.mxu0 0.0
        %3788 = vmatpush.msra.mxu0 0.0
        %v3789 = vand.u32 %v1984, 4294901760
        %v3790 = vsub.f32 %v1984, %v3789
        %3791 = vmatpush.msra.mxu0 %v3790
        %v3792 = vand.u32 %v1980, 4294901760
        %v3793 = vsub.f32 %v1980, %v3792
        %3794 = vmatpush.msra.mxu0 %v3793
        %v3795 = vand.u32 %v3715, 4294901760
        %v3796 = vsub.f32 %v3715, %v3795
        %3797 = vmatmul.f32.gmra.mxu0 %v3796
        %v3798 = vpop.f32.mrf.mxu0
        %v3799 = vadd.f32 %v3773, %v3798
        %3800 = vdwg.mxu0
        %3801 = vmatpush.msra.mxu0 0.0
        %3802 = vmatpush.msra.mxu0 0.0
        %3803 = vmatpush.msra.mxu0 0.0
        %3804 = vmatpush.msra.mxu0 0.0
        %3805 = vmatpush.msra.mxu0 0.0
        %3806 = vmatpush.msra.mxu0 0.0
        %3807 = vmatpush.msra.mxu0 0.0
        %3808 = vmatpush.msra.mxu0 0.0
        %3809 = vmatpush.msra.mxu0 0.0
        %3810 = vmatpush.msra.mxu0 0.0
        %3811 = vmatpush.msra.mxu0 0.0
        %3812 = vmatpush.msra.mxu0 0.0
        %3813 = vmatpush.msra.mxu0 0.0
        %3814 = vmatpush.msra.mxu0 0.0
        %v3815 = vand.u32 %v1984, 4294901760
        %3816 = vmatpush.msra.mxu0 %v3815
        %v3817 = vand.u32 %v1980, 4294901760
        %3818 = vmatpush.msra.mxu0 %v3817
        %v3819 = vand.u32 %v3715, 4294901760
        %v3820 = vsub.f32 %v3715, %v3819
        %v3821 = vand.u32 %v3820, 4294901760
        %3822 = vmatmul.f32.gmra.mxu0 %v3821
        %v3823 = vpop.f32.mrf.mxu0
        %v3824 = vadd.f32 %v3799, %v3823
        %3825 = vdwg.mxu0
        %3826 = vmatpush.msra.mxu0 0.0
        %3827 = vmatpush.msra.mxu0 0.0
        %3828 = vmatpush.msra.mxu0 0.0
        %3829 = vmatpush.msra.mxu0 0.0
        %3830 = vmatpush.msra.mxu0 0.0
        %3831 = vmatpush.msra.mxu0 0.0
        %3832 = vmatpush.msra.mxu0 0.0
        %3833 = vmatpush.msra.mxu0 0.0
        %3834 = vmatpush.msra.mxu0 0.0
        %3835 = vmatpush.msra.mxu0 0.0
        %3836 = vmatpush.msra.mxu0 0.0
        %3837 = vmatpush.msra.mxu0 0.0
        %3838 = vmatpush.msra.mxu0 0.0
        %3839 = vmatpush.msra.mxu0 0.0
        %v3840 = vand.u32 %v1984, 4294901760
        %v3841 = vsub.f32 %v1984, %v3840
        %v3842 = vand.u32 %v3841, 4294901760
        %3843 = vmatpush.msra.mxu0 %v3842
        %v3844 = vand.u32 %v1980, 4294901760
        %v3845 = vsub.f32 %v1980, %v3844
        %v3846 = vand.u32 %v3845, 4294901760
        %3847 = vmatpush.msra.mxu0 %v3846
        %v3848 = vand.u32 %v3715, 4294901760
        %3849 = vmatmul.f32.gmra.mxu0 %v3848
        %v3850 = vpop.f32.mrf.mxu0
        %v3851 = vadd.f32 %v3824, %v3850
        %3852 = vdwg.mxu0
        %3853 = vmatpush.msra.mxu0 0.0
        %3854 = vmatpush.msra.mxu0 0.0
        %3855 = vmatpush.msra.mxu0 0.0
        %3856 = vmatpush.msra.mxu0 0.0
        %3857 = vmatpush.msra.mxu0 0.0
        %3858 = vmatpush.msra.mxu0 0.0
        %3859 = vmatpush.msra.mxu0 0.0
        %3860 = vmatpush.msra.mxu0 0.0
        %3861 = vmatpush.msra.mxu0 0.0
        %3862 = vmatpush.msra.mxu0 0.0
        %3863 = vmatpush.msra.mxu0 0.0
        %3864 = vmatpush.msra.mxu0 0.0
        %3865 = vmatpush.msra.mxu0 0.0
        %3866 = vmatpush.msra.mxu0 0.0
        %v3867 = vand.u32 %v1984, 4294901760
        %3868 = vmatpush.msra.mxu0 %v3867
        %v3869 = vand.u32 %v1980, 4294901760
        %3870 = vmatpush.msra.mxu0 %v3869
        %v3871 = vand.u32 %v3715, 4294901760
        %3872 = vmatmul.f32.gmra.mxu0 %v3871
        %v3873 = vpop.f32.mrf.mxu0
        %v3874 = vadd.f32 %v3851, %v3873
        %3875 = vdwg.mxu0
        %v3876 = vmul.f32 %v3874, 0.25
        %v3877 = vsel %vm2700, %v3876, -inf
        %3878 = vmax.xlane.f32.xlu0 %v3877
        %v3879 = vpop.xlane.xlu0 %3878
        %v3880 = vsub.f32 %v3876, %v3879
        %v3881 = vmul.f32 %v3880, 1.442695
        %v3882 = vpow.pop %v3881
        %v3883 = vsel %vm2700, %v3882, 0.0
        %3884 = vadd.xlane.f32.xlu0 %v3883
        %v3885 = vpop.xlane.xlu0 %3884
        %v3886 = vrcp.pop %v3885
        %v3887 = vmul.f32 %v3882, %v3886
        %v3889 = vsel %vm2700, %v2498, 0
        %v3892 = vsel %vm2700, %v2502, 0
        %v3895 = vsel %vm2700, %v3887, 0
        %3897 = vmatpush.xpose.msra.mxu0 0.0
        %3898 = vmatpush.xpose.msra.mxu0 0.0
        %3899 = vmatpush.xpose.msra.mxu0 0.0
        %3900 = vmatpush.xpose.msra.mxu0 0.0
        %3901 = vmatpush.xpose.msra.mxu0 0.0
        %3902 = vmatpush.xpose.msra.mxu0 0.0
        %3903 = vmatpush.xpose.msra.mxu0 0.0
        %3904 = vmatpush.xpose.msra.mxu0 0.0
        %3905 = vmatpush.xpose.msra.mxu0 0.0
        %3906 = vmatpush.xpose.msra.mxu0 0.0
        %3907 = vmatpush.xpose.msra.mxu0 0.0
        %3908 = vmatpush.xpose.msra.mxu0 0.0
        %3909 = vmatpush.xpose.msra.mxu0 0.0
        %3910 = vmatpush.xpose.msra.mxu0 0.0
        %3911 = vmatpush.xpose.msra.mxu0 0.0
        %v3912 = vand.u32 %v3895, 4294901760
        %3913 = vmatpush.xpose.msra.mxu0 %v3912
        %v3914 = vand.u32 %v3889, 4294901760
        %v3915 = vsub.f32 %v3889, %v3914
        %v3916 = vand.u32 %v3915, 4294901760
        %v3917 = vsub.f32 %v3915, %v3916
        %v3918 = vand.u32 %v3917, 4294901760
        %3919 = vmatmul.f32.gmra.mxu0 %v3918
        %v3920 = vpop.f32.mrf.mxu0
        %v3921 = vadd.f32 0.0, %v3920
        %v3922 = vand.u32 %v3892, 4294901760
        %v3923 = vsub.f32 %v3892, %v3922
        %v3924 = vand.u32 %v3923, 4294901760
        %v3925 = vsub.f32 %v3923, %v3924
        %v3926 = vand.u32 %v3925, 4294901760
        %3927 = vmatmul.f32.gmra.mxu0 %v3926
        %v3928 = vpop.f32.mrf.mxu0
        %v3929 = vadd.f32 0.0, %v3928
        %3930 = vdwg.mxu0
        %3931 = vmatpush.xpose.msra.mxu0 0.0
        %3932 = vmatpush.xpose.msra.mxu0 0.0
        %3933 = vmatpush.xpose.msra.mxu0 0.0
        %3934 = vmatpush.xpose.msra.mxu0 0.0
        %3935 = vmatpush.xpose.msra.mxu0 0.0
        %3936 = vmatpush.xpose.msra.mxu0 0.0
        %3937 = vmatpush.xpose.msra.mxu0 0.0
        %3938 = vmatpush.xpose.msra.mxu0 0.0
        %3939 = vmatpush.xpose.msra.mxu0 0.0
        %3940 = vmatpush.xpose.msra.mxu0 0.0
        %3941 = vmatpush.xpose.msra.mxu0 0.0
        %3942 = vmatpush.xpose.msra.mxu0 0.0
        %3943 = vmatpush.xpose.msra.mxu0 0.0
        %3944 = vmatpush.xpose.msra.mxu0 0.0
        %3945 = vmatpush.xpose.msra.mxu0 0.0
        %v3946 = vand.u32 %v3895, 4294901760
        %v3947 = vsub.f32 %v3895, %v3946
        %v3948 = vand.u32 %v3947, 4294901760
        %v3949 = vsub.f32 %v3947, %v3948
        %v3950 = vand.u32 %v3949, 4294901760
        %3951 = vmatpush.xpose.msra.mxu0 %v3950
        %v3952 = vand.u32 %v3889, 4294901760
        %3953 = vmatmul.f32.gmra.mxu0 %v3952
        %v3954 = vpop.f32.mrf.mxu0
        %v3955 = vadd.f32 %v3921, %v3954
        %v3956 = vand.u32 %v3892, 4294901760
        %3957 = vmatmul.f32.gmra.mxu0 %v3956
        %v3958 = vpop.f32.mrf.mxu0
        %v3959 = vadd.f32 %v3929, %v3958
        %3960 = vdwg.mxu0
        %3961 = vmatpush.xpose.msra.mxu0 0.0
        %3962 = vmatpush.xpose.msra.mxu0 0.0
        %3963 = vmatpush.xpose.msra.mxu0 0.0
        %3964 = vmatpush.xpose.msra.mxu0 0.0
        %3965 = vmatpush.xpose.msra.mxu0 0.0
        %3966 = vmatpush.xpose.msra.mxu0 0.0
        %3967 = vmatpush.xpose.msra.mxu0 0.0
        %3968 = vmatpush.xpose.msra.mxu0 0.0
        %3969 = vmatpush.xpose.msra.mxu0 0.0
        %3970 = vmatpush.xpose.msra.mxu0 0.0
        %3971 = vmatpush.xpose.msra.mxu0 0.0
        %3972 = vmatpush.xpose.msra.mxu0 0.0
        %3973 = vmatpush.xpose.msra.mxu0 0.0
        %3974 = vmatpush.xpose.msra.mxu0 0.0
        %3975 = vmatpush.xpose.msra.mxu0 0.0
        %v3976 = vand.u32 %v3895, 4294901760
        %v3977 = vsub.f32 %v3895, %v3976
        %3978 = vmatpush.xpose.msra.mxu0 %v3977
        %v3979 = vand.u32 %v3889, 4294901760
        %v3980 = vsub.f32 %v3889, %v3979
        %3981 = vmatmul.f32.gmra.mxu0 %v3980
        %v3982 = vpop.f32.mrf.mxu0
        %v3983 = vadd.f32 %v3955, %v3982
        %v3984 = vand.u32 %v3892, 4294901760
        %v3985 = vsub.f32 %v3892, %v3984
        %3986 = vmatmul.f32.gmra.mxu0 %v3985
        %v3987 = vpop.f32.mrf.mxu0
        %v3988 = vadd.f32 %v3959, %v3987
        %3989 = vdwg.mxu0
        %3990 = vmatpush.xpose.msra.mxu0 0.0
        %3991 = vmatpush.xpose.msra.mxu0 0.0
        %3992 = vmatpush.xpose.msra.mxu0 0.0
        %3993 = vmatpush.xpose.msra.mxu0 0.0
        %3994 = vmatpush.xpose.msra.mxu0 0.0
        %3995 = vmatpush.xpose.msra.mxu0 0.0
        %3996 = vmatpush.xpose.msra.mxu0 0.0
        %3997 = vmatpush.xpose.msra.mxu0 0.0
        %3998 = vmatpush.xpose.msra.mxu0 0.0
        %3999 = vmatpush.xpose.msra.mxu0 0.0
        %4000 = vmatpush.xpose.msra.mxu0 0.0
        %4001 = vmatpush.xpose.msra.mxu0 0.0
        %4002 = vmatpush.xpose.msra.mxu0 0.0
        %4003 = vmatpush.xpose.msra.mxu0 0.0
        %4004 = vmatpush.xpose.msra.mxu0 0.0
        %v4005 = vand.u32 %v3895, 4294901760
        %4006 = vmatpush.xpose.msra.mxu0 %v4005
        %v4007 = vand.u32 %v3889, 4294901760
        %v4008 = vsub.f32 %v3889, %v4007
        %v4009 = vand.u32 %v4008, 4294901760
        %4010 = vmatmul.f32.gmra.mxu0 %v4009
        %v4011 = vpop.f32.mrf.mxu0
        %v4012 = vadd.f32 %v3983, %v4011
        %v4013 = vand.u32 %v3892, 4294901760
        %v4014 = vsub.f32 %v3892, %v4013
        %v4015 = vand.u32 %v4014, 4294901760
        %4016 = vmatmul.f32.gmra.mxu0 %v4015
        %v4017 = vpop.f32.mrf.mxu0
        %v4018 = vadd.f32 %v3988, %v4017
        %4019 = vdwg.mxu0
        %4020 = vmatpush.xpose.msra.mxu0 0.0
        %4021 = vmatpush.xpose.msra.mxu0 0.0
        %4022 = vmatpush.xpose.msra.mxu0 0.0
        %4023 = vmatpush.xpose.msra.mxu0 0.0
        %4024 = vmatpush.xpose.msra.mxu0 0.0
        %4025 = vmatpush.xpose.msra.mxu0 0.0
        %4026 = vmatpush.xpose.msra.mxu0 0.0
        %4027 = vmatpush.xpose.msra.mxu0 0.0
        %4028 = vmatpush.xpose.msra.mxu0 0.0
        %4029 = vmatpush.xpose.msra.mxu0 0.0
        %4030 = vmatpush.xpose.msra.mxu0 0.0
        %4031 = vmatpush.xpose.msra.mxu0 0.0
        %4032 = vmatpush.xpose.msra.mxu0 0.0
        %4033 = vmatpush.xpose.msra.mxu0 0.0
        %4034 = vmatpush.xpose.msra.mxu0 0.0
        %v4035 = vand.u32 %v3895, 4294901760
        %v4036 = vsub.f32 %v3895, %v4035
        %v4037 = vand.u32 %v4036, 4294901760
        %4038 = vmatpush.xpose.msra.mxu0 %v4037
        %v4039 = vand.u32 %v3889, 4294901760
        %4040 = vmatmul.f32.gmra.mxu0 %v4039
        %v4041 = vpop.f32.mrf.mxu0
        %v4042 = vadd.f32 %v4012, %v4041
        %v4043 = vand.u32 %v3892, 4294901760
        %4044 = vmatmul.f32.gmra.mxu0 %v4043
        %v4045 = vpop.f32.mrf.mxu0
        %v4046 = vadd.f32 %v4018, %v4045
        %4047 = vdwg.mxu0
        %4048 = vmatpush.xpose.msra.mxu0 0.0
        %4049 = vmatpush.xpose.msra.mxu0 0.0
        %4050 = vmatpush.xpose.msra.mxu0 0.0
        %4051 = vmatpush.xpose.msra.mxu0 0.0
        %4052 = vmatpush.xpose.msra.mxu0 0.0
        %4053 = vmatpush.xpose.msra.mxu0 0.0
        %4054 = vmatpush.xpose.msra.mxu0 0.0
        %4055 = vmatpush.xpose.msra.mxu0 0.0
        %4056 = vmatpush.xpose.msra.mxu0 0.0
        %4057 = vmatpush.xpose.msra.mxu0 0.0
        %4058 = vmatpush.xpose.msra.mxu0 0.0
        %4059 = vmatpush.xpose.msra.mxu0 0.0
        %4060 = vmatpush.xpose.msra.mxu0 0.0
        %4061 = vmatpush.xpose.msra.mxu0 0.0
        %4062 = vmatpush.xpose.msra.mxu0 0.0
        %v4063 = vand.u32 %v3895, 4294901760
        %4064 = vmatpush.xpose.msra.mxu0 %v4063
        %v4065 = vand.u32 %v3889, 4294901760
        %4066 = vmatmul.f32.gmra.mxu0 %v4065
        %v4067 = vpop.f32.mrf.mxu0
        %v4068 = vadd.f32 %v4042, %v4067
        %v4069 = vand.u32 %v3892, 4294901760
        %4070 = vmatmul.f32.gmra.mxu0 %v4069
        %v4071 = vpop.f32.mrf.mxu0
        %v4072 = vadd.f32 %v4046, %v4071
        %4073 = vdwg.mxu0
        %4075 = vset.pattern.permute.xlu0 0
        %4076 = vperm.xlu0 %4075, %v740
        %v4077 = vpop.permute.xlu0 %4076
        %4080 = vset.pattern.permute.xlu0 0
        %4081 = vperm.xlu0 %4080, %v741
        %v4082 = vpop.permute.xlu0 %4081
        %4085 = vset.pattern.permute.xlu0 0
        %4086 = vperm.xlu0 %4085, %v742
        %v4087 = vpop.permute.xlu0 %4086
        %4090 = vset.pattern.permute.xlu0 0
        %4091 = vperm.xlu0 %4090, %v743
        %v4092 = vpop.permute.xlu0 %4091
        %4095 = vset.pattern.permute.xlu0 0
        %4096 = vperm.xlu0 %4095, %v744
        %v4097 = vpop.permute.xlu0 %4096
        %4100 = vset.pattern.permute.xlu0 0
        %4101 = vperm.xlu0 %4100, %v745
        %v4102 = vpop.permute.xlu0 %4101
        %4105 = vset.pattern.permute.xlu0 0
        %4106 = vperm.xlu0 %4105, %v746
        %v4107 = vpop.permute.xlu0 %4106
        %4110 = vset.pattern.permute.xlu0 0
        %4111 = vperm.xlu0 %4110, %v747
        %v4112 = vpop.permute.xlu0 %4111
        %v4115 = vsel %vm788, %v732, 0
        %v4118 = vsel %vm788, %v733, 0
        %v4121 = vsel %vm788, %v734, 0
        %v4124 = vsel %vm788, %v735, 0
        %v4127 = vsel %vm788, %v736, 0
        %v4130 = vsel %vm788, %v737, 0
        %v4133 = vsel %vm788, %v738, 0
        %v4136 = vsel %vm788, %v739, 0
        %4138 = vmatpush.msra.mxu0 0.0
        %4139 = vmatpush.msra.mxu0 0.0
        %4140 = vmatpush.msra.mxu0 0.0
        %4141 = vmatpush.msra.mxu0 0.0
        %4142 = vmatpush.msra.mxu0 0.0
        %4143 = vmatpush.msra.mxu0 0.0
        %4144 = vmatpush.msra.mxu0 0.0
        %4145 = vmatpush.msra.mxu0 0.0
        %v4146 = vand.u32 %v4072, 4294901760
        %4147 = vmatpush.msra.mxu0 %v4146
        %v4148 = vand.u32 %v4068, 4294901760
        %4149 = vmatpush.msra.mxu0 %v4148
        %v4150 = vand.u32 %v3680, 4294901760
        %4151 = vmatpush.msra.mxu0 %v4150
        %v4152 = vand.u32 %v3676, 4294901760
        %4153 = vmatpush.msra.mxu0 %v4152
        %v4154 = vand.u32 %v3288, 4294901760
        %4155 = vmatpush.msra.mxu0 %v4154
        %v4156 = vand.u32 %v3284, 4294901760
        %4157 = vmatpush.msra.mxu0 %v4156
        %v4158 = vand.u32 %v2896, 4294901760
        %4159 = vmatpush.msra.mxu0 %v4158
        %v4160 = vand.u32 %v2892, 4294901760
        %4161 = vmatpush.msra.mxu0 %v4160
        %v4162 = vand.u32 %v4115, 4294901760
        %v4163 = vsub.f32 %v4115, %v4162
        %v4164 = vand.u32 %v4163, 4294901760
        %v4165 = vsub.f32 %v4163, %v4164
        %v4166 = vand.u32 %v4165, 4294901760
        %4167 = vmatmul.f32.gmra.mxu0 %v4166
        %v4168 = vpop.f32.mrf.mxu0
        %v4169 = vadd.f32 %v4077, %v4168
        %v4170 = vand.u32 %v4118, 4294901760
        %v4171 = vsub.f32 %v4118, %v4170
        %v4172 = vand.u32 %v4171, 4294901760
        %v4173 = vsub.f32 %v4171, %v4172
        %v4174 = vand.u32 %v4173, 4294901760
        %4175 = vmatmul.f32.gmra.mxu0 %v4174
        %v4176 = vpop.f32.mrf.mxu0
        %v4177 = vadd.f32 %v4082, %v4176
        %v4178 = vand.u32 %v4121, 4294901760
        %v4179 = vsub.f32 %v4121, %v4178
        %v4180 = vand.u32 %v4179, 4294901760
        %v4181 = vsub.f32 %v4179, %v4180
        %v4182 = vand.u32 %v4181, 4294901760
        %4183 = vmatmul.f32.gmra.mxu0 %v4182
        %v4184 = vpop.f32.mrf.mxu0
        %v4185 = vadd.f32 %v4087, %v4184
        %v4186 = vand.u32 %v4124, 4294901760
        %v4187 = vsub.f32 %v4124, %v4186
        %v4188 = vand.u32 %v4187, 4294901760
        %v4189 = vsub.f32 %v4187, %v4188
        %v4190 = vand.u32 %v4189, 4294901760
        %4191 = vmatmul.f32.gmra.mxu0 %v4190
        %v4192 = vpop.f32.mrf.mxu0
        %v4193 = vadd.f32 %v4092, %v4192
        %v4194 = vand.u32 %v4127, 4294901760
        %v4195 = vsub.f32 %v4127, %v4194
        %v4196 = vand.u32 %v4195, 4294901760
        %v4197 = vsub.f32 %v4195, %v4196
        %v4198 = vand.u32 %v4197, 4294901760
        %4199 = vmatmul.f32.gmra.mxu0 %v4198
        %v4200 = vpop.f32.mrf.mxu0
        %v4201 = vadd.f32 %v4097, %v4200
        %v4202 = vand.u32 %v4130, 4294901760
        %v4203 = vsub.f32 %v4130, %v4202
        %v4204 = vand.u32 %v4203, 4294901760
        %v4205 = vsub.f32 %v4203, %v4204
        %v4206 = vand.u32 %v4205, 4294901760
        %4207 = vmatmul.f32.gmra.mxu0 %v4206
        %v4208 = vpop.f32.mrf.mxu0
        %v4209 = vadd.f32 %v4102, %v4208
        %v4210 = vand.u32 %v4133, 4294901760
        %v4211 = vsub.f32 %v4133, %v4210
        %v4212 = vand.u32 %v4211, 4294901760
        %v4213 = vsub.f32 %v4211, %v4212
        %v4214 = vand.u32 %v4213, 4294901760
        %4215 = vmatmul.f32.gmra.mxu0 %v4214
        %v4216 = vpop.f32.mrf.mxu0
        %v4217 = vadd.f32 %v4107, %v4216
        %v4218 = vand.u32 %v4136, 4294901760
        %v4219 = vsub.f32 %v4136, %v4218
        %v4220 = vand.u32 %v4219, 4294901760
        %v4221 = vsub.f32 %v4219, %v4220
        %v4222 = vand.u32 %v4221, 4294901760
        %4223 = vmatmul.f32.gmra.mxu0 %v4222
        %v4224 = vpop.f32.mrf.mxu0
        %v4225 = vadd.f32 %v4112, %v4224
        %4226 = vdwg.mxu0
        %4227 = vmatpush.msra.mxu0 0.0
        %4228 = vmatpush.msra.mxu0 0.0
        %4229 = vmatpush.msra.mxu0 0.0
        %4230 = vmatpush.msra.mxu0 0.0
        %4231 = vmatpush.msra.mxu0 0.0
        %4232 = vmatpush.msra.mxu0 0.0
        %4233 = vmatpush.msra.mxu0 0.0
        %4234 = vmatpush.msra.mxu0 0.0
        %v4235 = vand.u32 %v4072, 4294901760
        %v4236 = vsub.f32 %v4072, %v4235
        %v4237 = vand.u32 %v4236, 4294901760
        %v4238 = vsub.f32 %v4236, %v4237
        %v4239 = vand.u32 %v4238, 4294901760
        %4240 = vmatpush.msra.mxu0 %v4239
        %v4241 = vand.u32 %v4068, 4294901760
        %v4242 = vsub.f32 %v4068, %v4241
        %v4243 = vand.u32 %v4242, 4294901760
        %v4244 = vsub.f32 %v4242, %v4243
        %v4245 = vand.u32 %v4244, 4294901760
        %4246 = vmatpush.msra.mxu0 %v4245
        %v4247 = vand.u32 %v3680, 4294901760
        %v4248 = vsub.f32 %v3680, %v4247
        %v4249 = vand.u32 %v4248, 4294901760
        %v4250 = vsub.f32 %v4248, %v4249
        %v4251 = vand.u32 %v4250, 4294901760
        %4252 = vmatpush.msra.mxu0 %v4251
        %v4253 = vand.u32 %v3676, 4294901760
        %v4254 = vsub.f32 %v3676, %v4253
        %v4255 = vand.u32 %v4254, 4294901760
        %v4256 = vsub.f32 %v4254, %v4255
        %v4257 = vand.u32 %v4256, 4294901760
        %4258 = vmatpush.msra.mxu0 %v4257
        %v4259 = vand.u32 %v3288, 4294901760
        %v4260 = vsub.f32 %v3288, %v4259
        %v4261 = vand.u32 %v4260, 4294901760
        %v4262 = vsub.f32 %v4260, %v4261
        %v4263 = vand.u32 %v4262, 4294901760
        %4264 = vmatpush.msra.mxu0 %v4263
        %v4265 = vand.u32 %v3284, 4294901760
        %v4266 = vsub.f32 %v3284, %v4265
        %v4267 = vand.u32 %v4266, 4294901760
        %v4268 = vsub.f32 %v4266, %v4267
        %v4269 = vand.u32 %v4268, 4294901760
        %4270 = vmatpush.msra.mxu0 %v4269
        %v4271 = vand.u32 %v2896, 4294901760
        %v4272 = vsub.f32 %v2896, %v4271
        %v4273 = vand.u32 %v4272, 4294901760
        %v4274 = vsub.f32 %v4272, %v4273
        %v4275 = vand.u32 %v4274, 4294901760
        %4276 = vmatpush.msra.mxu0 %v4275
        %v4277 = vand.u32 %v2892, 4294901760
        %v4278 = vsub.f32 %v2892, %v4277
        %v4279 = vand.u32 %v4278, 4294901760
        %v4280 = vsub.f32 %v4278, %v4279
        %v4281 = vand.u32 %v4280, 4294901760
        %4282 = vmatpush.msra.mxu0 %v4281
        %v4283 = vand.u32 %v4115, 4294901760
        %4284 = vmatmul.f32.gmra.mxu0 %v4283
        %v4285 = vpop.f32.mrf.mxu0
        %v4286 = vadd.f32 %v4169, %v4285
        %v4287 = vand.u32 %v4118, 4294901760
        %4288 = vmatmul.f32.gmra.mxu0 %v4287
        %v4289 = vpop.f32.mrf.mxu0
        %v4290 = vadd.f32 %v4177, %v4289
        %v4291 = vand.u32 %v4121, 4294901760
        %4292 = vmatmul.f32.gmra.mxu0 %v4291
        %v4293 = vpop.f32.mrf.mxu0
        %v4294 = vadd.f32 %v4185, %v4293
        %v4295 = vand.u32 %v4124, 4294901760
        %4296 = vmatmul.f32.gmra.mxu0 %v4295
        %v4297 = vpop.f32.mrf.mxu0
        %v4298 = vadd.f32 %v4193, %v4297
        %v4299 = vand.u32 %v4127, 4294901760
        %4300 = vmatmul.f32.gmra.mxu0 %v4299
        %v4301 = vpop.f32.mrf.mxu0
        %v4302 = vadd.f32 %v4201, %v4301
        %v4303 = vand.u32 %v4130, 4294901760
        %4304 = vmatmul.f32.gmra.mxu0 %v4303
        %v4305 = vpop.f32.mrf.mxu0
        %v4306 = vadd.f32 %v4209, %v4305
        %v4307 = vand.u32 %v4133, 4294901760
        %4308 = vmatmul.f32.gmra.mxu0 %v4307
        %v4309 = vpop.f32.mrf.mxu0
        %v4310 = vadd.f32 %v4217, %v4309
        %v4311 = vand.u32 %v4136, 4294901760
        %4312 = vmatmul.f32.gmra.mxu0 %v4311
        %v4313 = vpop.f32.mrf.mxu0
        %v4314 = vadd.f32 %v4225, %v4313
        %4315 = vdwg.mxu0
        %4316 = vmatpush.msra.mxu0 0.0
        %4317 = vmatpush.msra.mxu0 0.0
        %4318 = vmatpush.msra.mxu0 0.0
        %4319 = vmatpush.msra.mxu0 0.0
        %4320 = vmatpush.msra.mxu0 0.0
        %4321 = vmatpush.msra.mxu0 0.0
        %4322 = vmatpush.msra.mxu0 0.0
        %4323 = vmatpush.msra.mxu0 0.0
        %v4324 = vand.u32 %v4072, 4294901760
        %v4325 = vsub.f32 %v4072, %v4324
        %4326 = vmatpush.msra.mxu0 %v4325
        %v4327 = vand.u32 %v4068, 4294901760
        %v4328 = vsub.f32 %v4068, %v4327
        %4329 = vmatpush.msra.mxu0 %v4328
        %v4330 = vand.u32 %v3680, 4294901760
        %v4331 = vsub.f32 %v3680, %v4330
        %4332 = vmatpush.msra.mxu0 %v4331
        %v4333 = vand.u32 %v3676, 4294901760
        %v4334 = vsub.f32 %v3676, %v4333
        %4335 = vmatpush.msra.mxu0 %v4334
        %v4336 = vand.u32 %v3288, 4294901760
        %v4337 = vsub.f32 %v3288, %v4336
        %4338 = vmatpush.msra.mxu0 %v4337
        %v4339 = vand.u32 %v3284, 4294901760
        %v4340 = vsub.f32 %v3284, %v4339
        %4341 = vmatpush.msra.mxu0 %v4340
        %v4342 = vand.u32 %v2896, 4294901760
        %v4343 = vsub.f32 %v2896, %v4342
        %4344 = vmatpush.msra.mxu0 %v4343
        %v4345 = vand.u32 %v2892, 4294901760
        %v4346 = vsub.f32 %v2892, %v4345
        %4347 = vmatpush.msra.mxu0 %v4346
        %v4348 = vand.u32 %v4115, 4294901760
        %v4349 = vsub.f32 %v4115, %v4348
        %4350 = vmatmul.f32.gmra.mxu0 %v4349
        %v4351 = vpop.f32.mrf.mxu0
        %v4352 = vadd.f32 %v4286, %v4351
        %v4353 = vand.u32 %v4118, 4294901760
        %v4354 = vsub.f32 %v4118, %v4353
        %4355 = vmatmul.f32.gmra.mxu0 %v4354
        %v4356 = vpop.f32.mrf.mxu0
        %v4357 = vadd.f32 %v4290, %v4356
        %v4358 = vand.u32 %v4121, 4294901760
        %v4359 = vsub.f32 %v4121, %v4358
        %4360 = vmatmul.f32.gmra.mxu0 %v4359
        %v4361 = vpop.f32.mrf.mxu0
        %v4362 = vadd.f32 %v4294, %v4361
        %v4363 = vand.u32 %v4124, 4294901760
        %v4364 = vsub.f32 %v4124, %v4363
        %4365 = vmatmul.f32.gmra.mxu0 %v4364
        %v4366 = vpop.f32.mrf.mxu0
        %v4367 = vadd.f32 %v4298, %v4366
        %v4368 = vand.u32 %v4127, 4294901760
        %v4369 = vsub.f32 %v4127, %v4368
        %4370 = vmatmul.f32.gmra.mxu0 %v4369
        %v4371 = vpop.f32.mrf.mxu0
        %v4372 = vadd.f32 %v4302, %v4371
        %v4373 = vand.u32 %v4130, 4294901760
        %v4374 = vsub.f32 %v4130, %v4373
        %4375 = vmatmul.f32.gmra.mxu0 %v4374
        %v4376 = vpop.f32.mrf.mxu0
        %v4377 = vadd.f32 %v4306, %v4376
        %v4378 = vand.u32 %v4133, 4294901760
        %v4379 = vsub.f32 %v4133, %v4378
        %4380 = vmatmul.f32.gmra.mxu0 %v4379
        %v4381 = vpop.f32.mrf.mxu0
        %v4382 = vadd.f32 %v4310, %v4381
        %v4383 = vand.u32 %v4136, 4294901760
        %v4384 = vsub.f32 %v4136, %v4383
        %4385 = vmatmul.f32.gmra.mxu0 %v4384
        %v4386 = vpop.f32.mrf.mxu0
        %v4387 = vadd.f32 %v4314, %v4386
        %4388 = vdwg.mxu0
        %4389 = vmatpush.msra.mxu0 0.0
        %4390 = vmatpush.msra.mxu0 0.0
        %4391 = vmatpush.msra.mxu0 0.0
        %4392 = vmatpush.msra.mxu0 0.0
        %4393 = vmatpush.msra.mxu0 0.0
        %4394 = vmatpush.msra.mxu0 0.0
        %4395 = vmatpush.msra.mxu0 0.0
        %4396 = vmatpush.msra.mxu0 0.0
        %v4397 = vand.u32 %v4072, 4294901760
        %4398 = vmatpush.msra.mxu0 %v4397
        %v4399 = vand.u32 %v4068, 4294901760
        %4400 = vmatpush.msra.mxu0 %v4399
        %v4401 = vand.u32 %v3680, 4294901760
        %4402 = vmatpush.msra.mxu0 %v4401
        %v4403 = vand.u32 %v3676, 4294901760
        %4404 = vmatpush.msra.mxu0 %v4403
        %v4405 = vand.u32 %v3288, 4294901760
        %4406 = vmatpush.msra.mxu0 %v4405
        %v4407 = vand.u32 %v3284, 4294901760
        %4408 = vmatpush.msra.mxu0 %v4407
        %v4409 = vand.u32 %v2896, 4294901760
        %4410 = vmatpush.msra.mxu0 %v4409
        %v4411 = vand.u32 %v2892, 4294901760
        %4412 = vmatpush.msra.mxu0 %v4411
        %v4413 = vand.u32 %v4115, 4294901760
        %v4414 = vsub.f32 %v4115, %v4413
        %v4415 = vand.u32 %v4414, 4294901760
        %4416 = vmatmul.f32.gmra.mxu0 %v4415
        %v4417 = vpop.f32.mrf.mxu0
        %v4418 = vadd.f32 %v4352, %v4417
        %v4419 = vand.u32 %v4118, 4294901760
        %v4420 = vsub.f32 %v4118, %v4419
        %v4421 = vand.u32 %v4420, 4294901760
        %4422 = vmatmul.f32.gmra.mxu0 %v4421
        %v4423 = vpop.f32.mrf.mxu0
        %v4424 = vadd.f32 %v4357, %v4423
        %v4425 = vand.u32 %v4121, 4294901760
        %v4426 = vsub.f32 %v4121, %v4425
        %v4427 = vand.u32 %v4426, 4294901760
        %4428 = vmatmul.f32.gmra.mxu0 %v4427
        %v4429 = vpop.f32.mrf.mxu0
        %v4430 = vadd.f32 %v4362, %v4429
        %v4431 = vand.u32 %v4124, 4294901760
        %v4432 = vsub.f32 %v4124, %v4431
        %v4433 = vand.u32 %v4432, 4294901760
        %4434 = vmatmul.f32.gmra.mxu0 %v4433
        %v4435 = vpop.f32.mrf.mxu0
        %v4436 = vadd.f32 %v4367, %v4435
        %v4437 = vand.u32 %v4127, 4294901760
        %v4438 = vsub.f32 %v4127, %v4437
        %v4439 = vand.u32 %v4438, 4294901760
        %4440 = vmatmul.f32.gmra.mxu0 %v4439
        %v4441 = vpop.f32.mrf.mxu0
        %v4442 = vadd.f32 %v4372, %v4441
        %v4443 = vand.u32 %v4130, 4294901760
        %v4444 = vsub.f32 %v4130, %v4443
        %v4445 = vand.u32 %v4444, 4294901760
        %4446 = vmatmul.f32.gmra.mxu0 %v4445
        %v4447 = vpop.f32.mrf.mxu0
        %v4448 = vadd.f32 %v4377, %v4447
        %v4449 = vand.u32 %v4133, 4294901760
        %v4450 = vsub.f32 %v4133, %v4449
        %v4451 = vand.u32 %v4450, 4294901760
        %4452 = vmatmul.f32.gmra.mxu0 %v4451
        %v4453 = vpop.f32.mrf.mxu0
        %v4454 = vadd.f32 %v4382, %v4453
        %v4455 = vand.u32 %v4136, 4294901760
        %v4456 = vsub.f32 %v4136, %v4455
        %v4457 = vand.u32 %v4456, 4294901760
        %4458 = vmatmul.f32.gmra.mxu0 %v4457
        %v4459 = vpop.f32.mrf.mxu0
        %v4460 = vadd.f32 %v4387, %v4459
        %4461 = vdwg.mxu0
        %4462 = vmatpush.msra.mxu0 0.0
        %4463 = vmatpush.msra.mxu0 0.0
        %4464 = vmatpush.msra.mxu0 0.0
        %4465 = vmatpush.msra.mxu0 0.0
        %4466 = vmatpush.msra.mxu0 0.0
        %4467 = vmatpush.msra.mxu0 0.0
        %4468 = vmatpush.msra.mxu0 0.0
        %4469 = vmatpush.msra.mxu0 0.0
        %v4470 = vand.u32 %v4072, 4294901760
        %v4471 = vsub.f32 %v4072, %v4470
        %v4472 = vand.u32 %v4471, 4294901760
        %4473 = vmatpush.msra.mxu0 %v4472
        %v4474 = vand.u32 %v4068, 4294901760
        %v4475 = vsub.f32 %v4068, %v4474
        %v4476 = vand.u32 %v4475, 4294901760
        %4477 = vmatpush.msra.mxu0 %v4476
        %v4478 = vand.u32 %v3680, 4294901760
        %v4479 = vsub.f32 %v3680, %v4478
        %v4480 = vand.u32 %v4479, 4294901760
        %4481 = vmatpush.msra.mxu0 %v4480
        %v4482 = vand.u32 %v3676, 4294901760
        %v4483 = vsub.f32 %v3676, %v4482
        %v4484 = vand.u32 %v4483, 4294901760
        %4485 = vmatpush.msra.mxu0 %v4484
        %v4486 = vand.u32 %v3288, 4294901760
        %v4487 = vsub.f32 %v3288, %v4486
        %v4488 = vand.u32 %v4487, 4294901760
        %4489 = vmatpush.msra.mxu0 %v4488
        %v4490 = vand.u32 %v3284, 4294901760
        %v4491 = vsub.f32 %v3284, %v4490
        %v4492 = vand.u32 %v4491, 4294901760
        %4493 = vmatpush.msra.mxu0 %v4492
        %v4494 = vand.u32 %v2896, 4294901760
        %v4495 = vsub.f32 %v2896, %v4494
        %v4496 = vand.u32 %v4495, 4294901760
        %4497 = vmatpush.msra.mxu0 %v4496
        %v4498 = vand.u32 %v2892, 4294901760
        %v4499 = vsub.f32 %v2892, %v4498
        %v4500 = vand.u32 %v4499, 4294901760
        %4501 = vmatpush.msra.mxu0 %v4500
        %v4502 = vand.u32 %v4115, 4294901760
        %4503 = vmatmul.f32.gmra.mxu0 %v4502
        %v4504 = vpop.f32.mrf.mxu0
        %v4505 = vadd.f32 %v4418, %v4504
        %v4506 = vand.u32 %v4118, 4294901760
        %4507 = vmatmul.f32.gmra.mxu0 %v4506
        %v4508 = vpop.f32.mrf.mxu0
        %v4509 = vadd.f32 %v4424, %v4508
        %v4510 = vand.u32 %v4121, 4294901760
        %4511 = vmatmul.f32.gmra.mxu0 %v4510
        %v4512 = vpop.f32.mrf.mxu0
        %v4513 = vadd.f32 %v4430, %v4512
        %v4514 = vand.u32 %v4124, 4294901760
        %4515 = vmatmul.f32.gmra.mxu0 %v4514
        %v4516 = vpop.f32.mrf.mxu0
        %v4517 = vadd.f32 %v4436, %v4516
        %v4518 = vand.u32 %v4127, 4294901760
        %4519 = vmatmul.f32.gmra.mxu0 %v4518
        %v4520 = vpop.f32.mrf.mxu0
        %v4521 = vadd.f32 %v4442, %v4520
        %v4522 = vand.u32 %v4130, 4294901760
        %4523 = vmatmul.f32.gmra.mxu0 %v4522
        %v4524 = vpop.f32.mrf.mxu0
        %v4525 = vadd.f32 %v4448, %v4524
        %v4526 = vand.u32 %v4133, 4294901760
        %4527 = vmatmul.f32.gmra.mxu0 %v4526
        %v4528 = vpop.f32.mrf.mxu0
        %v4529 = vadd.f32 %v4454, %v4528
        %v4530 = vand.u32 %v4136, 4294901760
        %4531 = vmatmul.f32.gmra.mxu0 %v4530
        %v4532 = vpop.f32.mrf.mxu0
        %v4533 = vadd.f32 %v4460, %v4532
        %4534 = vdwg.mxu0
        %4535 = vmatpush.msra.mxu0 0.0
        %4536 = vmatpush.msra.mxu0 0.0
        %4537 = vmatpush.msra.mxu0 0.0
        %4538 = vmatpush.msra.mxu0 0.0
        %4539 = vmatpush.msra.mxu0 0.0
        %4540 = vmatpush.msra.mxu0 0.0
        %4541 = vmatpush.msra.mxu0 0.0
        %4542 = vmatpush.msra.mxu0 0.0
        %v4543 = vand.u32 %v4072, 4294901760
        %4544 = vmatpush.msra.mxu0 %v4543
        %v4545 = vand.u32 %v4068, 4294901760
        %4546 = vmatpush.msra.mxu0 %v4545
        %v4547 = vand.u32 %v3680, 4294901760
        %4548 = vmatpush.msra.mxu0 %v4547
        %v4549 = vand.u32 %v3676, 4294901760
        %4550 = vmatpush.msra.mxu0 %v4549
        %v4551 = vand.u32 %v3288, 4294901760
        %4552 = vmatpush.msra.mxu0 %v4551
        %v4553 = vand.u32 %v3284, 4294901760
        %4554 = vmatpush.msra.mxu0 %v4553
        %v4555 = vand.u32 %v2896, 4294901760
        %4556 = vmatpush.msra.mxu0 %v4555
        %v4557 = vand.u32 %v2892, 4294901760
        %4558 = vmatpush.msra.mxu0 %v4557
        %v4559 = vand.u32 %v4115, 4294901760
        %4560 = vmatmul.f32.gmra.mxu0 %v4559
        %v4561 = vpop.f32.mrf.mxu0
        %v4562 = vadd.f32 %v4505, %v4561
        %v4563 = vand.u32 %v4118, 4294901760
        %4564 = vmatmul.f32.gmra.mxu0 %v4563
        %v4565 = vpop.f32.mrf.mxu0
        %v4566 = vadd.f32 %v4509, %v4565
        %v4567 = vand.u32 %v4121, 4294901760
        %4568 = vmatmul.f32.gmra.mxu0 %v4567
        %v4569 = vpop.f32.mrf.mxu0
        %v4570 = vadd.f32 %v4513, %v4569
        %v4571 = vand.u32 %v4124, 4294901760
        %4572 = vmatmul.f32.gmra.mxu0 %v4571
        %v4573 = vpop.f32.mrf.mxu0
        %v4574 = vadd.f32 %v4517, %v4573
        %v4575 = vand.u32 %v4127, 4294901760
        %4576 = vmatmul.f32.gmra.mxu0 %v4575
        %v4577 = vpop.f32.mrf.mxu0
        %v4578 = vadd.f32 %v4521, %v4577
        %v4579 = vand.u32 %v4130, 4294901760
        %4580 = vmatmul.f32.gmra.mxu0 %v4579
        %v4581 = vpop.f32.mrf.mxu0
        %v4582 = vadd.f32 %v4525, %v4581
        %v4583 = vand.u32 %v4133, 4294901760
        %4584 = vmatmul.f32.gmra.mxu0 %v4583
        %v4585 = vpop.f32.mrf.mxu0
        %v4586 = vadd.f32 %v4529, %v4585
        %v4587 = vand.u32 %v4136, 4294901760
        %4588 = vmatmul.f32.gmra.mxu0 %v4587
        %v4589 = vpop.f32.mrf.mxu0
        %v4590 = vadd.f32 %v4533, %v4589
        %4591 = vdwg.mxu0
        %v4592 = vperm.slane %v4562, 0
        %v4593 = vlaneseq
        %v4594 = vshrl.u32 %v4593, 7
        %4596 = vset.pattern.permute.xlu0 %v4594
        %4597 = vperm.xlu0 %4596, %v4592
        %v4598 = vpop.permute.xlu0 %4597
        %v4599 = vperm.slane %v4562, 1
        %v4600 = vlaneseq
        %v4601 = vshrl.u32 %v4600, 7
        %4603 = vset.pattern.permute.xlu0 %v4601
        %4604 = vperm.xlu0 %4603, %v4599
        %v4605 = vpop.permute.xlu0 %4604
        %v4606 = vperm.slane %v4562, 2
        %v4607 = vlaneseq
        %v4608 = vshrl.u32 %v4607, 7
        %4610 = vset.pattern.permute.xlu0 %v4608
        %4611 = vperm.xlu0 %4610, %v4606
        %v4612 = vpop.permute.xlu0 %4611
        %v4613 = vperm.slane %v4562, 3
        %v4614 = vlaneseq
        %v4615 = vshrl.u32 %v4614, 7
        %4617 = vset.pattern.permute.xlu0 %v4615
        %4618 = vperm.xlu0 %4617, %v4613
        %v4619 = vpop.permute.xlu0 %4618
        %v4620 = vperm.slane %v4562, 4
        %v4621 = vlaneseq
        %v4622 = vshrl.u32 %v4621, 7
        %4624 = vset.pattern.permute.xlu0 %v4622
        %4625 = vperm.xlu0 %4624, %v4620
        %v4626 = vpop.permute.xlu0 %4625
        %v4627 = vperm.slane %v4562, 5
        %v4628 = vlaneseq
        %v4629 = vshrl.u32 %v4628, 7
        %4631 = vset.pattern.permute.xlu0 %v4629
        %4632 = vperm.xlu0 %4631, %v4627
        %v4633 = vpop.permute.xlu0 %4632
        %v4634 = vperm.slane %v4562, 6
        %v4635 = vlaneseq
        %v4636 = vshrl.u32 %v4635, 7
        %4638 = vset.pattern.permute.xlu0 %v4636
        %4639 = vperm.xlu0 %4638, %v4634
        %v4640 = vpop.permute.xlu0 %4639
        %v4641 = vperm.slane %v4562, 7
        %v4642 = vlaneseq
        %v4643 = vshrl.u32 %v4642, 7
        %4645 = vset.pattern.permute.xlu0 %v4643
        %4646 = vperm.xlu0 %4645, %v4641
        %v4647 = vpop.permute.xlu0 %4646
        %v4648 = vperm.slane %v4566, 0
        %v4649 = vlaneseq
        %v4650 = vshrl.u32 %v4649, 7
        %4652 = vset.pattern.permute.xlu0 %v4650
        %4653 = vperm.xlu0 %4652, %v4648
        %v4654 = vpop.permute.xlu0 %4653
        %v4655 = vperm.slane %v4566, 1
        %v4656 = vlaneseq
        %v4657 = vshrl.u32 %v4656, 7
        %4659 = vset.pattern.permute.xlu0 %v4657
        %4660 = vperm.xlu0 %4659, %v4655
        %v4661 = vpop.permute.xlu0 %4660
        %v4662 = vperm.slane %v4566, 2
        %v4663 = vlaneseq
        %v4664 = vshrl.u32 %v4663, 7
        %4666 = vset.pattern.permute.xlu0 %v4664
        %4667 = vperm.xlu0 %4666, %v4662
        %v4668 = vpop.permute.xlu0 %4667
        %v4669 = vperm.slane %v4566, 3
        %v4670 = vlaneseq
        %v4671 = vshrl.u32 %v4670, 7
        %4673 = vset.pattern.permute.xlu0 %v4671
        %4674 = vperm.xlu0 %4673, %v4669
        %v4675 = vpop.permute.xlu0 %4674
        %v4676 = vperm.slane %v4566, 4
        %v4677 = vlaneseq
        %v4678 = vshrl.u32 %v4677, 7
        %4680 = vset.pattern.permute.xlu0 %v4678
        %4681 = vperm.xlu0 %4680, %v4676
        %v4682 = vpop.permute.xlu0 %4681
        %v4683 = vperm.slane %v4566, 5
        %v4684 = vlaneseq
        %v4685 = vshrl.u32 %v4684, 7
        %4687 = vset.pattern.permute.xlu0 %v4685
        %4688 = vperm.xlu0 %4687, %v4683
        %v4689 = vpop.permute.xlu0 %4688
        %v4690 = vperm.slane %v4566, 6
        %v4691 = vlaneseq
        %v4692 = vshrl.u32 %v4691, 7
        %4694 = vset.pattern.permute.xlu0 %v4692
        %4695 = vperm.xlu0 %4694, %v4690
        %v4696 = vpop.permute.xlu0 %4695
        %v4697 = vperm.slane %v4566, 7
        %v4698 = vlaneseq
        %v4699 = vshrl.u32 %v4698, 7
        %4701 = vset.pattern.permute.xlu0 %v4699
        %4702 = vperm.xlu0 %4701, %v4697
        %v4703 = vpop.permute.xlu0 %4702
        %v4704 = vperm.slane %v4570, 0
        %v4705 = vlaneseq
        %v4706 = vshrl.u32 %v4705, 7
        %4708 = vset.pattern.permute.xlu0 %v4706
        %4709 = vperm.xlu0 %4708, %v4704
        %v4710 = vpop.permute.xlu0 %4709
        %v4711 = vperm.slane %v4570, 1
        %v4712 = vlaneseq
        %v4713 = vshrl.u32 %v4712, 7
        %4715 = vset.pattern.permute.xlu0 %v4713
        %4716 = vperm.xlu0 %4715, %v4711
        %v4717 = vpop.permute.xlu0 %4716
        %v4718 = vperm.slane %v4570, 2
        %v4719 = vlaneseq
        %v4720 = vshrl.u32 %v4719, 7
        %4722 = vset.pattern.permute.xlu0 %v4720
        %4723 = vperm.xlu0 %4722, %v4718
        %v4724 = vpop.permute.xlu0 %4723
        %v4725 = vperm.slane %v4570, 3
        %v4726 = vlaneseq
        %v4727 = vshrl.u32 %v4726, 7
        %4729 = vset.pattern.permute.xlu0 %v4727
        %4730 = vperm.xlu0 %4729, %v4725
        %v4731 = vpop.permute.xlu0 %4730
        %v4732 = vperm.slane %v4570, 4
        %v4733 = vlaneseq
        %v4734 = vshrl.u32 %v4733, 7
        %4736 = vset.pattern.permute.xlu0 %v4734
        %4737 = vperm.xlu0 %4736, %v4732
        %v4738 = vpop.permute.xlu0 %4737
        %v4739 = vperm.slane %v4570, 5
        %v4740 = vlaneseq
        %v4741 = vshrl.u32 %v4740, 7
        %4743 = vset.pattern.permute.xlu0 %v4741
        %4744 = vperm.xlu0 %4743, %v4739
        %v4745 = vpop.permute.xlu0 %4744
        %v4746 = vperm.slane %v4570, 6
        %v4747 = vlaneseq
        %v4748 = vshrl.u32 %v4747, 7
        %4750 = vset.pattern.permute.xlu0 %v4748
        %4751 = vperm.xlu0 %4750, %v4746
        %v4752 = vpop.permute.xlu0 %4751
        %v4753 = vperm.slane %v4570, 7
        %v4754 = vlaneseq
        %v4755 = vshrl.u32 %v4754, 7
        %4757 = vset.pattern.permute.xlu0 %v4755
        %4758 = vperm.xlu0 %4757, %v4753
        %v4759 = vpop.permute.xlu0 %4758
        %v4760 = vperm.slane %v4574, 0
        %v4761 = vlaneseq
        %v4762 = vshrl.u32 %v4761, 7
        %4764 = vset.pattern.permute.xlu0 %v4762
        %4765 = vperm.xlu0 %4764, %v4760
        %v4766 = vpop.permute.xlu0 %4765
        %v4767 = vperm.slane %v4574, 1
        %v4768 = vlaneseq
        %v4769 = vshrl.u32 %v4768, 7
        %4771 = vset.pattern.permute.xlu0 %v4769
        %4772 = vperm.xlu0 %4771, %v4767
        %v4773 = vpop.permute.xlu0 %4772
        %v4774 = vperm.slane %v4574, 2
        %v4775 = vlaneseq
        %v4776 = vshrl.u32 %v4775, 7
        %4778 = vset.pattern.permute.xlu0 %v4776
        %4779 = vperm.xlu0 %4778, %v4774
        %v4780 = vpop.permute.xlu0 %4779
        %v4781 = vperm.slane %v4574, 3
        %v4782 = vlaneseq
        %v4783 = vshrl.u32 %v4782, 7
        %4785 = vset.pattern.permute.xlu0 %v4783
        %4786 = vperm.xlu0 %4785, %v4781
        %v4787 = vpop.permute.xlu0 %4786
        %v4788 = vperm.slane %v4574, 4
        %v4789 = vlaneseq
        %v4790 = vshrl.u32 %v4789, 7
        %4792 = vset.pattern.permute.xlu0 %v4790
        %4793 = vperm.xlu0 %4792, %v4788
        %v4794 = vpop.permute.xlu0 %4793
        %v4795 = vperm.slane %v4574, 5
        %v4796 = vlaneseq
        %v4797 = vshrl.u32 %v4796, 7
        %4799 = vset.pattern.permute.xlu0 %v4797
        %4800 = vperm.xlu0 %4799, %v4795
        %v4801 = vpop.permute.xlu0 %4800
        %v4802 = vperm.slane %v4574, 6
        %v4803 = vlaneseq
        %v4804 = vshrl.u32 %v4803, 7
        %4806 = vset.pattern.permute.xlu0 %v4804
        %4807 = vperm.xlu0 %4806, %v4802
        %v4808 = vpop.permute.xlu0 %4807
        %v4809 = vperm.slane %v4574, 7
        %v4810 = vlaneseq
        %v4811 = vshrl.u32 %v4810, 7
        %4813 = vset.pattern.permute.xlu0 %v4811
        %4814 = vperm.xlu0 %4813, %v4809
        %v4815 = vpop.permute.xlu0 %4814
        %v4816 = vperm.slane %v4578, 0
        %v4817 = vlaneseq
        %v4818 = vshrl.u32 %v4817, 7
        %4820 = vset.pattern.permute.xlu0 %v4818
        %4821 = vperm.xlu0 %4820, %v4816
        %v4822 = vpop.permute.xlu0 %4821
        %v4823 = vperm.slane %v4578, 1
        %v4824 = vlaneseq
        %v4825 = vshrl.u32 %v4824, 7
        %4827 = vset.pattern.permute.xlu0 %v4825
        %4828 = vperm.xlu0 %4827, %v4823
        %v4829 = vpop.permute.xlu0 %4828
        %v4830 = vperm.slane %v4578, 2
        %v4831 = vlaneseq
        %v4832 = vshrl.u32 %v4831, 7
        %4834 = vset.pattern.permute.xlu0 %v4832
        %4835 = vperm.xlu0 %4834, %v4830
        %v4836 = vpop.permute.xlu0 %4835
        %v4837 = vperm.slane %v4578, 3
        %v4838 = vlaneseq
        %v4839 = vshrl.u32 %v4838, 7
        %4841 = vset.pattern.permute.xlu0 %v4839
        %4842 = vperm.xlu0 %4841, %v4837
        %v4843 = vpop.permute.xlu0 %4842
        %v4844 = vperm.slane %v4578, 4
        %v4845 = vlaneseq
        %v4846 = vshrl.u32 %v4845, 7
        %4848 = vset.pattern.permute.xlu0 %v4846
        %4849 = vperm.xlu0 %4848, %v4844
        %v4850 = vpop.permute.xlu0 %4849
        %v4851 = vperm.slane %v4578, 5
        %v4852 = vlaneseq
        %v4853 = vshrl.u32 %v4852, 7
        %4855 = vset.pattern.permute.xlu0 %v4853
        %4856 = vperm.xlu0 %4855, %v4851
        %v4857 = vpop.permute.xlu0 %4856
        %v4858 = vperm.slane %v4578, 6
        %v4859 = vlaneseq
        %v4860 = vshrl.u32 %v4859, 7
        %4862 = vset.pattern.permute.xlu0 %v4860
        %4863 = vperm.xlu0 %4862, %v4858
        %v4864 = vpop.permute.xlu0 %4863
        %v4865 = vperm.slane %v4578, 7
        %v4866 = vlaneseq
        %v4867 = vshrl.u32 %v4866, 7
        %4869 = vset.pattern.permute.xlu0 %v4867
        %4870 = vperm.xlu0 %4869, %v4865
        %v4871 = vpop.permute.xlu0 %4870
        %v4872 = vperm.slane %v4582, 0
        %v4873 = vlaneseq
        %v4874 = vshrl.u32 %v4873, 7
        %4876 = vset.pattern.permute.xlu0 %v4874
        %4877 = vperm.xlu0 %4876, %v4872
        %v4878 = vpop.permute.xlu0 %4877
        %v4879 = vperm.slane %v4582, 1
        %v4880 = vlaneseq
        %v4881 = vshrl.u32 %v4880, 7
        %4883 = vset.pattern.permute.xlu0 %v4881
        %4884 = vperm.xlu0 %4883, %v4879
        %v4885 = vpop.permute.xlu0 %4884
        %v4886 = vperm.slane %v4582, 2
        %v4887 = vlaneseq
        %v4888 = vshrl.u32 %v4887, 7
        %4890 = vset.pattern.permute.xlu0 %v4888
        %4891 = vperm.xlu0 %4890, %v4886
        %v4892 = vpop.permute.xlu0 %4891
        %v4893 = vperm.slane %v4582, 3
        %v4894 = vlaneseq
        %v4895 = vshrl.u32 %v4894, 7
        %4897 = vset.pattern.permute.xlu0 %v4895
        %4898 = vperm.xlu0 %4897, %v4893
        %v4899 = vpop.permute.xlu0 %4898
        %v4900 = vperm.slane %v4582, 4
        %v4901 = vlaneseq
        %v4902 = vshrl.u32 %v4901, 7
        %4904 = vset.pattern.permute.xlu0 %v4902
        %4905 = vperm.xlu0 %4904, %v4900
        %v4906 = vpop.permute.xlu0 %4905
        %v4907 = vperm.slane %v4582, 5
        %v4908 = vlaneseq
        %v4909 = vshrl.u32 %v4908, 7
        %4911 = vset.pattern.permute.xlu0 %v4909
        %4912 = vperm.xlu0 %4911, %v4907
        %v4913 = vpop.permute.xlu0 %4912
        %v4914 = vperm.slane %v4582, 6
        %v4915 = vlaneseq
        %v4916 = vshrl.u32 %v4915, 7
        %4918 = vset.pattern.permute.xlu0 %v4916
        %4919 = vperm.xlu0 %4918, %v4914
        %v4920 = vpop.permute.xlu0 %4919
        %v4921 = vperm.slane %v4582, 7
        %v4922 = vlaneseq
        %v4923 = vshrl.u32 %v4922, 7
        %4925 = vset.pattern.permute.xlu0 %v4923
        %4926 = vperm.xlu0 %4925, %v4921
        %v4927 = vpop.permute.xlu0 %4926
        %v4928 = vperm.slane %v4586, 0
        %v4929 = vlaneseq
        %v4930 = vshrl.u32 %v4929, 7
        %4932 = vset.pattern.permute.xlu0 %v4930
        %4933 = vperm.xlu0 %4932, %v4928
        %v4934 = vpop.permute.xlu0 %4933
        %v4935 = vperm.slane %v4586, 1
        %v4936 = vlaneseq
        %v4937 = vshrl.u32 %v4936, 7
        %4939 = vset.pattern.permute.xlu0 %v4937
        %4940 = vperm.xlu0 %4939, %v4935
        %v4941 = vpop.permute.xlu0 %4940
        %v4942 = vperm.slane %v4586, 2
        %v4943 = vlaneseq
        %v4944 = vshrl.u32 %v4943, 7
        %4946 = vset.pattern.permute.xlu0 %v4944
        %4947 = vperm.xlu0 %4946, %v4942
        %v4948 = vpop.permute.xlu0 %4947
        %v4949 = vperm.slane %v4586, 3
        %v4950 = vlaneseq
        %v4951 = vshrl.u32 %v4950, 7
        %4953 = vset.pattern.permute.xlu0 %v4951
        %4954 = vperm.xlu0 %4953, %v4949
        %v4955 = vpop.permute.xlu0 %4954
        %v4956 = vperm.slane %v4586, 4
        %v4957 = vlaneseq
        %v4958 = vshrl.u32 %v4957, 7
        %4960 = vset.pattern.permute.xlu0 %v4958
        %4961 = vperm.xlu0 %4960, %v4956
        %v4962 = vpop.permute.xlu0 %4961
        %v4963 = vperm.slane %v4586, 5
        %v4964 = vlaneseq
        %v4965 = vshrl.u32 %v4964, 7
        %4967 = vset.pattern.permute.xlu0 %v4965
        %4968 = vperm.xlu0 %4967, %v4963
        %v4969 = vpop.permute.xlu0 %4968
        %v4970 = vperm.slane %v4586, 6
        %v4971 = vlaneseq
        %v4972 = vshrl.u32 %v4971, 7
        %4974 = vset.pattern.permute.xlu0 %v4972
        %4975 = vperm.xlu0 %4974, %v4970
        %v4976 = vpop.permute.xlu0 %4975
        %v4977 = vperm.slane %v4586, 7
        %v4978 = vlaneseq
        %v4979 = vshrl.u32 %v4978, 7
        %4981 = vset.pattern.permute.xlu0 %v4979
        %4982 = vperm.xlu0 %4981, %v4977
        %v4983 = vpop.permute.xlu0 %4982
        %v4984 = vperm.slane %v4590, 0
        %v4985 = vlaneseq
        %v4986 = vshrl.u32 %v4985, 7
        %4988 = vset.pattern.permute.xlu0 %v4986
        %4989 = vperm.xlu0 %4988, %v4984
        %v4990 = vpop.permute.xlu0 %4989
        %v4991 = vperm.slane %v4590, 1
        %v4992 = vlaneseq
        %v4993 = vshrl.u32 %v4992, 7
        %4995 = vset.pattern.permute.xlu0 %v4993
        %4996 = vperm.xlu0 %4995, %v4991
        %v4997 = vpop.permute.xlu0 %4996
        %v4998 = vperm.slane %v4590, 2
        %v4999 = vlaneseq
        %v5000 = vshrl.u32 %v4999, 7
        %5002 = vset.pattern.permute.xlu0 %v5000
        %5003 = vperm.xlu0 %5002, %v4998
        %v5004 = vpop.permute.xlu0 %5003
        %v5005 = vperm.slane %v4590, 3
        %v5006 = vlaneseq
        %v5007 = vshrl.u32 %v5006, 7
        %5009 = vset.pattern.permute.xlu0 %v5007
        %5010 = vperm.xlu0 %5009, %v5005
        %v5011 = vpop.permute.xlu0 %5010
        %v5012 = vperm.slane %v4590, 4
        %v5013 = vlaneseq
        %v5014 = vshrl.u32 %v5013, 7
        %5016 = vset.pattern.permute.xlu0 %v5014
        %5017 = vperm.xlu0 %5016, %v5012
        %v5018 = vpop.permute.xlu0 %5017
        %v5019 = vperm.slane %v4590, 5
        %v5020 = vlaneseq
        %v5021 = vshrl.u32 %v5020, 7
        %5023 = vset.pattern.permute.xlu0 %v5021
        %5024 = vperm.xlu0 %5023, %v5019
        %v5025 = vpop.permute.xlu0 %5024
        %v5026 = vperm.slane %v4590, 6
        %v5027 = vlaneseq
        %v5028 = vshrl.u32 %v5027, 7
        %5030 = vset.pattern.permute.xlu0 %v5028
        %5031 = vperm.xlu0 %5030, %v5026
        %v5032 = vpop.permute.xlu0 %5031
        %v5033 = vperm.slane %v4590, 7
        %v5034 = vlaneseq
        %v5035 = vshrl.u32 %v5034, 7
        %5037 = vset.pattern.permute.xlu0 %v5035
        %5038 = vperm.xlu0 %5037, %v5033
        %v5039 = vpop.permute.xlu0 %5038
        %v5040 = vadd.f32 %v292, %v4598
        %v5041 = vadd.f32 %v293, %v4598
        %v5042 = vadd.f32 %v294, %v4605
        %v5043 = vadd.f32 %v295, %v4605
        %v5044 = vadd.f32 %v296, %v4612
        %v5045 = vadd.f32 %v297, %v4612
        %v5046 = vadd.f32 %v298, %v4619
        %v5047 = vadd.f32 %v299, %v4619
        %v5048 = vadd.f32 %v300, %v4626
        %v5049 = vadd.f32 %v301, %v4626
        %v5050 = vadd.f32 %v302, %v4633
        %v5051 = vadd.f32 %v303, %v4633
        %v5052 = vadd.f32 %v304, %v4640
        %v5053 = vadd.f32 %v305, %v4640
        %v5054 = vadd.f32 %v306, %v4647
        %v5055 = vadd.f32 %v307, %v4647
        %v5056 = vadd.f32 %v308, %v4654
        %v5057 = vadd.f32 %v309, %v4654
        %v5058 = vadd.f32 %v310, %v4661
        %v5059 = vadd.f32 %v311, %v4661
        %v5060 = vadd.f32 %v312, %v4668
        %v5061 = vadd.f32 %v313, %v4668
        %v5062 = vadd.f32 %v314, %v4675
        %v5063 = vadd.f32 %v315, %v4675
        %v5064 = vadd.f32 %v316, %v4682
        %v5065 = vadd.f32 %v317, %v4682
        %v5066 = vadd.f32 %v318, %v4689
        %v5067 = vadd.f32 %v319, %v4689
        %v5068 = vadd.f32 %v320, %v4696
        %v5069 = vadd.f32 %v321, %v4696
        %v5070 = vadd.f32 %v322, %v4703
        %v5071 = vadd.f32 %v323, %v4703
        %v5072 = vadd.f32 %v324, %v4710
        %v5073 = vadd.f32 %v325, %v4710
        %v5074 = vadd.f32 %v326, %v4717
        %v5075 = vadd.f32 %v327, %v4717
        %v5076 = vadd.f32 %v328, %v4724
        %v5077 = vadd.f32 %v329, %v4724
        %v5078 = vadd.f32 %v330, %v4731
        %v5079 = vadd.f32 %v331, %v4731
        %v5080 = vadd.f32 %v332, %v4738
        %v5081 = vadd.f32 %v333, %v4738
        %v5082 = vadd.f32 %v334, %v4745
        %v5083 = vadd.f32 %v335, %v4745
        %v5084 = vadd.f32 %v336, %v4752
        %v5085 = vadd.f32 %v337, %v4752
        %v5086 = vadd.f32 %v338, %v4759
        %v5087 = vadd.f32 %v339, %v4759
        %v5088 = vadd.f32 %v340, %v4766
        %v5089 = vadd.f32 %v341, %v4766
        %v5090 = vadd.f32 %v342, %v4773
        %v5091 = vadd.f32 %v343, %v4773
        %v5092 = vadd.f32 %v344, %v4780
        %v5093 = vadd.f32 %v345, %v4780
        %v5094 = vadd.f32 %v346, %v4787
        %v5095 = vadd.f32 %v347, %v4787
        %v5096 = vadd.f32 %v348, %v4794
        %v5097 = vadd.f32 %v349, %v4794
        %v5098 = vadd.f32 %v350, %v4801
        %v5099 = vadd.f32 %v351, %v4801
        %v5100 = vadd.f32 %v352, %v4808
        %v5101 = vadd.f32 %v353, %v4808
        %v5102 = vadd.f32 %v354, %v4815
        %v5103 = vadd.f32 %v355, %v4815
        %v5104 = vadd.f32 %v356, %v4822
        %v5105 = vadd.f32 %v357, %v4822
        %v5106 = vadd.f32 %v358, %v4829
        %v5107 = vadd.f32 %v359, %v4829
        %v5108 = vadd.f32 %v360, %v4836
        %v5109 = vadd.f32 %v361, %v4836
        %v5110 = vadd.f32 %v362, %v4843
        %v5111 = vadd.f32 %v363, %v4843
        %v5112 = vadd.f32 %v364, %v4850
        %v5113 = vadd.f32 %v365, %v4850
        %v5114 = vadd.f32 %v366, %v4857
        %v5115 = vadd.f32 %v367, %v4857
        %v5116 = vadd.f32 %v368, %v4864
        %v5117 = vadd.f32 %v369, %v4864
        %v5118 = vadd.f32 %v370, %v4871
        %v5119 = vadd.f32 %v371, %v4871
        %v5120 = vadd.f32 %v372, %v4878
        %v5121 = vadd.f32 %v373, %v4878
        %v5122 = vadd.f32 %v374, %v4885
        %v5123 = vadd.f32 %v375, %v4885
        %v5124 = vadd.f32 %v376, %v4892
        %v5125 = vadd.f32 %v377, %v4892
        %v5126 = vadd.f32 %v378, %v4899
        %v5127 = vadd.f32 %v379, %v4899
        %v5128 = vadd.f32 %v380, %v4906
        %v5129 = vadd.f32 %v381, %v4906
        %v5130 = vadd.f32 %v382, %v4913
        %v5131 = vadd.f32 %v383, %v4913
        %v5132 = vadd.f32 %v384, %v4920
        %v5133 = vadd.f32 %v385, %v4920
        %v5134 = vadd.f32 %v386, %v4927
        %v5135 = vadd.f32 %v387, %v4927
        %v5136 = vadd.f32 %v388, %v4934
        %v5137 = vadd.f32 %v389, %v4934
        %v5138 = vadd.f32 %v390, %v4941
        %v5139 = vadd.f32 %v391, %v4941
        %v5140 = vadd.f32 %v392, %v4948
        %v5141 = vadd.f32 %v393, %v4948
        %v5142 = vadd.f32 %v394, %v4955
        %v5143 = vadd.f32 %v395, %v4955
        %v5144 = vadd.f32 %v396, %v4962
        %v5145 = vadd.f32 %v397, %v4962
        %v5146 = vadd.f32 %v398, %v4969
        %v5147 = vadd.f32 %v399, %v4969
        %v5148 = vadd.f32 %v400, %v4976
        %v5149 = vadd.f32 %v401, %v4976
        %v5150 = vadd.f32 %v402, %v4983
        %v5151 = vadd.f32 %v403, %v4983
        %v5152 = vadd.f32 %v404, %v4990
        %v5153 = vadd.f32 %v405, %v4990
        %v5154 = vadd.f32 %v406, %v4997
        %v5155 = vadd.f32 %v407, %v4997
        %v5156 = vadd.f32 %v408, %v5004
        %v5157 = vadd.f32 %v409, %v5004
        %v5158 = vadd.f32 %v410, %v5011
        %v5159 = vadd.f32 %v411, %v5011
        %v5160 = vadd.f32 %v412, %v5018
        %v5161 = vadd.f32 %v413, %v5018
        %v5162 = vadd.f32 %v414, %v5025
        %v5163 = vadd.f32 %v415, %v5025
        %v5164 = vadd.f32 %v416, %v5032
        %v5165 = vadd.f32 %v417, %v5032
        %v5166 = vadd.f32 %v418, %v5039
        %v5167 = vadd.f32 %v419, %v5039
        %5168 = vst [vmem:[%s286] sm:$0xff] %v5040
        %5169 = vst [vmem:[%s286 + $0x8] sm:$0xff] %v5041
        %5170 = vst [vmem:[%s286 + $0x10] sm:$0xff] %v5042
        %5171 = vst [vmem:[%s286 + $0x18] sm:$0xff] %v5043
        %5172 = vst [vmem:[%s286 + $0x20] sm:$0xff] %v5044
        %5173 = vst [vmem:[%s286 + $0x28] sm:$0xff] %v5045
        %5174 = vst [vmem:[%s286 + $0x30] sm:$0xff] %v5046
        %5175 = vst [vmem:[%s286 + $0x38] sm:$0xff] %v5047
        %5176 = vst [vmem:[%s286 + $0x40] sm:$0xff] %v5048
        %5177 = vst [vmem:[%s286 + $0x48] sm:$0xff] %v5049
        %5178 = vst [vmem:[%s286 + $0x50] sm:$0xff] %v5050
        %5179 = vst [vmem:[%s286 + $0x58] sm:$0xff] %v5051
        %5180 = vst [vmem:[%s286 + $0x60] sm:$0xff] %v5052
        %5181 = vst [vmem:[%s286 + $0x68] sm:$0xff] %v5053
        %5182 = vst [vmem:[%s286 + $0x70] sm:$0xff] %v5054
        %5183 = vst [vmem:[%s286 + $0x78] sm:$0xff] %v5055
        %5184 = vst [vmem:[%s286 + $0x80] sm:$0xff] %v5056
        %5185 = vst [vmem:[%s286 + $0x88] sm:$0xff] %v5057
        %5186 = vst [vmem:[%s286 + $0x90] sm:$0xff] %v5058
        %5187 = vst [vmem:[%s286 + $0x98] sm:$0xff] %v5059
        %5188 = vst [vmem:[%s286 + $0xa0] sm:$0xff] %v5060
        %5189 = vst [vmem:[%s286 + $0xa8] sm:$0xff] %v5061
        %5190 = vst [vmem:[%s286 + $0xb0] sm:$0xff] %v5062
        %5191 = vst [vmem:[%s286 + $0xb8] sm:$0xff] %v5063
        %5192 = vst [vmem:[%s286 + $0xc0] sm:$0xff] %v5064
        %5193 = vst [vmem:[%s286 + $0xc8] sm:$0xff] %v5065
        %5194 = vst [vmem:[%s286 + $0xd0] sm:$0xff] %v5066
        %5195 = vst [vmem:[%s286 + $0xd8] sm:$0xff] %v5067
        %5196 = vst [vmem:[%s286 + $0xe0] sm:$0xff] %v5068
        %5197 = vst [vmem:[%s286 + $0xe8] sm:$0xff] %v5069
        %5198 = vst [vmem:[%s286 + $0xf0] sm:$0xff] %v5070
        %5199 = vst [vmem:[%s286 + $0xf8] sm:$0xff] %v5071
        %5200 = vst [vmem:[%s286 + $0x100] sm:$0xff] %v5072
        %5201 = vst [vmem:[%s286 + $0x108] sm:$0xff] %v5073
        %5202 = vst [vmem:[%s286 + $0x110] sm:$0xff] %v5074
        %5203 = vst [vmem:[%s286 + $0x118] sm:$0xff] %v5075
        %5204 = vst [vmem:[%s286 + $0x120] sm:$0xff] %v5076
        %5205 = vst [vmem:[%s286 + $0x128] sm:$0xff] %v5077
        %5206 = vst [vmem:[%s286 + $0x130] sm:$0xff] %v5078
        %5207 = vst [vmem:[%s286 + $0x138] sm:$0xff] %v5079
        %5208 = vst [vmem:[%s286 + $0x140] sm:$0xff] %v5080
        %5209 = vst [vmem:[%s286 + $0x148] sm:$0xff] %v5081
        %5210 = vst [vmem:[%s286 + $0x150] sm:$0xff] %v5082
        %5211 = vst [vmem:[%s286 + $0x158] sm:$0xff] %v5083
        %5212 = vst [vmem:[%s286 + $0x160] sm:$0xff] %v5084
        %5213 = vst [vmem:[%s286 + $0x168] sm:$0xff] %v5085
        %5214 = vst [vmem:[%s286 + $0x170] sm:$0xff] %v5086
        %5215 = vst [vmem:[%s286 + $0x178] sm:$0xff] %v5087
        %5216 = vst [vmem:[%s286 + $0x180] sm:$0xff] %v5088
        %5217 = vst [vmem:[%s286 + $0x188] sm:$0xff] %v5089
        %5218 = vst [vmem:[%s286 + $0x190] sm:$0xff] %v5090
        %5219 = vst [vmem:[%s286 + $0x198] sm:$0xff] %v5091
        %5220 = vst [vmem:[%s286 + $0x1a0] sm:$0xff] %v5092
        %5221 = vst [vmem:[%s286 + $0x1a8] sm:$0xff] %v5093
        %5222 = vst [vmem:[%s286 + $0x1b0] sm:$0xff] %v5094
        %5223 = vst [vmem:[%s286 + $0x1b8] sm:$0xff] %v5095
        %5224 = vst [vmem:[%s286 + $0x1c0] sm:$0xff] %v5096
        %5225 = vst [vmem:[%s286 + $0x1c8] sm:$0xff] %v5097
        %5226 = vst [vmem:[%s286 + $0x1d0] sm:$0xff] %v5098
        %5227 = vst [vmem:[%s286 + $0x1d8] sm:$0xff] %v5099
        %5228 = vst [vmem:[%s286 + $0x1e0] sm:$0xff] %v5100
        %5229 = vst [vmem:[%s286 + $0x1e8] sm:$0xff] %v5101
        %5230 = vst [vmem:[%s286 + $0x1f0] sm:$0xff] %v5102
        %5231 = vst [vmem:[%s286 + $0x1f8] sm:$0xff] %v5103
        %5232 = vst [vmem:[%s286 + $0x200] sm:$0xff] %v5104
        %5233 = vst [vmem:[%s286 + $0x208] sm:$0xff] %v5105
        %5234 = vst [vmem:[%s286 + $0x210] sm:$0xff] %v5106
        %5235 = vst [vmem:[%s286 + $0x218] sm:$0xff] %v5107
        %5236 = vst [vmem:[%s286 + $0x220] sm:$0xff] %v5108
        %5237 = vst [vmem:[%s286 + $0x228] sm:$0xff] %v5109
        %5238 = vst [vmem:[%s286 + $0x230] sm:$0xff] %v5110
        %5239 = vst [vmem:[%s286 + $0x238] sm:$0xff] %v5111
        %5240 = vst [vmem:[%s286 + $0x240] sm:$0xff] %v5112
        %5241 = vst [vmem:[%s286 + $0x248] sm:$0xff] %v5113
        %5242 = vst [vmem:[%s286 + $0x250] sm:$0xff] %v5114
        %5243 = vst [vmem:[%s286 + $0x258] sm:$0xff] %v5115
        %5244 = vst [vmem:[%s286 + $0x260] sm:$0xff] %v5116
        %5245 = vst [vmem:[%s286 + $0x268] sm:$0xff] %v5117
        %5246 = vst [vmem:[%s286 + $0x270] sm:$0xff] %v5118
        %5247 = vst [vmem:[%s286 + $0x278] sm:$0xff] %v5119
        %5248 = vst [vmem:[%s286 + $0x280] sm:$0xff] %v5120
        %5249 = vst [vmem:[%s286 + $0x288] sm:$0xff] %v5121
        %5250 = vst [vmem:[%s286 + $0x290] sm:$0xff] %v5122
        %5251 = vst [vmem:[%s286 + $0x298] sm:$0xff] %v5123
        %5252 = vst [vmem:[%s286 + $0x2a0] sm:$0xff] %v5124
        %5253 = vst [vmem:[%s286 + $0x2a8] sm:$0xff] %v5125
        %5254 = vst [vmem:[%s286 + $0x2b0] sm:$0xff] %v5126
        %5255 = vst [vmem:[%s286 + $0x2b8] sm:$0xff] %v5127
        %5256 = vst [vmem:[%s286 + $0x2c0] sm:$0xff] %v5128
        %5257 = vst [vmem:[%s286 + $0x2c8] sm:$0xff] %v5129
        %5258 = vst [vmem:[%s286 + $0x2d0] sm:$0xff] %v5130
        %5259 = vst [vmem:[%s286 + $0x2d8] sm:$0xff] %v5131
        %5260 = vst [vmem:[%s286 + $0x2e0] sm:$0xff] %v5132
        %5261 = vst [vmem:[%s286 + $0x2e8] sm:$0xff] %v5133
        %5262 = vst [vmem:[%s286 + $0x2f0] sm:$0xff] %v5134
        %5263 = vst [vmem:[%s286 + $0x2f8] sm:$0xff] %v5135
        %5264 = vst [vmem:[%s286 + $0x300] sm:$0xff] %v5136
        %5265 = vst [vmem:[%s286 + $0x308] sm:$0xff] %v5137
        %5266 = vst [vmem:[%s286 + $0x310] sm:$0xff] %v5138
        %5267 = vst [vmem:[%s286 + $0x318] sm:$0xff] %v5139
        %5268 = vst [vmem:[%s286 + $0x320] sm:$0xff] %v5140
        %5269 = vst [vmem:[%s286 + $0x328] sm:$0xff] %v5141
        %5270 = vst [vmem:[%s286 + $0x330] sm:$0xff] %v5142
        %5271 = vst [vmem:[%s286 + $0x338] sm:$0xff] %v5143
        %5272 = vst [vmem:[%s286 + $0x340] sm:$0xff] %v5144
        %5273 = vst [vmem:[%s286 + $0x348] sm:$0xff] %v5145
        %5274 = vst [vmem:[%s286 + $0x350] sm:$0xff] %v5146
        %5275 = vst [vmem:[%s286 + $0x358] sm:$0xff] %v5147
        %5276 = vst [vmem:[%s286 + $0x360] sm:$0xff] %v5148
        %5277 = vst [vmem:[%s286 + $0x368] sm:$0xff] %v5149
        %5278 = vst [vmem:[%s286 + $0x370] sm:$0xff] %v5150
        %5279 = vst [vmem:[%s286 + $0x378] sm:$0xff] %v5151
        %5280 = vst [vmem:[%s286 + $0x380] sm:$0xff] %v5152
        %5281 = vst [vmem:[%s286 + $0x388] sm:$0xff] %v5153
        %5282 = vst [vmem:[%s286 + $0x390] sm:$0xff] %v5154
        %5283 = vst [vmem:[%s286 + $0x398] sm:$0xff] %v5155
        %5284 = vst [vmem:[%s286 + $0x3a0] sm:$0xff] %v5156
        %5285 = vst [vmem:[%s286 + $0x3a8] sm:$0xff] %v5157
        %5286 = vst [vmem:[%s286 + $0x3b0] sm:$0xff] %v5158
        %5287 = vst [vmem:[%s286 + $0x3b8] sm:$0xff] %v5159
        %5288 = vst [vmem:[%s286 + $0x3c0] sm:$0xff] %v5160
        %5289 = vst [vmem:[%s286 + $0x3c8] sm:$0xff] %v5161
        %5290 = vst [vmem:[%s286 + $0x3d0] sm:$0xff] %v5162
        %5291 = vst [vmem:[%s286 + $0x3d8] sm:$0xff] %v5163
        %5292 = vst [vmem:[%s286 + $0x3e0] sm:$0xff] %v5164
        %5293 = vst [vmem:[%s286 + $0x3e8] sm:$0xff] %v5165
        %5294 = vst [vmem:[%s286 + $0x3f0] sm:$0xff] %v5166
        %5295 = vst [vmem:[%s286 + $0x3f8] sm:$0xff] %v5167
        %s5296 = sand.u32 %s167, 1
        %s5297 = scalar_lea.sflag [#allocation4], %s5296
        %s5298 = sand.u32 %s167, 1
        %s5299 = smul.addr %s5298, 1024
        %s5300 = scalar_lea.vmem [#allocation5], %s5299
        // Predicated region
        $region49: #{tpu_custom_call.1} parent=43 // pred_check
          %p5301 = pneg %p177
        $region50: #{tpu_custom_call.1} parent=43 // pred_check_branch
          %5303 = sbr.rel (%p5301) target = $region52
        $region51: #{tpu_custom_call.1} parent=43 // pred_region
          %5305 = vsyncadd %s5297, 0
          %s5306 = smul.addr %s23, 128
          %s5307 = smul.addr %s5306, 8
          %s5308 = scalar_lea.hbm %s6, %s5307
          %s5309 = sshll.u32 %s5300, 4
          %s5310 = int_to_ptr.vmem [resolvable:$true] %s5309
          %s5311 = sshll.u32 %s5308, 4
          %s5312 = int_to_ptr.hbm [resolvable:$true] %s5311
          %5317 = dma.vmem_to_hbm [thread:$0]  %s5310, 16384, %s5312, %s5297, 256, 256, 16
        $region52: #{tpu_custom_call.1} parent=43 // pred_fallthru
          _
      $region44: #{tpu_custom_call.1} parent=5 // pred_fallthru
        _
      %p5318 = scmp.le.s32.totalorder 2, %s18
      // Predicated region
      $region53: #{tpu_custom_call.1} parent=5 // pred_check
        %p5319 = pneg %p5318
      $region54: #{tpu_custom_call.1} parent=5 // pred_check_branch
        %5321 = sbr.rel (%p5319) target = $region56
      $region55: #{tpu_custom_call.1} parent=5 // pred_region
        %s5322 = ssub.s32 %s18, 2
        // Predicated region
        $region57: #{tpu_custom_call.1} parent=55 // pred_check
          %p5323 = pneg %p183
        $region58: #{tpu_custom_call.1} parent=55 // pred_check_branch
          %5325 = sbr.rel (%p5323) target = $region60
        $region59: #{tpu_custom_call.1} parent=55 // pred_region
          %s5326 = sand.u32 %s168, 1
          %s5327 = scalar_lea.sflag [#allocation4], %s5326
          %s5328 = sand.u32 %s168, 1
          %s5329 = smul.addr %s5328, 1024
          %s5330 = scalar_lea.vmem [#allocation5], %s5329
          %5332 = dma.done %s5327, 16384
        $region60: #{tpu_custom_call.1} parent=55 // pred_fallthru
          _
      $region56: #{tpu_custom_call.1} parent=5 // pred_fallthru
        _
    $region6: #{tpu_custom_call.1} parent=1 // loop_footer
      %s22 = sadd.s32 1, %s18
    $region7: #{tpu_custom_call.1} parent=1 // loop_footer_branch
      %17 = sbr.rel target = $region3
    $region8: #{tpu_custom_call.1} parent=1 // loop_exit
      _
    %5333 = vsyncpa [#allocation3], 1
    %s5334 = scalar_lea.sflag [#allocation3], 1
    %5335 = vsyncpa %s5334, 1
    %5336 = vsyncpa [#allocation4], 1
    %s5337 = scalar_lea.sflag [#allocation4], 1
    %5338 = vsyncpa %s5337, 1

</llo_original>
